<compile_context>
chip_gen: v7x
topology: tpu7x:2x2x1
jax: 0.10.0
libtpu: 0.0.40
codegen_flags: <defaults>
</compile_context>

<pallas_src>
import functools

import jax
import jax.numpy as jnp
from jax.experimental import pallas as pl
from jax.experimental.pallas import tpu as pltpu

F_FEAT = 8    # self.F in the torch module
D_DEPTH = 2   # self.D


def _block1_kernel(x_ref, m_ref, s_ref, w2_ref, t2_ref, pool_ref, o_ref, *,
                   c_dim, b_tile):
    """One batch tile per grid step: 3 branches + concat + avg-pool, fully fused.

    x_ref:    (B*C, T)            bf16  input tile (B samples, rows b-major/c-minor)
    m_ref:    (T, 3*F*T)          bf16  banded temporal conv * BN1 scale (branches on lanes)
    s_ref:    (1, 3*F*T)          f32   conv1 bias + BN1 shift row
    w2_ref:   (3*F*D, 3*F*C)      bf16  block-diag grouped conv * BN2 scale (all branches)
    t2_ref:   (3*F*D, 1)          f32   conv2 bias + BN2 shift column
    pool_ref: (B*T, B*T/4)        bf16  block-diag (over batch) avg-pool matrix
    o_ref:    (1, 3*F*D, B*T/4)   f32   pooled output, samples packed along lanes
    """
    t_dim = x_ref.shape[1]
    x = x_ref[...]                                                     # (B*C, T) bf16

    # Stage 1: temporal conv + zero-pad + BN1 for ALL branches in ONE MXU matmul.
    a = jnp.dot(x, m_ref[...], preferred_element_type=jnp.float32)    # (B*C, 3*F*T)
    a = a + s_ref[...]
    a = jnp.where(a > 0, a, jnp.exp(jnp.minimum(a, 0.0)) - 1.0)       # ELU (clamped exp)

    # Regroup (B*C, 3*F*T) -> (3*F*C, B*T): rows (branch, f, c), lanes (b, t).
    # Slices are static, 128-lane / 8-sublane aligned block copies in f32.
    n_groups = s_ref.shape[1] // t_dim                                 # 3*F
    row_blocks = []
    for g in range(n_groups):
        col0 = g * t_dim
        row_blocks.append(jnp.concatenate(
            [a[b * c_dim:(b + 1) * c_dim, col0:col0 + t_dim] for b in range(b_tile)],
            axis=1))
    s_mat = jnp.concatenate(row_blocks, axis=0).astype(jnp.bfloat16)   # (3*F*C, B*T)

    # Stage 2: grouped channel conv + BN2 for ALL branches, one block-diag matmul.
    z = jnp.dot(w2_ref[...], s_mat, preferred_element_type=jnp.float32)  # (48, B*T)
    z = z + t2_ref[...]
    z = jnp.where(z > 0, z, jnp.exp(jnp.minimum(z, 0.0)) - 1.0)           # ELU

    # AvgPool2d((1, 4)) as a block-diagonal pooling matmul; lane-dense output store.
    o_ref[0] = jnp.dot(z.astype(jnp.bfloat16), pool_ref[...],
                       preferred_element_type=jnp.float32)


def _fold_branch_params(bp, kb, pad_l, pad_r, t_dim):
    """Fold conv1 + zero-pad + BN1 and grouped conv2 + BN2 into matmul operands."""
    (w1, b1, g1, be1, rm1, rv1, w2, b2, g2, be2, rm2, rv2) = bp
    f_feat, k = w1.shape
    fd, c_dim = w2.shape
    d_depth = fd // f_feat
    assert k == kb and pad_l + pad_r == kb - 1, "kernel_size must be divisible by 8"
    eps = 0.0   # nn.BatchNorm2d(F, False) -> eps positional arg == 0 (faithful)

    s1 = g1 / jnp.sqrt(rv1 + eps)                 # (F,)
    t1 = be1 - rm1 * s1
    tv = t_dim - k + 1

    tin = jnp.arange(t_dim)[:, None]
    tout = jnp.arange(t_dim)[None, :]
    tap = tin - tout + pad_l
    col_valid = (tout >= pad_l) & (tout < pad_l + tv)        # (1, T)
    band = (tap >= 0) & (tap < k) & col_valid                # (T, T)
    m = jnp.where(band[None, :, :], w1[:, jnp.clip(tap, 0, k - 1)], 0.0)  # (F, T, T)
    m = m * s1[:, None, None]                                # fold BN1 scale
    m_all = jnp.transpose(m, (1, 0, 2)).reshape(t_dim, f_feat * t_dim)    # (T, F*T)

    col_valid_f = col_valid[0].astype(w1.dtype)              # (T,)
    srow = (s1 * b1)[:, None] * col_valid_f[None, :] + t1[:, None]        # (F, T)
    srow_all = srow.reshape(1, f_feat * t_dim)

    s2 = g2 / jnp.sqrt(rv2 + eps)                 # (F*D,)
    t2 = be2 - rm2 * s2
    w2s = w2 * s2[:, None]
    wblk = jnp.einsum('fdc,fg->fdgc',
                      w2s.reshape(f_feat, d_depth, c_dim),
                      jnp.eye(f_feat, dtype=w2.dtype)).reshape(fd, f_feat * c_dim)
    tcol = (t2 + s2 * b2).reshape(fd, 1)
    return m_all, srow_all, wblk, tcol


def _pick_batch_tile(n, cap=16):
    """Largest divisor of n (<= cap) that keeps the grid length >= 2 when possible."""
    if n <= 1:
        return 1
    best = 1
    for b in range(1, min(n, cap) + 1):
        if n % b == 0 and n // b >= 2:
            best = b
    return best


def inception_eegnet_block1(x, branch_params, kernel_size, batch_tile=None):
    """x: (N, 1, C, T) float32 -> (N, 3*F*D, 1, T // 4)."""
    n, _, c_dim, t_dim = x.shape
    assert t_dim >= kernel_size
    t_pool = t_dim // 4
    oc = 3 * F_FEAT * D_DEPTH
    fd = F_FEAT * D_DEPTH
    fc = F_FEAT * c_dim

    if batch_tile is None:
        batch_tile = _pick_batch_tile(n)
    assert n % batch_tile == 0
    grid_len = n // batch_tile

    branch_defs = [
        (kernel_size, kernel_size // 2 - 1, kernel_size // 2),
        (kernel_size // 2, kernel_size // 4 - 1, kernel_size // 4),
        (kernel_size // 4, kernel_size // 8 - 1, kernel_size // 8),
    ]
    m_list, s_list, w_list, t_list = [], [], [], []
    for bp, (kb, p_l, p_r) in zip(branch_params, branch_defs):
        m_b, s_b, w_b, t_b = _fold_branch_params(bp, kb, p_l, p_r, t_dim)
        m_list.append(m_b); s_list.append(s_b); w_list.append(w_b); t_list.append(t_b)

    # Merge the three branches: stage-1 operand along lanes, stage-2 block-diagonal.
    m_all = jnp.concatenate(m_list, axis=1).astype(jnp.bfloat16)       # (T, 3*F*T)
    s_all = jnp.concatenate(s_list, axis=1).astype(jnp.float32)        # (1, 3*F*T)
    w2_all = jnp.zeros((3 * fd, 3 * fc), jnp.float32)
    for j, wb in enumerate(w_list):
        w2_all = w2_all.at[j * fd:(j + 1) * fd, j * fc:(j + 1) * fc].set(wb)
    w2_all = w2_all.astype(jnp.bfloat16)                               # (48, 3*F*C)
    t2_all = jnp.concatenate(t_list, axis=0).astype(jnp.float32)       # (48, 1)

    # Block-diagonal (over the batch tile) average-pool matrix; 0.25 is exact in bf16.
    t_idx = jnp.arange(t_dim)
    pool_1 = ((t_idx[:, None] // 4) == jnp.arange(t_pool)[None, :]).astype(jnp.float32) * 0.25
    pool_mat = jnp.kron(jnp.eye(batch_tile, dtype=jnp.float32), pool_1).astype(jnp.bfloat16)

    # Flatten batch/channel so each grid step DMAs a lane-dense (B*C, T) bf16 tile.
    x2 = x.reshape(n * c_dim, t_dim).astype(jnp.bfloat16)

    consts = [m_all, s_all, w2_all, t2_all, pool_mat]
    in_specs = [pl.BlockSpec((batch_tile * c_dim, t_dim), lambda i: (i, 0))]
    for arr in consts:
        in_specs.append(pl.BlockSpec(arr.shape, lambda i: (0, 0)))
    out_spec = pl.BlockSpec((1, oc, batch_tile * t_pool), lambda i: (i, 0, 0))

    # Advisory cost estimate for the XLA scheduler.
    bc = batch_tile * c_dim
    flops = grid_len * 2 * (bc * t_dim * (3 * F_FEAT * t_dim)
                            + oc * (3 * fc) * (batch_tile * t_dim)
                            + oc * (batch_tile * t_dim) * (batch_tile * t_pool))
    transcendentals = grid_len * (bc * 3 * F_FEAT * t_dim + oc * batch_tile * t_dim)
    bytes_accessed = (int(x2.size) * 2
                      + sum(int(a.size) * a.dtype.itemsize for a in consts)
                      + grid_len * oc * batch_tile * t_pool * 4)

    out = pl.pallas_call(
        functools.partial(_block1_kernel, c_dim=c_dim, b_tile=batch_tile),
        out_shape=jax.ShapeDtypeStruct((grid_len, oc, batch_tile * t_pool), jnp.float32),
        grid_spec=pltpu.PrefetchScalarGridSpec(
            num_scalar_prefetch=0,
            grid=(grid_len,),
            in_specs=in_specs,
            out_specs=out_spec,
        ),
        compiler_params=pltpu.CompilerParams(
            dimension_semantics=("parallel",),   # batch tiles split across v7x TCs
        ),
        cost_estimate=pl.CostEstimate(
            flops=int(flops),
            transcendentals=int(transcendentals),
            bytes_accessed=int(bytes_accessed),
        ),
    )(x2, *consts)

    # (G, 48, B*t_pool) with lanes (b, tp)  ->  (N, 48, 1, t_pool)
    out = out.reshape(grid_len, oc, batch_tile, t_pool)
    out = jnp.transpose(out, (0, 2, 1, 3)).reshape(n, oc, 1, t_pool)
    return out


def _reference(x, branch_params, kernel_size):
    """Pure-JAX re-implementation of the torch forward (inference mode, fp32)."""
    n, _, c_dim, t_dim = x.shape
    branch_defs = [
        (kernel_size, kernel_size // 2 - 1, kernel_size // 2),
        (kernel_size // 2, kernel_size // 4 - 1, kernel_size // 4),
        (kernel_size // 4, kernel_size // 8 - 1, kernel_size // 8),
    ]
    xs = x[:, 0]
    outs = []
    for bp, (kb, p_l, p_r) in zip(branch_params, branch_defs):
        (w1, b1, g1, be1, rm1, rv1, w2, b2, g2, be2, rm2, rv2) = bp
        f_feat, k = w1.shape
        fd = w2.shape[0]
        d_depth = fd // f_feat
        tv = t_dim - k + 1
        frames = jnp.stack([xs[:, :, j:j + tv] for j in range(k)], axis=-1)
        y = jnp.einsum('nctk,fk->nfct', frames, w1) + b1[None, :, None, None]
        y = jnp.pad(y, ((0, 0), (0, 0), (0, 0), (p_l, p_r)))
        y = (y - rm1[None, :, None, None]) / jnp.sqrt(rv1[None, :, None, None]) \
            * g1[None, :, None, None] + be1[None, :, None, None]
        y = jnp.where(y > 0, y, jnp.exp(jnp.minimum(y, 0.0)) - 1.0)
        w2r = w2.reshape(f_feat, d_depth, c_dim)
        z = jnp.einsum('fdc,nfct->nfdt', w2r, y).reshape(n, fd, t_dim) + b2[None, :, None]
        z = (z - rm2[None, :, None]) / jnp.sqrt(rv2[None, :, None]) \
            * g2[None, :, None] + be2[None, :, None]
        z = jnp.where(z > 0, z, jnp.exp(jnp.minimum(z, 0.0)) - 1.0)
        outs.append(z)
    cat = jnp.concatenate(outs, axis=1)
    t_pool = t_dim // 4
    pooled = cat[:, :, :t_pool * 4].reshape(n, cat.shape[1], t_pool, 4).mean(axis=-1)
    return pooled.reshape(n, cat.shape[1], 1, t_pool)


if __name__ == "__main__":
    key = jax.random.PRNGKey(0)
    n, c_dim, t_dim = 8, 8, 128      # (batch, num_channel, time samples)
    kernel_size = 16                 # must be divisible by 8 (as in the module)

    def make_branch(bkey, kb):
        ks = jax.random.split(bkey, 12)
        f, d = F_FEAT, D_DEPTH
        return (
            0.2 * jax.random.normal(ks[0], (f, kb), jnp.float32),          # conv1 weight
            0.1 * jax.random.normal(ks[1], (f,), jnp.float32),             # conv1 bias
            1.0 + 0.1 * jax.random.normal(ks[2], (f,), jnp.float32),       # bn1 gamma
            0.1 * jax.random.normal(ks[3], (f,), jnp.float32),             # bn1 beta
            0.1 * jax.random.normal(ks[4], (f,), jnp.float32),             # bn1 running mean
            0.5 + jax.random.uniform(ks[5], (f,), jnp.float32),            # bn1 running var
            0.2 * jax.random.normal(ks[6], (f * d, c_dim), jnp.float32),   # conv2 (grouped) weight
            0.1 * jax.random.normal(ks[7], (f * d,), jnp.float32),         # conv2 bias
            1.0 + 0.1 * jax.random.normal(ks[8], (f * d,), jnp.float32),   # bn2 gamma
            0.1 * jax.random.normal(ks[9], (f * d,), jnp.float32),         # bn2 beta
            0.1 * jax.random.normal(ks[10], (f * d,), jnp.float32),        # bn2 running mean
            0.5 + jax.random.uniform(ks[11], (f * d,), jnp.float32),       # bn2 running var
        )

    kx, k1, k2, k3 = jax.random.split(key, 4)
    branch_params = [
        make_branch(k1, kernel_size),
        make_branch(k2, kernel_size // 2),
        make_branch(k3, kernel_size // 4),
    ]
    x = jax.random.normal(kx, (n, 1, c_dim, t_dim), jnp.float32)

    out = inception_eegnet_block1(x, branch_params, kernel_size)
    out = jax.block_until_ready(out)

    ref = _reference(x, branch_params, kernel_size)
    assert out.shape == (n, 3 * F_FEAT * D_DEPTH, 1, t_dim // 4), out.shape
    # Tolerance is intentional: MXU operands are bf16 (f32 accumulation) and the
    # kernel uses a folded contraction order different from the fp32 reference.
    assert jnp.allclose(out, ref, rtol=5e-2, atol=5e-2), \
        float(jnp.max(jnp.abs(out - ref)))
    print("KERNEL_OK")
</pallas_src>

<mosaic_0001>
module attributes {stable_mosaic.version = 11 : i64} {
  func.func @_block1_kernel(%arg0: i32, %arg1: memref<32x128xbf16, #tpu.memory_space<vmem>>, %arg2: memref<128x3072xbf16, #tpu.memory_space<vmem>>, %arg3: memref<1x3072xf32, #tpu.memory_space<vmem>>, %arg4: memref<48x192xbf16, #tpu.memory_space<vmem>>, %arg5: memref<48x1xf32, #tpu.memory_space<vmem>>, %arg6: memref<512x128xbf16, #tpu.memory_space<vmem>>, %arg7: memref<1x48x128xf32, #tpu.memory_space<vmem>>) attributes {dimension_semantics = [#tpu.dimension_semantics<parallel>], iteration_bounds = array<i64: 2>, scalar_prefetch = 0 : i64, scratch_operands = 0 : i64, tpu.core_type = #tpu.core_type<tc>, window_params = [{transform_indices = @transform_0, window_bounds = array<i64: 32, 128>}, {pipeline_mode = #tpu.pipeline_mode<synchronous>, transform_indices = @transform_1, window_bounds = array<i64: 128, 3072>}, {pipeline_mode = #tpu.pipeline_mode<synchronous>, transform_indices = @transform_2, window_bounds = array<i64: 1, 3072>}, {pipeline_mode = #tpu.pipeline_mode<synchronous>, transform_indices = @transform_3, window_bounds = array<i64: 48, 192>}, {pipeline_mode = #tpu.pipeline_mode<synchronous>, transform_indices = @transform_4, window_bounds = array<i64: 48, 1>}, {pipeline_mode = #tpu.pipeline_mode<synchronous>, transform_indices = @transform_5, window_bounds = array<i64: 512, 128>}, {transform_indices = @transform_6, window_bounds = array<i64: 1, 48, 128>}]} {
    %c0 = arith.constant 0 : index
    %c0_0 = arith.constant 0 : index
    %0 = vector.load %arg1[%c0, %c0_0] : memref<32x128xbf16, #tpu.memory_space<vmem>>, vector<32x128xbf16>
    %c0_1 = arith.constant 0 : index
    %c0_2 = arith.constant 0 : index
    %1 = vector.load %arg2[%c0_1, %c0_2] : memref<128x3072xbf16, #tpu.memory_space<vmem>>, vector<128x3072xbf16>
    %cst = arith.constant dense<0.000000e+00> : vector<32x3072xf32>
    %2 = tpu.matmul %0, %1, %cst {dimension_numbers = #tpu.dot_dimension_numbers<[1], [0], [0], [1], [0, 0, 1, 1], [], []>} : vector<32x128xbf16>, vector<128x3072xbf16>, vector<32x3072xf32> -> vector<32x3072xf32>
    %c0_3 = arith.constant 0 : index
    %c0_4 = arith.constant 0 : index
    %3 = vector.load %arg3[%c0_3, %c0_4] : memref<1x3072xf32, #tpu.memory_space<vmem>>, vector<1x3072xf32>
    %4 = vector.broadcast %3 : vector<1x3072xf32> to vector<32x3072xf32>
    %5 = arith.addf %2, %4 : vector<32x3072xf32>
    %cst_5 = arith.constant 0.000000e+00 : f32
    %6 = vector.broadcast %cst_5 : f32 to vector<32x3072xf32>
    %7 = arith.cmpf ogt, %5, %6 : vector<32x3072xf32>
    %cst_6 = arith.constant 0.000000e+00 : f32
    %8 = vector.broadcast %cst_6 : f32 to vector<32x3072xf32>
    %9 = arith.minimumf %5, %8 : vector<32x3072xf32>
    %10 = math.exp %9 : vector<32x3072xf32>
    %cst_7 = arith.constant 1.000000e+00 : f32
    %11 = vector.broadcast %cst_7 : f32 to vector<32x3072xf32>
    %12 = arith.subf %10, %11 : vector<32x3072xf32>
    %13 = arith.select %7, %5, %12 : vector<32x3072xi1>, vector<32x3072xf32>
    %14 = vector.extract_strided_slice %13 {offsets = [0, 0], sizes = [8, 128], strides = [1, 1]} : vector<32x3072xf32> to vector<8x128xf32>
    %15 = vector.extract_strided_slice %13 {offsets = [8, 0], sizes = [8, 128], strides = [1, 1]} : vector<32x3072xf32> to vector<8x128xf32>
    %16 = vector.extract_strided_slice %13 {offsets = [16, 0], sizes = [8, 128], strides = [1, 1]} : vector<32x3072xf32> to vector<8x128xf32>
    %17 = vector.extract_strided_slice %13 {offsets = [24, 0], sizes = [8, 128], strides = [1, 1]} : vector<32x3072xf32> to vector<8x128xf32>
    %18 = tpu.concatenate %14, %15, %16, %17 in 1 : vector<8x128xf32>, vector<8x128xf32>, vector<8x128xf32>, vector<8x128xf32> -> vector<8x512xf32>
    %19 = vector.extract_strided_slice %13 {offsets = [0, 128], sizes = [8, 128], strides = [1, 1]} : vector<32x3072xf32> to vector<8x128xf32>
    %20 = vector.extract_strided_slice %13 {offsets = [8, 128], sizes = [8, 128], strides = [1, 1]} : vector<32x3072xf32> to vector<8x128xf32>
    %21 = vector.extract_strided_slice %13 {offsets = [16, 128], sizes = [8, 128], strides = [1, 1]} : vector<32x3072xf32> to vector<8x128xf32>
    %22 = vector.extract_strided_slice %13 {offsets = [24, 128], sizes = [8, 128], strides = [1, 1]} : vector<32x3072xf32> to vector<8x128xf32>
    %23 = tpu.concatenate %19, %20, %21, %22 in 1 : vector<8x128xf32>, vector<8x128xf32>, vector<8x128xf32>, vector<8x128xf32> -> vector<8x512xf32>
    %24 = vector.extract_strided_slice %13 {offsets = [0, 256], sizes = [8, 128], strides = [1, 1]} : vector<32x3072xf32> to vector<8x128xf32>
    %25 = vector.extract_strided_slice %13 {offsets = [8, 256], sizes = [8, 128], strides = [1, 1]} : vector<32x3072xf32> to vector<8x128xf32>
    %26 = vector.extract_strided_slice %13 {offsets = [16, 256], sizes = [8, 128], strides = [1, 1]} : vector<32x3072xf32> to vector<8x128xf32>
    %27 = vector.extract_strided_slice %13 {offsets = [24, 256], sizes = [8, 128], strides = [1, 1]} : vector<32x3072xf32> to vector<8x128xf32>
    %28 = tpu.concatenate %24, %25, %26, %27 in 1 : vector<8x128xf32>, vector<8x128xf32>, vector<8x128xf32>, vector<8x128xf32> -> vector<8x512xf32>
    %29 = vector.extract_strided_slice %13 {offsets = [0, 384], sizes = [8, 128], strides = [1, 1]} : vector<32x3072xf32> to vector<8x128xf32>
    %30 = vector.extract_strided_slice %13 {offsets = [8, 384], sizes = [8, 128], strides = [1, 1]} : vector<32x3072xf32> to vector<8x128xf32>
    %31 = vector.extract_strided_slice %13 {offsets = [16, 384], sizes = [8, 128], strides = [1, 1]} : vector<32x3072xf32> to vector<8x128xf32>
    %32 = vector.extract_strided_slice %13 {offsets = [24, 384], sizes = [8, 128], strides = [1, 1]} : vector<32x3072xf32> to vector<8x128xf32>
    %33 = tpu.concatenate %29, %30, %31, %32 in 1 : vector<8x128xf32>, vector<8x128xf32>, vector<8x128xf32>, vector<8x128xf32> -> vector<8x512xf32>
    %34 = vector.extract_strided_slice %13 {offsets = [0, 512], sizes = [8, 128], strides = [1, 1]} : vector<32x3072xf32> to vector<8x128xf32>
    %35 = vector.extract_strided_slice %13 {offsets = [8, 512], sizes = [8, 128], strides = [1, 1]} : vector<32x3072xf32> to vector<8x128xf32>
    %36 = vector.extract_strided_slice %13 {offsets = [16, 512], sizes = [8, 128], strides = [1, 1]} : vector<32x3072xf32> to vector<8x128xf32>
    %37 = vector.extract_strided_slice %13 {offsets = [24, 512], sizes = [8, 128], strides = [1, 1]} : vector<32x3072xf32> to vector<8x128xf32>
    %38 = tpu.concatenate %34, %35, %36, %37 in 1 : vector<8x128xf32>, vector<8x128xf32>, vector<8x128xf32>, vector<8x128xf32> -> vector<8x512xf32>
    %39 = vector.extract_strided_slice %13 {offsets = [0, 640], sizes = [8, 128], strides = [1, 1]} : vector<32x3072xf32> to vector<8x128xf32>
    %40 = vector.extract_strided_slice %13 {offsets = [8, 640], sizes = [8, 128], strides = [1, 1]} : vector<32x3072xf32> to vector<8x128xf32>
    %41 = vector.extract_strided_slice %13 {offsets = [16, 640], sizes = [8, 128], strides = [1, 1]} : vector<32x3072xf32> to vector<8x128xf32>
    %42 = vector.extract_strided_slice %13 {offsets = [24, 640], sizes = [8, 128], strides = [1, 1]} : vector<32x3072xf32> to vector<8x128xf32>
    %43 = tpu.concatenate %39, %40, %41, %42 in 1 : vector<8x128xf32>, vector<8x128xf32>, vector<8x128xf32>, vector<8x128xf32> -> vector<8x512xf32>
    %44 = vector.extract_strided_slice %13 {offsets = [0, 768], sizes = [8, 128], strides = [1, 1]} : vector<32x3072xf32> to vector<8x128xf32>
    %45 = vector.extract_strided_slice %13 {offsets = [8, 768], sizes = [8, 128], strides = [1, 1]} : vector<32x3072xf32> to vector<8x128xf32>
    %46 = vector.extract_strided_slice %13 {offsets = [16, 768], sizes = [8, 128], strides = [1, 1]} : vector<32x3072xf32> to vector<8x128xf32>
    %47 = vector.extract_strided_slice %13 {offsets = [24, 768], sizes = [8, 128], strides = [1, 1]} : vector<32x3072xf32> to vector<8x128xf32>
    %48 = tpu.concatenate %44, %45, %46, %47 in 1 : vector<8x128xf32>, vector<8x128xf32>, vector<8x128xf32>, vector<8x128xf32> -> vector<8x512xf32>
    %49 = vector.extract_strided_slice %13 {offsets = [0, 896], sizes = [8, 128], strides = [1, 1]} : vector<32x3072xf32> to vector<8x128xf32>
    %50 = vector.extract_strided_slice %13 {offsets = [8, 896], sizes = [8, 128], strides = [1, 1]} : vector<32x3072xf32> to vector<8x128xf32>
    %51 = vector.extract_strided_slice %13 {offsets = [16, 896], sizes = [8, 128], strides = [1, 1]} : vector<32x3072xf32> to vector<8x128xf32>
    %52 = vector.extract_strided_slice %13 {offsets = [24, 896], sizes = [8, 128], strides = [1, 1]} : vector<32x3072xf32> to vector<8x128xf32>
    %53 = tpu.concatenate %49, %50, %51, %52 in 1 : vector<8x128xf32>, vector<8x128xf32>, vector<8x128xf32>, vector<8x128xf32> -> vector<8x512xf32>
    %54 = vector.extract_strided_slice %13 {offsets = [0, 1024], sizes = [8, 128], strides = [1, 1]} : vector<32x3072xf32> to vector<8x128xf32>
    %55 = vector.extract_strided_slice %13 {offsets = [8, 1024], sizes = [8, 128], strides = [1, 1]} : vector<32x3072xf32> to vector<8x128xf32>
    %56 = vector.extract_strided_slice %13 {offsets = [16, 1024], sizes = [8, 128], strides = [1, 1]} : vector<32x3072xf32> to vector<8x128xf32>
    %57 = vector.extract_strided_slice %13 {offsets = [24, 1024], sizes = [8, 128], strides = [1, 1]} : vector<32x3072xf32> to vector<8x128xf32>
    %58 = tpu.concatenate %54, %55, %56, %57 in 1 : vector<8x128xf32>, vector<8x128xf32>, vector<8x128xf32>, vector<8x128xf32> -> vector<8x512xf32>
    %59 = vector.extract_strided_slice %13 {offsets = [0, 1152], sizes = [8, 128], strides = [1, 1]} : vector<32x3072xf32> to vector<8x128xf32>
    %60 = vector.extract_strided_slice %13 {offsets = [8, 1152], sizes = [8, 128], strides = [1, 1]} : vector<32x3072xf32> to vector<8x128xf32>
    %61 = vector.extract_strided_slice %13 {offsets = [16, 1152], sizes = [8, 128], strides = [1, 1]} : vector<32x3072xf32> to vector<8x128xf32>
    %62 = vector.extract_strided_slice %13 {offsets = [24, 1152], sizes = [8, 128], strides = [1, 1]} : vector<32x3072xf32> to vector<8x128xf32>
    %63 = tpu.concatenate %59, %60, %61, %62 in 1 : vector<8x128xf32>, vector<8x128xf32>, vector<8x128xf32>, vector<8x128xf32> -> vector<8x512xf32>
    %64 = vector.extract_strided_slice %13 {offsets = [0, 1280], sizes = [8, 128], strides = [1, 1]} : vector<32x3072xf32> to vector<8x128xf32>
    %65 = vector.extract_strided_slice %13 {offsets = [8, 1280], sizes = [8, 128], strides = [1, 1]} : vector<32x3072xf32> to vector<8x128xf32>
    %66 = vector.extract_strided_slice %13 {offsets = [16, 1280], sizes = [8, 128], strides = [1, 1]} : vector<32x3072xf32> to vector<8x128xf32>
    %67 = vector.extract_strided_slice %13 {offsets = [24, 1280], sizes = [8, 128], strides = [1, 1]} : vector<32x3072xf32> to vector<8x128xf32>
    %68 = tpu.concatenate %64, %65, %66, %67 in 1 : vector<8x128xf32>, vector<8x128xf32>, vector<8x128xf32>, vector<8x128xf32> -> vector<8x512xf32>
    %69 = vector.extract_strided_slice %13 {offsets = [0, 1408], sizes = [8, 128], strides = [1, 1]} : vector<32x3072xf32> to vector<8x128xf32>
    %70 = vector.extract_strided_slice %13 {offsets = [8, 1408], sizes = [8, 128], strides = [1, 1]} : vector<32x3072xf32> to vector<8x128xf32>
    %71 = vector.extract_strided_slice %13 {offsets = [16, 1408], sizes = [8, 128], strides = [1, 1]} : vector<32x3072xf32> to vector<8x128xf32>
    %72 = vector.extract_strided_slice %13 {offsets = [24, 1408], sizes = [8, 128], strides = [1, 1]} : vector<32x3072xf32> to vector<8x128xf32>
    %73 = tpu.concatenate %69, %70, %71, %72 in 1 : vector<8x128xf32>, vector<8x128xf32>, vector<8x128xf32>, vector<8x128xf32> -> vector<8x512xf32>
    %74 = vector.extract_strided_slice %13 {offsets = [0, 1536], sizes = [8, 128], strides = [1, 1]} : vector<32x3072xf32> to vector<8x128xf32>
    %75 = vector.extract_strided_slice %13 {offsets = [8, 1536], sizes = [8, 128], strides = [1, 1]} : vector<32x3072xf32> to vector<8x128xf32>
    %76 = vector.extract_strided_slice %13 {offsets = [16, 1536], sizes = [8, 128], strides = [1, 1]} : vector<32x3072xf32> to vector<8x128xf32>
    %77 = vector.extract_strided_slice %13 {offsets = [24, 1536], sizes = [8, 128], strides = [1, 1]} : vector<32x3072xf32> to vector<8x128xf32>
    %78 = tpu.concatenate %74, %75, %76, %77 in 1 : vector<8x128xf32>, vector<8x128xf32>, vector<8x128xf32>, vector<8x128xf32> -> vector<8x512xf32>
    %79 = vector.extract_strided_slice %13 {offsets = [0, 1664], sizes = [8, 128], strides = [1, 1]} : vector<32x3072xf32> to vector<8x128xf32>
    %80 = vector.extract_strided_slice %13 {offsets = [8, 1664], sizes = [8, 128], strides = [1, 1]} : vector<32x3072xf32> to vector<8x128xf32>
    %81 = vector.extract_strided_slice %13 {offsets = [16, 1664], sizes = [8, 128], strides = [1, 1]} : vector<32x3072xf32> to vector<8x128xf32>
    %82 = vector.extract_strided_slice %13 {offsets = [24, 1664], sizes = [8, 128], strides = [1, 1]} : vector<32x3072xf32> to vector<8x128xf32>
    %83 = tpu.concatenate %79, %80, %81, %82 in 1 : vector<8x128xf32>, vector<8x128xf32>, vector<8x128xf32>, vector<8x128xf32> -> vector<8x512xf32>
    %84 = vector.extract_strided_slice %13 {offsets = [0, 1792], sizes = [8, 128], strides = [1, 1]} : vector<32x3072xf32> to vector<8x128xf32>
    %85 = vector.extract_strided_slice %13 {offsets = [8, 1792], sizes = [8, 128], strides = [1, 1]} : vector<32x3072xf32> to vector<8x128xf32>
    %86 = vector.extract_strided_slice %13 {offsets = [16, 1792], sizes = [8, 128], strides = [1, 1]} : vector<32x3072xf32> to vector<8x128xf32>
    %87 = vector.extract_strided_slice %13 {offsets = [24, 1792], sizes = [8, 128], strides = [1, 1]} : vector<32x3072xf32> to vector<8x128xf32>
    %88 = tpu.concatenate %84, %85, %86, %87 in 1 : vector<8x128xf32>, vector<8x128xf32>, vector<8x128xf32>, vector<8x128xf32> -> vector<8x512xf32>
    %89 = vector.extract_strided_slice %13 {offsets = [0, 1920], sizes = [8, 128], strides = [1, 1]} : vector<32x3072xf32> to vector<8x128xf32>
    %90 = vector.extract_strided_slice %13 {offsets = [8, 1920], sizes = [8, 128], strides = [1, 1]} : vector<32x3072xf32> to vector<8x128xf32>
    %91 = vector.extract_strided_slice %13 {offsets = [16, 1920], sizes = [8, 128], strides = [1, 1]} : vector<32x3072xf32> to vector<8x128xf32>
    %92 = vector.extract_strided_slice %13 {offsets = [24, 1920], sizes = [8, 128], strides = [1, 1]} : vector<32x3072xf32> to vector<8x128xf32>
    %93 = tpu.concatenate %89, %90, %91, %92 in 1 : vector<8x128xf32>, vector<8x128xf32>, vector<8x128xf32>, vector<8x128xf32> -> vector<8x512xf32>
    %94 = vector.extract_strided_slice %13 {offsets = [0, 2048], sizes = [8, 128], strides = [1, 1]} : vector<32x3072xf32> to vector<8x128xf32>
    %95 = vector.extract_strided_slice %13 {offsets = [8, 2048], sizes = [8, 128], strides = [1, 1]} : vector<32x3072xf32> to vector<8x128xf32>
    %96 = vector.extract_strided_slice %13 {offsets = [16, 2048], sizes = [8, 128], strides = [1, 1]} : vector<32x3072xf32> to vector<8x128xf32>
    %97 = vector.extract_strided_slice %13 {offsets = [24, 2048], sizes = [8, 128], strides = [1, 1]} : vector<32x3072xf32> to vector<8x128xf32>
    %98 = tpu.concatenate %94, %95, %96, %97 in 1 : vector<8x128xf32>, vector<8x128xf32>, vector<8x128xf32>, vector<8x128xf32> -> vector<8x512xf32>
    %99 = vector.extract_strided_slice %13 {offsets = [0, 2176], sizes = [8, 128], strides = [1, 1]} : vector<32x3072xf32> to vector<8x128xf32>
    %100 = vector.extract_strided_slice %13 {offsets = [8, 2176], sizes = [8, 128], strides = [1, 1]} : vector<32x3072xf32> to vector<8x128xf32>
    %101 = vector.extract_strided_slice %13 {offsets = [16, 2176], sizes = [8, 128], strides = [1, 1]} : vector<32x3072xf32> to vector<8x128xf32>
    %102 = vector.extract_strided_slice %13 {offsets = [24, 2176], sizes = [8, 128], strides = [1, 1]} : vector<32x3072xf32> to vector<8x128xf32>
    %103 = tpu.concatenate %99, %100, %101, %102 in 1 : vector<8x128xf32>, vector<8x128xf32>, vector<8x128xf32>, vector<8x128xf32> -> vector<8x512xf32>
    %104 = vector.extract_strided_slice %13 {offsets = [0, 2304], sizes = [8, 128], strides = [1, 1]} : vector<32x3072xf32> to vector<8x128xf32>
    %105 = vector.extract_strided_slice %13 {offsets = [8, 2304], sizes = [8, 128], strides = [1, 1]} : vector<32x3072xf32> to vector<8x128xf32>
    %106 = vector.extract_strided_slice %13 {offsets = [16, 2304], sizes = [8, 128], strides = [1, 1]} : vector<32x3072xf32> to vector<8x128xf32>
    %107 = vector.extract_strided_slice %13 {offsets = [24, 2304], sizes = [8, 128], strides = [1, 1]} : vector<32x3072xf32> to vector<8x128xf32>
    %108 = tpu.concatenate %104, %105, %106, %107 in 1 : vector<8x128xf32>, vector<8x128xf32>, vector<8x128xf32>, vector<8x128xf32> -> vector<8x512xf32>
    %109 = vector.extract_strided_slice %13 {offsets = [0, 2432], sizes = [8, 128], strides = [1, 1]} : vector<32x3072xf32> to vector<8x128xf32>
    %110 = vector.extract_strided_slice %13 {offsets = [8, 2432], sizes = [8, 128], strides = [1, 1]} : vector<32x3072xf32> to vector<8x128xf32>
    %111 = vector.extract_strided_slice %13 {offsets = [16, 2432], sizes = [8, 128], strides = [1, 1]} : vector<32x3072xf32> to vector<8x128xf32>
    %112 = vector.extract_strided_slice %13 {offsets = [24, 2432], sizes = [8, 128], strides = [1, 1]} : vector<32x3072xf32> to vector<8x128xf32>
    %113 = tpu.concatenate %109, %110, %111, %112 in 1 : vector<8x128xf32>, vector<8x128xf32>, vector<8x128xf32>, vector<8x128xf32> -> vector<8x512xf32>
    %114 = vector.extract_strided_slice %13 {offsets = [0, 2560], sizes = [8, 128], strides = [1, 1]} : vector<32x3072xf32> to vector<8x128xf32>
    %115 = vector.extract_strided_slice %13 {offsets = [8, 2560], sizes = [8, 128], strides = [1, 1]} : vector<32x3072xf32> to vector<8x128xf32>
    %116 = vector.extract_strided_slice %13 {offsets = [16, 2560], sizes = [8, 128], strides = [1, 1]} : vector<32x3072xf32> to vector<8x128xf32>
    %117 = vector.extract_strided_slice %13 {offsets = [24, 2560], sizes = [8, 128], strides = [1, 1]} : vector<32x3072xf32> to vector<8x128xf32>
    %118 = tpu.concatenate %114, %115, %116, %117 in 1 : vector<8x128xf32>, vector<8x128xf32>, vector<8x128xf32>, vector<8x128xf32> -> vector<8x512xf32>
    %119 = vector.extract_strided_slice %13 {offsets = [0, 2688], sizes = [8, 128], strides = [1, 1]} : vector<32x3072xf32> to vector<8x128xf32>
    %120 = vector.extract_strided_slice %13 {offsets = [8, 2688], sizes = [8, 128], strides = [1, 1]} : vector<32x3072xf32> to vector<8x128xf32>
    %121 = vector.extract_strided_slice %13 {offsets = [16, 2688], sizes = [8, 128], strides = [1, 1]} : vector<32x3072xf32> to vector<8x128xf32>
    %122 = vector.extract_strided_slice %13 {offsets = [24, 2688], sizes = [8, 128], strides = [1, 1]} : vector<32x3072xf32> to vector<8x128xf32>
    %123 = tpu.concatenate %119, %120, %121, %122 in 1 : vector<8x128xf32>, vector<8x128xf32>, vector<8x128xf32>, vector<8x128xf32> -> vector<8x512xf32>
    %124 = vector.extract_strided_slice %13 {offsets = [0, 2816], sizes = [8, 128], strides = [1, 1]} : vector<32x3072xf32> to vector<8x128xf32>
    %125 = vector.extract_strided_slice %13 {offsets = [8, 2816], sizes = [8, 128], strides = [1, 1]} : vector<32x3072xf32> to vector<8x128xf32>
    %126 = vector.extract_strided_slice %13 {offsets = [16, 2816], sizes = [8, 128], strides = [1, 1]} : vector<32x3072xf32> to vector<8x128xf32>
    %127 = vector.extract_strided_slice %13 {offsets = [24, 2816], sizes = [8, 128], strides = [1, 1]} : vector<32x3072xf32> to vector<8x128xf32>
    %128 = tpu.concatenate %124, %125, %126, %127 in 1 : vector<8x128xf32>, vector<8x128xf32>, vector<8x128xf32>, vector<8x128xf32> -> vector<8x512xf32>
    %129 = vector.extract_strided_slice %13 {offsets = [0, 2944], sizes = [8, 128], strides = [1, 1]} : vector<32x3072xf32> to vector<8x128xf32>
    %130 = vector.extract_strided_slice %13 {offsets = [8, 2944], sizes = [8, 128], strides = [1, 1]} : vector<32x3072xf32> to vector<8x128xf32>
    %131 = vector.extract_strided_slice %13 {offsets = [16, 2944], sizes = [8, 128], strides = [1, 1]} : vector<32x3072xf32> to vector<8x128xf32>
    %132 = vector.extract_strided_slice %13 {offsets = [24, 2944], sizes = [8, 128], strides = [1, 1]} : vector<32x3072xf32> to vector<8x128xf32>
    %133 = tpu.concatenate %129, %130, %131, %132 in 1 : vector<8x128xf32>, vector<8x128xf32>, vector<8x128xf32>, vector<8x128xf32> -> vector<8x512xf32>
    %134 = tpu.concatenate %18, %23, %28, %33, %38, %43, %48, %53, %58, %63, %68, %73, %78, %83, %88, %93 in 0 : vector<8x512xf32>, vector<8x512xf32>, vector<8x512xf32>, vector<8x512xf32>, vector<8x512xf32>, vector<8x512xf32>, vector<8x512xf32>, vector<8x512xf32>, vector<8x512xf32>, vector<8x512xf32>, vector<8x512xf32>, vector<8x512xf32>, vector<8x512xf32>, vector<8x512xf32>, vector<8x512xf32>, vector<8x512xf32> -> vector<128x512xf32>
    %135 = tpu.concatenate %98, %103, %108, %113, %118, %123, %128, %133 in 0 : vector<8x512xf32>, vector<8x512xf32>, vector<8x512xf32>, vector<8x512xf32>, vector<8x512xf32>, vector<8x512xf32>, vector<8x512xf32>, vector<8x512xf32> -> vector<64x512xf32>
    %136 = tpu.concatenate %134, %135 in 0 : vector<128x512xf32>, vector<64x512xf32> -> vector<192x512xf32>
    %137 = arith.truncf %136 : vector<192x512xf32> to vector<192x512xbf16>
    %c0_8 = arith.constant 0 : index
    %c0_9 = arith.constant 0 : index
    %138 = vector.load %arg4[%c0_8, %c0_9] : memref<48x192xbf16, #tpu.memory_space<vmem>>, vector<48x192xbf16>
    %cst_10 = arith.constant dense<0.000000e+00> : vector<48x512xf32>
    %139 = tpu.matmul %138, %137, %cst_10 {dimension_numbers = #tpu.dot_dimension_numbers<[1], [0], [0], [1], [0, 0, 1, 1], [], []>} : vector<48x192xbf16>, vector<192x512xbf16>, vector<48x512xf32> -> vector<48x512xf32>
    %c0_11 = arith.constant 0 : index
    %c0_12 = arith.constant 0 : index
    %140 = vector.load %arg5[%c0_11, %c0_12] : memref<48x1xf32, #tpu.memory_space<vmem>>, vector<48x1xf32>
    %141 = vector.broadcast %140 : vector<48x1xf32> to vector<48x512xf32>
    %142 = arith.addf %139, %141 : vector<48x512xf32>
    %cst_13 = arith.constant 0.000000e+00 : f32
    %143 = vector.broadcast %cst_13 : f32 to vector<48x512xf32>
    %144 = arith.cmpf ogt, %142, %143 : vector<48x512xf32>
    %cst_14 = arith.constant 0.000000e+00 : f32
    %145 = vector.broadcast %cst_14 : f32 to vector<48x512xf32>
    %146 = arith.minimumf %142, %145 : vector<48x512xf32>
    %147 = math.exp %146 : vector<48x512xf32>
    %cst_15 = arith.constant 1.000000e+00 : f32
    %148 = vector.broadcast %cst_15 : f32 to vector<48x512xf32>
    %149 = arith.subf %147, %148 : vector<48x512xf32>
    %150 = arith.select %144, %142, %149 : vector<48x512xi1>, vector<48x512xf32>
    %151 = arith.truncf %150 : vector<48x512xf32> to vector<48x512xbf16>
    %c0_16 = arith.constant 0 : index
    %c0_17 = arith.constant 0 : index
    %152 = vector.load %arg6[%c0_16, %c0_17] : memref<512x128xbf16, #tpu.memory_space<vmem>>, vector<512x128xbf16>
    %cst_18 = arith.constant dense<0.000000e+00> : vector<48x128xf32>
    %153 = tpu.matmul %151, %152, %cst_18 {dimension_numbers = #tpu.dot_dimension_numbers<[1], [0], [0], [1], [0, 0, 1, 1], [], []>} : vector<48x512xbf16>, vector<512x128xbf16>, vector<48x128xf32> -> vector<48x128xf32>
    %c0_19 = arith.constant 0 : index
    %c0_20 = arith.constant 0 : index
    %c0_21 = arith.constant 0 : index
    %154 = vector.load %arg7[%c0_19, %c0_20, %c0_21] : memref<1x48x128xf32, #tpu.memory_space<vmem>>, vector<1x48x128xf32>
    %155 = vector.shape_cast %154 : vector<1x48x128xf32> to vector<48x128xf32>
    %156 = vector.shape_cast %153 : vector<48x128xf32> to vector<1x48x128xf32>
    tpu.vector_store %arg7[%c0_19, %c0_20, %c0_21], %156 {strides = array<i32>} : memref<1x48x128xf32, #tpu.memory_space<vmem>>, vector<1x48x128xf32>,
    return
  }
  func.func @transform_0(%arg0: i32) -> (i32, i32) {
    %c0_i32 = arith.constant 0 : i32
    %c0_i32_0 = arith.constant 0 : i32
    return %arg0, %c0_i32 : i32, i32
  }
  func.func @transform_1(%arg0: i32) -> (i32, i32) {
    %c0_i32 = arith.constant 0 : i32
    %c0_i32_0 = arith.constant 0 : i32
    %c0_i32_1 = arith.constant 0 : i32
    return %c0_i32, %c0_i32_0 : i32, i32
  }
  func.func @transform_2(%arg0: i32) -> (i32, i32) {
    %c0_i32 = arith.constant 0 : i32
    %c0_i32_0 = arith.constant 0 : i32
    %c0_i32_1 = arith.constant 0 : i32
    return %c0_i32, %c0_i32_0 : i32, i32
  }
  func.func @transform_3(%arg0: i32) -> (i32, i32) {
    %c0_i32 = arith.constant 0 : i32
    %c0_i32_0 = arith.constant 0 : i32
    %c0_i32_1 = arith.constant 0 : i32
    return %c0_i32, %c0_i32_0 : i32, i32
  }
  func.func @transform_4(%arg0: i32) -> (i32, i32) {
    %c0_i32 = arith.constant 0 : i32
    %c0_i32_0 = arith.constant 0 : i32
    %c0_i32_1 = arith.constant 0 : i32
    return %c0_i32, %c0_i32_0 : i32, i32
  }
  func.func @transform_5(%arg0: i32) -> (i32, i32) {
    %c0_i32 = arith.constant 0 : i32
    %c0_i32_0 = arith.constant 0 : i32
    %c0_i32_1 = arith.constant 0 : i32
    return %c0_i32, %c0_i32_0 : i32, i32
  }
  func.func @transform_6(%arg0: i32) -> (i32, i32, i32) {
    %c0_i32 = arith.constant 0 : i32
    %c0_i32_0 = arith.constant 0 : i32
    %c0_i32_1 = arith.constant 0 : i32
    return %arg0, %c0_i32, %c0_i32_0 : i32, i32, i32
  }
}

</mosaic_0001>

<llo_original>
// kernel: tpu_custom_call.1
$region0: #{tpu_custom_call.1}
  #allocation0 [shape = 'u32[]', space=smem, size = 0x4, offset = 0x4, fixed_abs, tag = 'smem constant byte address 0x4 - core index']
  #allocation1 [shape = 'u32[144,128]{1,0:T(1,128)}', space=vmem, size = 0x12000, scoped, tag = 'internal scratch']
  %s0 = inlined_call_operand.hbm [shape: bf16[64,128], index: 0, kind: input, shape index: {}]
  %s1 = inlined_call_operand.hbm [shape: bf16[128,3072], index: 1, kind: input, shape index: {}]
  %s2 = inlined_call_operand.hbm [shape: f32[1,3072], index: 2, kind: input, shape index: {}]
  %s3 = inlined_call_operand.vmem [shape: bf16[48,192], index: 3, kind: input, shape index: {}]
  %s4 = inlined_call_operand.vmem [shape: f32[48,1], index: 4, kind: input, shape index: {}]
  %s5 = inlined_call_operand.hbm [shape: bf16[512,128], index: 5, kind: input, shape index: {}]
  %s6 = inlined_call_operand.hbm [shape: f32[2,48,128], index: 6, kind: output, shape index: {}]
  %s7 = sld [smem:[#allocation0]]
  $region73: #{tpu_custom_call.1} parent=0
    _
  %s9 = ssub.s32 1, %s7
  %s10 = scalar_select 0, %s9, %s7
  $region1: #{tpu_custom_call.1} parent=0
    #allocation2 [shape = 'u8[16384]{0}', space=vmem, size = 0x4000, scoped, tag = 'input window, operand 0']
    #allocation3 [shape = 's32[2]{0}', space=sflag, size = 0x8, scoped, tag = 'scoped memory for tpu_custom_call.1']
    #allocation4 [shape = 's32[2]{0}', space=sflag, size = 0x8, scoped, tag = 'scoped memory for tpu_custom_call.1']
    #allocation5 [shape = 'u8[786432]{0}', space=vmem, size = 0xc0000, scoped, tag = 'input window, operand 1, single buffered']
    #allocation6 [shape = 's32[1]{0}', space=sflag, size = 0x4, scoped, tag = 'scoped memory for tpu_custom_call.1']
    #allocation7 [shape = 'u8[12288]{0}', space=vmem, size = 0x3000, scoped, tag = 'input window, operand 2, single buffered']
    #allocation8 [shape = 'u8[131072]{0}', space=vmem, size = 0x20000, scoped, tag = 'input window, operand 5, single buffered']
    #allocation9 [shape = 's32[1]{0}', space=sflag, size = 0x4, scoped, tag = 'scoped memory for tpu_custom_call.1']
    #allocation10 [shape = 'u8[49152]{0}', space=vmem, size = 0xc000, scoped, tag = 'output window, operand 0']
    %11 = vsyncpa [#allocation3], 0
    %s12 = scalar_lea.sflag [#allocation3], 1
    %13 = vsyncpa %s12, 0
    %14 = vsyncpa [#allocation6], 0
    %15 = vsyncpa [#allocation9], 0
    %16 = vsyncpa [#allocation4], 0
    %s17 = scalar_lea.sflag [#allocation4], 1
    %18 = vsyncpa %s17, 0
    loop: start=0, step=1, limit=4
    $region2: #{tpu_custom_call.1} parent=1 // loop_pre_header
      _
    $region3: #{tpu_custom_call.1} parent=1 // loop_header
      %s20 = sphi 0, %s24
      %p21 = scmp.ge.s32.totalorder %s20, 4
      %s30 = sphi 0, %s32
      %s33 = sphi 0, %s30
      %s34 = sphi 0, %s33
      %s50 = sphi 0, %s34
      %s54 = sphi 0, %s54
      %s56 = sphi 0, %s54
      %s57 = sphi 0, %s56
      %s71 = sphi 0, %s57
      %s75 = sphi 0, %s75
      %s77 = sphi 0, %s75
      %s78 = sphi 0, %s77
      %s92 = sphi 0, %s78
      %s96 = sphi 0, %s96
      %s98 = sphi 0, %s96
      %s99 = sphi 0, %s98
      %s113 = sphi 0, %s99
      %s117 = sphi 0, %s117
      %s119 = sphi 0, %s117
      %s120 = sphi 0, %s119
      %s134 = sphi 0, %s120
      %s138 = sphi 0, %s138
      %s140 = sphi 0, %s138
      %s141 = sphi 0, %s140
      %s155 = sphi 0, %s141
      %s161 = sphi 0, %s163
      %s164 = sphi 0, %s161
      %s165 = sphi 0, %s164
      %s181 = sphi 0, %s165
    $region4: #{tpu_custom_call.1} parent=1 // loop_header_branch
      %23 = sbr.rel (%p21) target = $region8
    $region5: #{tpu_custom_call.1} parent=1 // loop_body
      %s25 = ssub.s32 %s20, 1
      %s26 = ssub.s32 %s20, 2
      %s27 = sadd.s32 %s20, 1
      %s28 = ssub.s32 %s20, %s27
      %p29 = scmp.eq.s32.totalorder %s28, 0
      %s31 = sadd.s32 %s30, 1
      %s32 = scalar_select %p29, %s30, %s31
      %p35 = pneg %p29
      %p36 = scmp.eq.s32.totalorder %s20, 1
      %p37 = por %p35, %p36
      %p38 = scmp.ne.s32.totalorder %s30, %s33
      %p39 = scmp.eq.s32.totalorder %s20, 0
      %p40 = por %p38, %p39
      %p41 = scmp.ne.s32.totalorder %s30, %s33
      %p42 = scmp.eq.s32.totalorder %s25, 1
      %p43 = por %p41, %p42
      %p44 = scmp.ne.s32.totalorder %s33, %s34
      %p45 = scmp.eq.s32.totalorder %s25, 0
      %p46 = por %p44, %p45
      %p47 = scmp.ne.s32.totalorder %s33, %s34
      %p48 = scmp.eq.s32.totalorder %s26, 1
      %p49 = por %p47, %p48
      %p51 = scmp.ne.s32.totalorder %s34, %s50
      %p52 = scmp.eq.s32.totalorder %s26, 0
      %p53 = por %p51, %p52
      %s55 = sadd.s32 %s54, 1
      %p58 = scmp.eq.s32.totalorder %s20, 1
      %p59 = scmp.ne.s32.totalorder %s54, %s56
      %p60 = scmp.eq.s32.totalorder %s20, 0
      %p61 = por %p59, %p60
      %p62 = scmp.ne.s32.totalorder %s54, %s56
      %p63 = scmp.eq.s32.totalorder %s25, 1
      %p64 = por %p62, %p63
      %p65 = scmp.ne.s32.totalorder %s56, %s57
      %p66 = scmp.eq.s32.totalorder %s25, 0
      %p67 = por %p65, %p66
      %p68 = scmp.ne.s32.totalorder %s56, %s57
      %p69 = scmp.eq.s32.totalorder %s26, 1
      %p70 = por %p68, %p69
      %p72 = scmp.ne.s32.totalorder %s57, %s71
      %p73 = scmp.eq.s32.totalorder %s26, 0
      %p74 = por %p72, %p73
      %s76 = sadd.s32 %s75, 1
      %p79 = scmp.eq.s32.totalorder %s20, 1
      %p80 = scmp.ne.s32.totalorder %s75, %s77
      %p81 = scmp.eq.s32.totalorder %s20, 0
      %p82 = por %p80, %p81
      %p83 = scmp.ne.s32.totalorder %s75, %s77
      %p84 = scmp.eq.s32.totalorder %s25, 1
      %p85 = por %p83, %p84
      %p86 = scmp.ne.s32.totalorder %s77, %s78
      %p87 = scmp.eq.s32.totalorder %s25, 0
      %p88 = por %p86, %p87
      %p89 = scmp.ne.s32.totalorder %s77, %s78
      %p90 = scmp.eq.s32.totalorder %s26, 1
      %p91 = por %p89, %p90
      %p93 = scmp.ne.s32.totalorder %s78, %s92
      %p94 = scmp.eq.s32.totalorder %s26, 0
      %p95 = por %p93, %p94
      %s97 = sadd.s32 %s96, 1
      %p100 = scmp.eq.s32.totalorder %s20, 1
      %p101 = scmp.ne.s32.totalorder %s96, %s98
      %p102 = scmp.eq.s32.totalorder %s20, 0
      %p103 = por %p101, %p102
      %p104 = scmp.ne.s32.totalorder %s96, %s98
      %p105 = scmp.eq.s32.totalorder %s25, 1
      %p106 = por %p104, %p105
      %p107 = scmp.ne.s32.totalorder %s98, %s99
      %p108 = scmp.eq.s32.totalorder %s25, 0
      %p109 = por %p107, %p108
      %p110 = scmp.ne.s32.totalorder %s98, %s99
      %p111 = scmp.eq.s32.totalorder %s26, 1
      %p112 = por %p110, %p111
      %p114 = scmp.ne.s32.totalorder %s99, %s113
      %p115 = scmp.eq.s32.totalorder %s26, 0
      %p116 = por %p114, %p115
      %s118 = sadd.s32 %s117, 1
      %p121 = scmp.eq.s32.totalorder %s20, 1
      %p122 = scmp.ne.s32.totalorder %s117, %s119
      %p123 = scmp.eq.s32.totalorder %s20, 0
      %p124 = por %p122, %p123
      %p125 = scmp.ne.s32.totalorder %s117, %s119
      %p126 = scmp.eq.s32.totalorder %s25, 1
      %p127 = por %p125, %p126
      %p128 = scmp.ne.s32.totalorder %s119, %s120
      %p129 = scmp.eq.s32.totalorder %s25, 0
      %p130 = por %p128, %p129
      %p131 = scmp.ne.s32.totalorder %s119, %s120
      %p132 = scmp.eq.s32.totalorder %s26, 1
      %p133 = por %p131, %p132
      %p135 = scmp.ne.s32.totalorder %s120, %s134
      %p136 = scmp.eq.s32.totalorder %s26, 0
      %p137 = por %p135, %p136
      %s139 = sadd.s32 %s138, 1
      %p142 = scmp.eq.s32.totalorder %s20, 1
      %p143 = scmp.ne.s32.totalorder %s138, %s140
      %p144 = scmp.eq.s32.totalorder %s20, 0
      %p145 = por %p143, %p144
      %p146 = scmp.ne.s32.totalorder %s138, %s140
      %p147 = scmp.eq.s32.totalorder %s25, 1
      %p148 = por %p146, %p147
      %p149 = scmp.ne.s32.totalorder %s140, %s141
      %p150 = scmp.eq.s32.totalorder %s25, 0
      %p151 = por %p149, %p150
      %p152 = scmp.ne.s32.totalorder %s140, %s141
      %p153 = scmp.eq.s32.totalorder %s26, 1
      %p154 = por %p152, %p153
      %p156 = scmp.ne.s32.totalorder %s141, %s155
      %p157 = scmp.eq.s32.totalorder %s26, 0
      %p158 = por %p156, %p157
      %s159 = ssub.s32 %s20, %s27
      %p160 = scmp.eq.s32.totalorder %s159, 0
      %s162 = sadd.s32 %s161, 1
      %s163 = scalar_select %p160, %s161, %s162
      %p166 = pneg %p160
      %p167 = scmp.eq.s32.totalorder %s20, 1
      %p168 = por %p166, %p167
      %p169 = scmp.ne.s32.totalorder %s161, %s164
      %p170 = scmp.eq.s32.totalorder %s20, 0
      %p171 = por %p169, %p170
      %p172 = scmp.ne.s32.totalorder %s161, %s164
      %p173 = scmp.eq.s32.totalorder %s25, 1
      %p174 = por %p172, %p173
      %p175 = scmp.ne.s32.totalorder %s164, %s165
      %p176 = scmp.eq.s32.totalorder %s25, 0
      %p177 = por %p175, %p176
      %p178 = scmp.ne.s32.totalorder %s164, %s165
      %p179 = scmp.eq.s32.totalorder %s26, 1
      %p180 = por %p178, %p179
      %p182 = scmp.ne.s32.totalorder %s165, %s181
      %p183 = scmp.eq.s32.totalorder %s26, 0
      %p184 = por %p182, %p183
      %p185 = scmp.le.s32.totalorder 1, %s20
      %p186 = scmp.lt.s32.totalorder %s20, 3
      %p187 = pnand %p185, %p186
      %p188 = pneg %p187
      // Predicated region
      $region9: #{tpu_custom_call.1} parent=5 // pred_check
        _
      $region10: #{tpu_custom_call.1} parent=5 // pred_check_branch
        %190 = sbr.rel (%p187) target = $region12
      $region11: #{tpu_custom_call.1} parent=5 // pred_region
        %s191 = ssub.s32 %s20, 1
        // Predicated region
        $region13: #{tpu_custom_call.1} parent=11 // pred_check
          %p192 = pneg %p67
        $region14: #{tpu_custom_call.1} parent=11 // pred_check_branch
          %194 = sbr.rel (%p192) target = $region16
        $region15: #{tpu_custom_call.1} parent=11 // pred_region
          %s196 = ssub.s32 24576, 24576
          %197 = vsyncadd [#allocation6], %s196
          %s198 = sshll.u32 [#allocation5], 4
          %s199 = int_to_ptr.vmem [resolvable:$true] %s198
          %204 = dma.hbm_to_vmem [thread:$0]  %s1, 24576, %s199, [#allocation6], 1536, 1536, 96
        $region16: #{tpu_custom_call.1} parent=11 // pred_fallthru
          _
        // Predicated region
        $region17: #{tpu_custom_call.1} parent=11 // pred_check
          %p205 = pneg %p88
        $region18: #{tpu_custom_call.1} parent=11 // pred_check_branch
          %207 = sbr.rel (%p205) target = $region20
        $region19: #{tpu_custom_call.1} parent=11 // pred_region
          %s209 = ssub.s32 384, 384
          %210 = vsyncadd [#allocation6], %s209
          %s212 = sshll.u32 [#allocation7], 4
          %s213 = int_to_ptr.vmem [resolvable:$true] %s212
          %215 = dma.hbm_to_vmem [thread:$0]  %s2, 384, %s213, [#allocation6]
        $region20: #{tpu_custom_call.1} parent=11 // pred_fallthru
          _
        // Predicated region
        $region21: #{tpu_custom_call.1} parent=11 // pred_check
          %p216 = pneg %p109
        $region22: #{tpu_custom_call.1} parent=11 // pred_check_branch
          %218 = sbr.rel (%p216) target = $region24
        $region23: #{tpu_custom_call.1} parent=11 // pred_region
          _
        $region24: #{tpu_custom_call.1} parent=11 // pred_fallthru
          _
        // Predicated region
        $region25: #{tpu_custom_call.1} parent=11 // pred_check
          %p219 = pneg %p130
        $region26: #{tpu_custom_call.1} parent=11 // pred_check_branch
          %221 = sbr.rel (%p219) target = $region28
        $region27: #{tpu_custom_call.1} parent=11 // pred_region
          _
        $region28: #{tpu_custom_call.1} parent=11 // pred_fallthru
          _
        // Predicated region
        $region29: #{tpu_custom_call.1} parent=11 // pred_check
          %p222 = pneg %p151
        $region30: #{tpu_custom_call.1} parent=11 // pred_check_branch
          %224 = sbr.rel (%p222) target = $region32
        $region31: #{tpu_custom_call.1} parent=11 // pred_region
          %s226 = ssub.s32 4096, 4096
          %227 = vsyncadd [#allocation9], %s226
          %s228 = sshll.u32 [#allocation8], 4
          %s229 = int_to_ptr.vmem [resolvable:$true] %s228
          %234 = dma.hbm_to_vmem [thread:$0]  %s5, 4096, %s229, [#allocation9], 64, 64, 4
        $region32: #{tpu_custom_call.1} parent=11 // pred_fallthru
          _
      $region12: #{tpu_custom_call.1} parent=5 // pred_fallthru
        _
      %p235 = scmp.lt.s32.totalorder %s20, 2
      // Predicated region
      $region33: #{tpu_custom_call.1} parent=5 // pred_check
        %p236 = pneg %p235
      $region34: #{tpu_custom_call.1} parent=5 // pred_check_branch
        %238 = sbr.rel (%p236) target = $region36
      $region35: #{tpu_custom_call.1} parent=5 // pred_region
        // Predicated region
        $region37: #{tpu_custom_call.1} parent=35 // pred_check
          %p239 = pneg %p40
        $region38: #{tpu_custom_call.1} parent=35 // pred_check_branch
          %241 = sbr.rel (%p239) target = $region40
        $region39: #{tpu_custom_call.1} parent=35 // pred_region
          %s242 = sand.u32 %s30, 1
          %s243 = scalar_lea.sflag [#allocation3], %s242
          %s244 = sand.u32 %s30, 1
          %s245 = smul.addr %s244, 16
          %s246 = scalar_lea.vmem [#allocation2], %s245
          %s247 = smul.u32 4, %s20
          %s249 = ssub.s32 256, 256
          %250 = vsyncadd %s243, %s249
          %s251 = smul.addr %s247, 64
          %s252 = scalar_lea.hbm %s0, %s251
          %s253 = sshll.u32 %s246, 4
          %s254 = int_to_ptr.vmem [resolvable:$true] %s253
          %259 = dma.hbm_to_vmem [thread:$0]  %s252, 256, %s254, %s243, 64, 64, 4
        $region40: #{tpu_custom_call.1} parent=35 // pred_fallthru
          _
      $region36: #{tpu_custom_call.1} parent=5 // pred_fallthru
        _
      %p260 = scmp.le.s32.totalorder 1, %s20
      %p261 = scmp.lt.s32.totalorder %s20, 3
      %p262 = pnand %p260, %p261
      %p263 = pneg %p262
      // Predicated region
      $region41: #{tpu_custom_call.1} parent=5 // pred_check
        _
      $region42: #{tpu_custom_call.1} parent=5 // pred_check_branch
        %265 = sbr.rel (%p262) target = $region44
      $region43: #{tpu_custom_call.1} parent=5 // pred_region
        %s266 = ssub.s32 %s20, 1
        %s267 = sand.u32 %s33, 1
        %s268 = scalar_lea.sflag [#allocation3], %s267
        %s269 = sand.u32 %s33, 1
        %s270 = smul.addr %s269, 16
        %s271 = scalar_lea.vmem [#allocation2], %s270
        // Predicated region
        $region45: #{tpu_custom_call.1} parent=43 // pred_check
          %p272 = pneg %p46
        $region46: #{tpu_custom_call.1} parent=43 // pred_check_branch
          %274 = sbr.rel (%p272) target = $region48
        $region47: #{tpu_custom_call.1} parent=43 // pred_region
          %275 = dma.done %s268, 256
        $region48: #{tpu_custom_call.1} parent=43 // pred_fallthru
          _
        // Predicated region
        $region49: #{tpu_custom_call.1} parent=43 // pred_check
          %p276 = pneg %p67
        $region50: #{tpu_custom_call.1} parent=43 // pred_check_branch
          %278 = sbr.rel (%p276) target = $region52
        $region51: #{tpu_custom_call.1} parent=43 // pred_region
          %279 = dma.done [#allocation6], 24576
        $region52: #{tpu_custom_call.1} parent=43 // pred_fallthru
          _
        // Predicated region
        $region53: #{tpu_custom_call.1} parent=43 // pred_check
          %p280 = pneg %p88
        $region54: #{tpu_custom_call.1} parent=43 // pred_check_branch
          %282 = sbr.rel (%p280) target = $region56
        $region55: #{tpu_custom_call.1} parent=43 // pred_region
          %283 = dma.done [#allocation6], 384
        $region56: #{tpu_custom_call.1} parent=43 // pred_fallthru
          _
        // Predicated region
        $region57: #{tpu_custom_call.1} parent=43 // pred_check
          %p284 = pneg %p151
        $region58: #{tpu_custom_call.1} parent=43 // pred_check_branch
          %286 = sbr.rel (%p284) target = $region60
        $region59: #{tpu_custom_call.1} parent=43 // pred_region
          %287 = dma.done [#allocation9], 4096
        $region60: #{tpu_custom_call.1} parent=43 // pred_fallthru
          _
        %s288 = sand.u32 %s33, 1
        %s289 = scalar_lea.sflag [#allocation3], %s288
        %s290 = sand.u32 %s33, 1
        %s291 = smul.addr %s290, 16
        %s292 = scalar_lea.vmem [#allocation2], %s291
        %p293 = pneg %p46
        %p294 = pneg %p43
        %p295 = pneg %p67
        %p296 = pneg %p64
        %p297 = pneg %p88
        %p298 = pneg %p85
        %p299 = pneg %p109
        %p300 = pneg %p106
        %p301 = pneg %p130
        %p302 = pneg %p127
        %p303 = pneg %p151
        %p304 = pneg %p148
        %p305 = pneg %p177
        %p306 = pneg %p174
        %s307 = sand.u32 %s164, 1
        %s308 = scalar_lea.sflag [#allocation4], %s307
        %s309 = sand.u32 %s164, 1
        %s310 = smul.addr %s309, 48
        %s311 = scalar_lea.vmem [#allocation10], %s310
        %s312 = smul.u32 4, %s25
        %v314 = vld [vmem:[%s271] sm:$0xf]
        %v315 = vld [vmem:[%s271 + $0x4] sm:$0xf]
        %v316 = vld [vmem:[%s271 + $0x8] sm:$0xf]
        %v317 = vld [vmem:[%s271 + $0xc] sm:$0xf]
        %v318 = vld [vmem:[#allocation5] sm:$0xff]
        %v319 = vld [vmem:[#allocation5 + $0x8] sm:$0xff]
        %v320 = vld [vmem:[#allocation5 + $0x10] sm:$0xff]
        %v321 = vld [vmem:[#allocation5 + $0x18] sm:$0xff]
        %v322 = vld [vmem:[#allocation5 + $0x20] sm:$0xff]
        %v323 = vld [vmem:[#allocation5 + $0x28] sm:$0xff]
        %v324 = vld [vmem:[#allocation5 + $0x30] sm:$0xff]
        %v325 = vld [vmem:[#allocation5 + $0x38] sm:$0xff]
        %v326 = vld [vmem:[#allocation5 + $0x40] sm:$0xff]
        %v327 = vld [vmem:[#allocation5 + $0x48] sm:$0xff]
        %v328 = vld [vmem:[#allocation5 + $0x50] sm:$0xff]
        %v329 = vld [vmem:[#allocation5 + $0x58] sm:$0xff]
        %v330 = vld [vmem:[#allocation5 + $0x60] sm:$0xff]
        %v331 = vld [vmem:[#allocation5 + $0x68] sm:$0xff]
        %v332 = vld [vmem:[#allocation5 + $0x70] sm:$0xff]
        %v333 = vld [vmem:[#allocation5 + $0x78] sm:$0xff]
        %v334 = vld [vmem:[#allocation5 + $0x80] sm:$0xff]
        %v335 = vld [vmem:[#allocation5 + $0x88] sm:$0xff]
        %v336 = vld [vmem:[#allocation5 + $0x90] sm:$0xff]
        %v337 = vld [vmem:[#allocation5 + $0x98] sm:$0xff]
        %v338 = vld [vmem:[#allocation5 + $0xa0] sm:$0xff]
        %v339 = vld [vmem:[#allocation5 + $0xa8] sm:$0xff]
        %v340 = vld [vmem:[#allocation5 + $0xb0] sm:$0xff]
        %v341 = vld [vmem:[#allocation5 + $0xb8] sm:$0xff]
        %v342 = vld [vmem:[#allocation5 + $0xc0] sm:$0xff]
        %v343 = vld [vmem:[#allocation5 + $0xc8] sm:$0xff]
        %v344 = vld [vmem:[#allocation5 + $0xd0] sm:$0xff]
        %v345 = vld [vmem:[#allocation5 + $0xd8] sm:$0xff]
        %v346 = vld [vmem:[#allocation5 + $0xe0] sm:$0xff]
        %v347 = vld [vmem:[#allocation5 + $0xe8] sm:$0xff]
        %v348 = vld [vmem:[#allocation5 + $0xf0] sm:$0xff]
        %v349 = vld [vmem:[#allocation5 + $0xf8] sm:$0xff]
        %v350 = vld [vmem:[#allocation5 + $0x100] sm:$0xff]
        %v351 = vld [vmem:[#allocation5 + $0x108] sm:$0xff]
        %v352 = vld [vmem:[#allocation5 + $0x110] sm:$0xff]
        %v353 = vld [vmem:[#allocation5 + $0x118] sm:$0xff]
        %v354 = vld [vmem:[#allocation5 + $0x120] sm:$0xff]
        %v355 = vld [vmem:[#allocation5 + $0x128] sm:$0xff]
        %v356 = vld [vmem:[#allocation5 + $0x130] sm:$0xff]
        %v357 = vld [vmem:[#allocation5 + $0x138] sm:$0xff]
        %v358 = vld [vmem:[#allocation5 + $0x140] sm:$0xff]
        %v359 = vld [vmem:[#allocation5 + $0x148] sm:$0xff]
        %v360 = vld [vmem:[#allocation5 + $0x150] sm:$0xff]
        %v361 = vld [vmem:[#allocation5 + $0x158] sm:$0xff]
        %v362 = vld [vmem:[#allocation5 + $0x160] sm:$0xff]
        %v363 = vld [vmem:[#allocation5 + $0x168] sm:$0xff]
        %v364 = vld [vmem:[#allocation5 + $0x170] sm:$0xff]
        %v365 = vld [vmem:[#allocation5 + $0x178] sm:$0xff]
        %v366 = vld [vmem:[#allocation5 + $0x180] sm:$0xff]
        %v367 = vld [vmem:[#allocation5 + $0x188] sm:$0xff]
        %v368 = vld [vmem:[#allocation5 + $0x190] sm:$0xff]
        %v369 = vld [vmem:[#allocation5 + $0x198] sm:$0xff]
        %v370 = vld [vmem:[#allocation5 + $0x1a0] sm:$0xff]
        %v371 = vld [vmem:[#allocation5 + $0x1a8] sm:$0xff]
        %v372 = vld [vmem:[#allocation5 + $0x1b0] sm:$0xff]
        %v373 = vld [vmem:[#allocation5 + $0x1b8] sm:$0xff]
        %v374 = vld [vmem:[#allocation5 + $0x1c0] sm:$0xff]
        %v375 = vld [vmem:[#allocation5 + $0x1c8] sm:$0xff]
        %v376 = vld [vmem:[#allocation5 + $0x1d0] sm:$0xff]
        %v377 = vld [vmem:[#allocation5 + $0x1d8] sm:$0xff]
        %v378 = vld [vmem:[#allocation5 + $0x1e0] sm:$0xff]
        %v379 = vld [vmem:[#allocation5 + $0x1e8] sm:$0xff]
        %v380 = vld [vmem:[#allocation5 + $0x1f0] sm:$0xff]
        %v381 = vld [vmem:[#allocation5 + $0x1f8] sm:$0xff]
        %v382 = vld [vmem:[#allocation5 + $0x200] sm:$0xff]
        %v383 = vld [vmem:[#allocation5 + $0x208] sm:$0xff]
        %v384 = vld [vmem:[#allocation5 + $0x210] sm:$0xff]
        %v385 = vld [vmem:[#allocation5 + $0x218] sm:$0xff]
        %v386 = vld [vmem:[#allocation5 + $0x220] sm:$0xff]
        %v387 = vld [vmem:[#allocation5 + $0x228] sm:$0xff]
        %v388 = vld [vmem:[#allocation5 + $0x230] sm:$0xff]
        %v389 = vld [vmem:[#allocation5 + $0x238] sm:$0xff]
        %v390 = vld [vmem:[#allocation5 + $0x240] sm:$0xff]
        %v391 = vld [vmem:[#allocation5 + $0x248] sm:$0xff]
        %v392 = vld [vmem:[#allocation5 + $0x250] sm:$0xff]
        %v393 = vld [vmem:[#allocation5 + $0x258] sm:$0xff]
        %v394 = vld [vmem:[#allocation5 + $0x260] sm:$0xff]
        %v395 = vld [vmem:[#allocation5 + $0x268] sm:$0xff]
        %v396 = vld [vmem:[#allocation5 + $0x270] sm:$0xff]
        %v397 = vld [vmem:[#allocation5 + $0x278] sm:$0xff]
        %v398 = vld [vmem:[#allocation5 + $0x280] sm:$0xff]
        %v399 = vld [vmem:[#allocation5 + $0x288] sm:$0xff]
        %v400 = vld [vmem:[#allocation5 + $0x290] sm:$0xff]
        %v401 = vld [vmem:[#allocation5 + $0x298] sm:$0xff]
        %v402 = vld [vmem:[#allocation5 + $0x2a0] sm:$0xff]
        %v403 = vld [vmem:[#allocation5 + $0x2a8] sm:$0xff]
        %v404 = vld [vmem:[#allocation5 + $0x2b0] sm:$0xff]
        %v405 = vld [vmem:[#allocation5 + $0x2b8] sm:$0xff]
        %v406 = vld [vmem:[#allocation5 + $0x2c0] sm:$0xff]
        %v407 = vld [vmem:[#allocation5 + $0x2c8] sm:$0xff]
        %v408 = vld [vmem:[#allocation5 + $0x2d0] sm:$0xff]
        %v409 = vld [vmem:[#allocation5 + $0x2d8] sm:$0xff]
        %v410 = vld [vmem:[#allocation5 + $0x2e0] sm:$0xff]
        %v411 = vld [vmem:[#allocation5 + $0x2e8] sm:$0xff]
        %v412 = vld [vmem:[#allocation5 + $0x2f0] sm:$0xff]
        %v413 = vld [vmem:[#allocation5 + $0x2f8] sm:$0xff]
        %v414 = vld [vmem:[#allocation5 + $0x300] sm:$0xff]
        %v415 = vld [vmem:[#allocation5 + $0x308] sm:$0xff]
        %v416 = vld [vmem:[#allocation5 + $0x310] sm:$0xff]
        %v417 = vld [vmem:[#allocation5 + $0x318] sm:$0xff]
        %v418 = vld [vmem:[#allocation5 + $0x320] sm:$0xff]
        %v419 = vld [vmem:[#allocation5 + $0x328] sm:$0xff]
        %v420 = vld [vmem:[#allocation5 + $0x330] sm:$0xff]
        %v421 = vld [vmem:[#allocation5 + $0x338] sm:$0xff]
        %v422 = vld [vmem:[#allocation5 + $0x340] sm:$0xff]
        %v423 = vld [vmem:[#allocation5 + $0x348] sm:$0xff]
        %v424 = vld [vmem:[#allocation5 + $0x350] sm:$0xff]
        %v425 = vld [vmem:[#allocation5 + $0x358] sm:$0xff]
        %v426 = vld [vmem:[#allocation5 + $0x360] sm:$0xff]
        %v427 = vld [vmem:[#allocation5 + $0x368] sm:$0xff]
        %v428 = vld [vmem:[#allocation5 + $0x370] sm:$0xff]
        %v429 = vld [vmem:[#allocation5 + $0x378] sm:$0xff]
        %v430 = vld [vmem:[#allocation5 + $0x380] sm:$0xff]
        %v431 = vld [vmem:[#allocation5 + $0x388] sm:$0xff]
        %v432 = vld [vmem:[#allocation5 + $0x390] sm:$0xff]
        %v433 = vld [vmem:[#allocation5 + $0x398] sm:$0xff]
        %v434 = vld [vmem:[#allocation5 + $0x3a0] sm:$0xff]
        %v435 = vld [vmem:[#allocation5 + $0x3a8] sm:$0xff]
        %v436 = vld [vmem:[#allocation5 + $0x3b0] sm:$0xff]
        %v437 = vld [vmem:[#allocation5 + $0x3b8] sm:$0xff]
        %v438 = vld [vmem:[#allocation5 + $0x3c0] sm:$0xff]
        %v439 = vld [vmem:[#allocation5 + $0x3c8] sm:$0xff]
        %v440 = vld [vmem:[#allocation5 + $0x3d0] sm:$0xff]
        %v441 = vld [vmem:[#allocation5 + $0x3d8] sm:$0xff]
        %v442 = vld [vmem:[#allocation5 + $0x3e0] sm:$0xff]
        %v443 = vld [vmem:[#allocation5 + $0x3e8] sm:$0xff]
        %v444 = vld [vmem:[#allocation5 + $0x3f0] sm:$0xff]
        %v445 = vld [vmem:[#allocation5 + $0x3f8] sm:$0xff]
        %v446 = vld [vmem:[#allocation5 + $0x400] sm:$0xff]
        %v447 = vld [vmem:[#allocation5 + $0x408] sm:$0xff]
        %v448 = vld [vmem:[#allocation5 + $0x410] sm:$0xff]
        %v449 = vld [vmem:[#allocation5 + $0x418] sm:$0xff]
        %v450 = vld [vmem:[#allocation5 + $0x420] sm:$0xff]
        %v451 = vld [vmem:[#allocation5 + $0x428] sm:$0xff]
        %v452 = vld [vmem:[#allocation5 + $0x430] sm:$0xff]
        %v453 = vld [vmem:[#allocation5 + $0x438] sm:$0xff]
        %v454 = vld [vmem:[#allocation5 + $0x440] sm:$0xff]
        %v455 = vld [vmem:[#allocation5 + $0x448] sm:$0xff]
        %v456 = vld [vmem:[#allocation5 + $0x450] sm:$0xff]
        %v457 = vld [vmem:[#allocation5 + $0x458] sm:$0xff]
        %v458 = vld [vmem:[#allocation5 + $0x460] sm:$0xff]
        %v459 = vld [vmem:[#allocation5 + $0x468] sm:$0xff]
        %v460 = vld [vmem:[#allocation5 + $0x470] sm:$0xff]
        %v461 = vld [vmem:[#allocation5 + $0x478] sm:$0xff]
        %v462 = vld [vmem:[#allocation5 + $0x480] sm:$0xff]
        %v463 = vld [vmem:[#allocation5 + $0x488] sm:$0xff]
        %v464 = vld [vmem:[#allocation5 + $0x490] sm:$0xff]
        %v465 = vld [vmem:[#allocation5 + $0x498] sm:$0xff]
        %v466 = vld [vmem:[#allocation5 + $0x4a0] sm:$0xff]
        %v467 = vld [vmem:[#allocation5 + $0x4a8] sm:$0xff]
        %v468 = vld [vmem:[#allocation5 + $0x4b0] sm:$0xff]
        %v469 = vld [vmem:[#allocation5 + $0x4b8] sm:$0xff]
        %v470 = vld [vmem:[#allocation5 + $0x4c0] sm:$0xff]
        %v471 = vld [vmem:[#allocation5 + $0x4c8] sm:$0xff]
        %v472 = vld [vmem:[#allocation5 + $0x4d0] sm:$0xff]
        %v473 = vld [vmem:[#allocation5 + $0x4d8] sm:$0xff]
        %v474 = vld [vmem:[#allocation5 + $0x4e0] sm:$0xff]
        %v475 = vld [vmem:[#allocation5 + $0x4e8] sm:$0xff]
        %v476 = vld [vmem:[#allocation5 + $0x4f0] sm:$0xff]
        %v477 = vld [vmem:[#allocation5 + $0x4f8] sm:$0xff]
        %v478 = vld [vmem:[#allocation5 + $0x500] sm:$0xff]
        %v479 = vld [vmem:[#allocation5 + $0x508] sm:$0xff]
        %v480 = vld [vmem:[#allocation5 + $0x510] sm:$0xff]
        %v481 = vld [vmem:[#allocation5 + $0x518] sm:$0xff]
        %v482 = vld [vmem:[#allocation5 + $0x520] sm:$0xff]
        %v483 = vld [vmem:[#allocation5 + $0x528] sm:$0xff]
        %v484 = vld [vmem:[#allocation5 + $0x530] sm:$0xff]
        %v485 = vld [vmem:[#allocation5 + $0x538] sm:$0xff]
        %v486 = vld [vmem:[#allocation5 + $0x540] sm:$0xff]
        %v487 = vld [vmem:[#allocation5 + $0x548] sm:$0xff]
        %v488 = vld [vmem:[#allocation5 + $0x550] sm:$0xff]
        %v489 = vld [vmem:[#allocation5 + $0x558] sm:$0xff]
        %v490 = vld [vmem:[#allocation5 + $0x560] sm:$0xff]
        %v491 = vld [vmem:[#allocation5 + $0x568] sm:$0xff]
        %v492 = vld [vmem:[#allocation5 + $0x570] sm:$0xff]
        %v493 = vld [vmem:[#allocation5 + $0x578] sm:$0xff]
        %v494 = vld [vmem:[#allocation5 + $0x580] sm:$0xff]
        %v495 = vld [vmem:[#allocation5 + $0x588] sm:$0xff]
        %v496 = vld [vmem:[#allocation5 + $0x590] sm:$0xff]
        %v497 = vld [vmem:[#allocation5 + $0x598] sm:$0xff]
        %v498 = vld [vmem:[#allocation5 + $0x5a0] sm:$0xff]
        %v499 = vld [vmem:[#allocation5 + $0x5a8] sm:$0xff]
        %v500 = vld [vmem:[#allocation5 + $0x5b0] sm:$0xff]
        %v501 = vld [vmem:[#allocation5 + $0x5b8] sm:$0xff]
        %v502 = vld [vmem:[#allocation5 + $0x5c0] sm:$0xff]
        %v503 = vld [vmem:[#allocation5 + $0x5c8] sm:$0xff]
        %v504 = vld [vmem:[#allocation5 + $0x5d0] sm:$0xff]
        %v505 = vld [vmem:[#allocation5 + $0x5d8] sm:$0xff]
        %v506 = vld [vmem:[#allocation5 + $0x5e0] sm:$0xff]
        %v507 = vld [vmem:[#allocation5 + $0x5e8] sm:$0xff]
        %v508 = vld [vmem:[#allocation5 + $0x5f0] sm:$0xff]
        %v509 = vld [vmem:[#allocation5 + $0x5f8] sm:$0xff]
        %v510 = vld [vmem:[#allocation7] sm:$0xff]
        %v511 = vld [vmem:[#allocation7 + $0x8] sm:$0xff]
        %v512 = vld [vmem:[#allocation7 + $0x10] sm:$0xff]
        %v516 = vlaneseq
        %v517 = vshrl.u32 %v516, 7
        %v518 = vsub.s32 0, %v517
        %v519 = vrot.slane %v510, %v518
        %v520 = vlaneseq
        %v521 = vshrl.u32 %v520, 7
        %v522 = vsub.s32 1, %v521
        %v523 = vrot.slane %v510, %v522
        %v524 = vlaneseq
        %v525 = vshrl.u32 %v524, 7
        %v526 = vsub.s32 2, %v525
        %v527 = vrot.slane %v510, %v526
        %v528 = vlaneseq
        %v529 = vshrl.u32 %v528, 7
        %v530 = vsub.s32 3, %v529
        %v531 = vrot.slane %v510, %v530
        %v532 = vlaneseq
        %v533 = vshrl.u32 %v532, 7
        %v534 = vsub.s32 4, %v533
        %v535 = vrot.slane %v510, %v534
        %v536 = vlaneseq
        %v537 = vshrl.u32 %v536, 7
        %v538 = vsub.s32 5, %v537
        %v539 = vrot.slane %v510, %v538
        %v540 = vlaneseq
        %v541 = vshrl.u32 %v540, 7
        %v542 = vsub.s32 6, %v541
        %v543 = vrot.slane %v510, %v542
        %v544 = vlaneseq
        %v545 = vshrl.u32 %v544, 7
        %v546 = vsub.s32 7, %v545
        %v547 = vrot.slane %v510, %v546
        %v548 = vlaneseq
        %v549 = vshrl.u32 %v548, 7
        %v550 = vsub.s32 0, %v549
        %v551 = vrot.slane %v511, %v550
        %v552 = vlaneseq
        %v553 = vshrl.u32 %v552, 7
        %v554 = vsub.s32 1, %v553
        %v555 = vrot.slane %v511, %v554
        %v556 = vlaneseq
        %v557 = vshrl.u32 %v556, 7
        %v558 = vsub.s32 2, %v557
        %v559 = vrot.slane %v511, %v558
        %v560 = vlaneseq
        %v561 = vshrl.u32 %v560, 7
        %v562 = vsub.s32 3, %v561
        %v563 = vrot.slane %v511, %v562
        %v564 = vlaneseq
        %v565 = vshrl.u32 %v564, 7
        %v566 = vsub.s32 4, %v565
        %v567 = vrot.slane %v511, %v566
        %v568 = vlaneseq
        %v569 = vshrl.u32 %v568, 7
        %v570 = vsub.s32 5, %v569
        %v571 = vrot.slane %v511, %v570
        %v572 = vlaneseq
        %v573 = vshrl.u32 %v572, 7
        %v574 = vsub.s32 6, %v573
        %v575 = vrot.slane %v511, %v574
        %v576 = vlaneseq
        %v577 = vshrl.u32 %v576, 7
        %v578 = vsub.s32 7, %v577
        %v579 = vrot.slane %v511, %v578
        %v580 = vlaneseq
        %v581 = vshrl.u32 %v580, 7
        %v582 = vsub.s32 0, %v581
        %v583 = vrot.slane %v512, %v582
        %v584 = vlaneseq
        %v585 = vshrl.u32 %v584, 7
        %v586 = vsub.s32 1, %v585
        %v587 = vrot.slane %v512, %v586
        %v588 = vlaneseq
        %v589 = vshrl.u32 %v588, 7
        %v590 = vsub.s32 2, %v589
        %v591 = vrot.slane %v512, %v590
        %v592 = vlaneseq
        %v593 = vshrl.u32 %v592, 7
        %v594 = vsub.s32 3, %v593
        %v595 = vrot.slane %v512, %v594
        %v596 = vlaneseq
        %v597 = vshrl.u32 %v596, 7
        %v598 = vsub.s32 4, %v597
        %v599 = vrot.slane %v512, %v598
        %v600 = vlaneseq
        %v601 = vshrl.u32 %v600, 7
        %v602 = vsub.s32 5, %v601
        %v603 = vrot.slane %v512, %v602
        %v604 = vlaneseq
        %v605 = vshrl.u32 %v604, 7
        %v606 = vsub.s32 6, %v605
        %v607 = vrot.slane %v512, %v606
        %v608 = vlaneseq
        %v609 = vshrl.u32 %v608, 7
        %v610 = vsub.s32 7, %v609
        %v611 = vrot.slane %v512, %v610
        %v640 = vunpack.c.l.b16 %v314
        %v641 = vunpack.c.l.b16 %v315
        %v642 = vunpack.c.l.b16 %v316
        %v643 = vunpack.c.l.b16 %v317
        %v644 = vpack.c.b16 %v641, %v640
        %v645 = vpack.c.b16 %v643, %v642
        %v840 = vunpack.c.l.b16 %v318
        %v841 = vunpack.c.h.b16 %v318
        %v842 = vunpack.c.l.b16 %v319
        %v843 = vunpack.c.h.b16 %v319
        %v844 = vunpack.c.l.b16 %v320
        %v845 = vunpack.c.h.b16 %v320
        %v846 = vunpack.c.l.b16 %v321
        %v847 = vunpack.c.h.b16 %v321
        %v848 = vunpack.c.l.b16 %v322
        %v849 = vunpack.c.h.b16 %v322
        %v850 = vunpack.c.l.b16 %v323
        %v851 = vunpack.c.h.b16 %v323
        %v852 = vunpack.c.l.b16 %v324
        %v853 = vunpack.c.h.b16 %v324
        %v854 = vunpack.c.l.b16 %v325
        %v855 = vunpack.c.h.b16 %v325
        %v856 = vunpack.c.l.b16 %v326
        %v857 = vunpack.c.h.b16 %v326
        %v858 = vunpack.c.l.b16 %v327
        %v859 = vunpack.c.h.b16 %v327
        %v860 = vunpack.c.l.b16 %v328
        %v861 = vunpack.c.h.b16 %v328
        %v862 = vunpack.c.l.b16 %v329
        %v863 = vunpack.c.h.b16 %v329
        %v864 = vunpack.c.l.b16 %v330
        %v865 = vunpack.c.h.b16 %v330
        %v866 = vunpack.c.l.b16 %v331
        %v867 = vunpack.c.h.b16 %v331
        %v868 = vunpack.c.l.b16 %v332
        %v869 = vunpack.c.h.b16 %v332
        %v870 = vunpack.c.l.b16 %v333
        %v871 = vunpack.c.h.b16 %v333
        %v872 = vunpack.c.l.b16 %v334
        %v873 = vunpack.c.h.b16 %v334
        %v874 = vunpack.c.l.b16 %v335
        %v875 = vunpack.c.h.b16 %v335
        %v876 = vunpack.c.l.b16 %v336
        %v877 = vunpack.c.h.b16 %v336
        %v878 = vunpack.c.l.b16 %v337
        %v879 = vunpack.c.h.b16 %v337
        %v880 = vunpack.c.l.b16 %v338
        %v881 = vunpack.c.h.b16 %v338
        %v882 = vunpack.c.l.b16 %v339
        %v883 = vunpack.c.h.b16 %v339
        %v884 = vunpack.c.l.b16 %v340
        %v885 = vunpack.c.h.b16 %v340
        %v886 = vunpack.c.l.b16 %v341
        %v887 = vunpack.c.h.b16 %v341
        %v888 = vunpack.c.l.b16 %v342
        %v889 = vunpack.c.h.b16 %v342
        %v890 = vunpack.c.l.b16 %v343
        %v891 = vunpack.c.h.b16 %v343
        %v892 = vunpack.c.l.b16 %v344
        %v893 = vunpack.c.h.b16 %v344
        %v894 = vunpack.c.l.b16 %v345
        %v895 = vunpack.c.h.b16 %v345
        %v896 = vunpack.c.l.b16 %v346
        %v897 = vunpack.c.h.b16 %v346
        %v898 = vunpack.c.l.b16 %v347
        %v899 = vunpack.c.h.b16 %v347
        %v900 = vunpack.c.l.b16 %v348
        %v901 = vunpack.c.h.b16 %v348
        %v902 = vunpack.c.l.b16 %v349
        %v903 = vunpack.c.h.b16 %v349
        %v904 = vunpack.c.l.b16 %v350
        %v905 = vunpack.c.h.b16 %v350
        %v906 = vunpack.c.l.b16 %v351
        %v907 = vunpack.c.h.b16 %v351
        %v908 = vunpack.c.l.b16 %v352
        %v909 = vunpack.c.h.b16 %v352
        %v910 = vunpack.c.l.b16 %v353
        %v911 = vunpack.c.h.b16 %v353
        %v912 = vunpack.c.l.b16 %v354
        %v913 = vunpack.c.h.b16 %v354
        %v914 = vunpack.c.l.b16 %v355
        %v915 = vunpack.c.h.b16 %v355
        %v916 = vunpack.c.l.b16 %v356
        %v917 = vunpack.c.h.b16 %v356
        %v918 = vunpack.c.l.b16 %v357
        %v919 = vunpack.c.h.b16 %v357
        %v920 = vunpack.c.l.b16 %v358
        %v921 = vunpack.c.h.b16 %v358
        %v922 = vunpack.c.l.b16 %v359
        %v923 = vunpack.c.h.b16 %v359
        %v924 = vunpack.c.l.b16 %v360
        %v925 = vunpack.c.h.b16 %v360
        %v926 = vunpack.c.l.b16 %v361
        %v927 = vunpack.c.h.b16 %v361
        %v928 = vunpack.c.l.b16 %v362
        %v929 = vunpack.c.h.b16 %v362
        %v930 = vunpack.c.l.b16 %v363
        %v931 = vunpack.c.h.b16 %v363
        %v932 = vunpack.c.l.b16 %v364
        %v933 = vunpack.c.h.b16 %v364
        %v934 = vunpack.c.l.b16 %v365
        %v935 = vunpack.c.h.b16 %v365
        %v936 = vunpack.c.l.b16 %v366
        %v937 = vunpack.c.h.b16 %v366
        %v938 = vunpack.c.l.b16 %v367
        %v939 = vunpack.c.h.b16 %v367
        %v940 = vunpack.c.l.b16 %v368
        %v941 = vunpack.c.h.b16 %v368
        %v942 = vunpack.c.l.b16 %v369
        %v943 = vunpack.c.h.b16 %v369
        %v944 = vunpack.c.l.b16 %v370
        %v945 = vunpack.c.h.b16 %v370
        %v946 = vunpack.c.l.b16 %v371
        %v947 = vunpack.c.h.b16 %v371
        %v948 = vunpack.c.l.b16 %v372
        %v949 = vunpack.c.h.b16 %v372
        %v950 = vunpack.c.l.b16 %v373
        %v951 = vunpack.c.h.b16 %v373
        %v952 = vunpack.c.l.b16 %v374
        %v953 = vunpack.c.h.b16 %v374
        %v954 = vunpack.c.l.b16 %v375
        %v955 = vunpack.c.h.b16 %v375
        %v956 = vunpack.c.l.b16 %v376
        %v957 = vunpack.c.h.b16 %v376
        %v958 = vunpack.c.l.b16 %v377
        %v959 = vunpack.c.h.b16 %v377
        %v960 = vunpack.c.l.b16 %v378
        %v961 = vunpack.c.h.b16 %v378
        %v962 = vunpack.c.l.b16 %v379
        %v963 = vunpack.c.h.b16 %v379
        %v964 = vunpack.c.l.b16 %v380
        %v965 = vunpack.c.h.b16 %v380
        %v966 = vunpack.c.l.b16 %v381
        %v967 = vunpack.c.h.b16 %v381
        %v968 = vunpack.c.l.b16 %v382
        %v969 = vunpack.c.h.b16 %v382
        %v970 = vunpack.c.l.b16 %v383
        %v971 = vunpack.c.h.b16 %v383
        %v972 = vunpack.c.l.b16 %v384
        %v973 = vunpack.c.h.b16 %v384
        %v974 = vunpack.c.l.b16 %v385
        %v975 = vunpack.c.h.b16 %v385
        %v976 = vunpack.c.l.b16 %v386
        %v977 = vunpack.c.h.b16 %v386
        %v978 = vunpack.c.l.b16 %v387
        %v979 = vunpack.c.h.b16 %v387
        %v980 = vunpack.c.l.b16 %v388
        %v981 = vunpack.c.h.b16 %v388
        %v982 = vunpack.c.l.b16 %v389
        %v983 = vunpack.c.h.b16 %v389
        %v984 = vunpack.c.l.b16 %v390
        %v985 = vunpack.c.h.b16 %v390
        %v986 = vunpack.c.l.b16 %v391
        %v987 = vunpack.c.h.b16 %v391
        %v988 = vunpack.c.l.b16 %v392
        %v989 = vunpack.c.h.b16 %v392
        %v990 = vunpack.c.l.b16 %v393
        %v991 = vunpack.c.h.b16 %v393
        %v992 = vunpack.c.l.b16 %v394
        %v993 = vunpack.c.h.b16 %v394
        %v994 = vunpack.c.l.b16 %v395
        %v995 = vunpack.c.h.b16 %v395
        %v996 = vunpack.c.l.b16 %v396
        %v997 = vunpack.c.h.b16 %v396
        %v998 = vunpack.c.l.b16 %v397
        %v999 = vunpack.c.h.b16 %v397
        %v1000 = vunpack.c.l.b16 %v398
        %v1001 = vunpack.c.h.b16 %v398
        %v1002 = vunpack.c.l.b16 %v399
        %v1003 = vunpack.c.h.b16 %v399
        %v1004 = vunpack.c.l.b16 %v400
        %v1005 = vunpack.c.h.b16 %v400
        %v1006 = vunpack.c.l.b16 %v401
        %v1007 = vunpack.c.h.b16 %v401
        %v1008 = vunpack.c.l.b16 %v402
        %v1009 = vunpack.c.h.b16 %v402
        %v1010 = vunpack.c.l.b16 %v403
        %v1011 = vunpack.c.h.b16 %v403
        %v1012 = vunpack.c.l.b16 %v404
        %v1013 = vunpack.c.h.b16 %v404
        %v1014 = vunpack.c.l.b16 %v405
        %v1015 = vunpack.c.h.b16 %v405
        %v1016 = vunpack.c.l.b16 %v406
        %v1017 = vunpack.c.h.b16 %v406
        %v1018 = vunpack.c.l.b16 %v407
        %v1019 = vunpack.c.h.b16 %v407
        %v1020 = vunpack.c.l.b16 %v408
        %v1021 = vunpack.c.h.b16 %v408
        %v1022 = vunpack.c.l.b16 %v409
        %v1023 = vunpack.c.h.b16 %v409
        %v1024 = vunpack.c.l.b16 %v410
        %v1025 = vunpack.c.h.b16 %v410
        %v1026 = vunpack.c.l.b16 %v411
        %v1027 = vunpack.c.h.b16 %v411
        %v1028 = vunpack.c.l.b16 %v412
        %v1029 = vunpack.c.h.b16 %v412
        %v1030 = vunpack.c.l.b16 %v413
        %v1031 = vunpack.c.h.b16 %v413
        %v1032 = vunpack.c.l.b16 %v414
        %v1033 = vunpack.c.h.b16 %v414
        %v1034 = vunpack.c.l.b16 %v415
        %v1035 = vunpack.c.h.b16 %v415
        %v1036 = vunpack.c.l.b16 %v416
        %v1037 = vunpack.c.h.b16 %v416
        %v1038 = vunpack.c.l.b16 %v417
        %v1039 = vunpack.c.h.b16 %v417
        %v1040 = vunpack.c.l.b16 %v418
        %v1041 = vunpack.c.h.b16 %v418
        %v1042 = vunpack.c.l.b16 %v419
        %v1043 = vunpack.c.h.b16 %v419
        %v1044 = vunpack.c.l.b16 %v420
        %v1045 = vunpack.c.h.b16 %v420
        %v1046 = vunpack.c.l.b16 %v421
        %v1047 = vunpack.c.h.b16 %v421
        %v1048 = vunpack.c.l.b16 %v422
        %v1049 = vunpack.c.h.b16 %v422
        %v1050 = vunpack.c.l.b16 %v423
        %v1051 = vunpack.c.h.b16 %v423
        %v1052 = vunpack.c.l.b16 %v424
        %v1053 = vunpack.c.h.b16 %v424
        %v1054 = vunpack.c.l.b16 %v425
        %v1055 = vunpack.c.h.b16 %v425
        %v1056 = vunpack.c.l.b16 %v426
        %v1057 = vunpack.c.h.b16 %v426
        %v1058 = vunpack.c.l.b16 %v427
        %v1059 = vunpack.c.h.b16 %v427
        %v1060 = vunpack.c.l.b16 %v428
        %v1061 = vunpack.c.h.b16 %v428
        %v1062 = vunpack.c.l.b16 %v429
        %v1063 = vunpack.c.h.b16 %v429
        %v1064 = vunpack.c.l.b16 %v430
        %v1065 = vunpack.c.h.b16 %v430
        %v1066 = vunpack.c.l.b16 %v431
        %v1067 = vunpack.c.h.b16 %v431
        %v1068 = vunpack.c.l.b16 %v432
        %v1069 = vunpack.c.h.b16 %v432
        %v1070 = vunpack.c.l.b16 %v433
        %v1071 = vunpack.c.h.b16 %v433
        %v1072 = vunpack.c.l.b16 %v434
        %v1073 = vunpack.c.h.b16 %v434
        %v1074 = vunpack.c.l.b16 %v435
        %v1075 = vunpack.c.h.b16 %v435
        %v1076 = vunpack.c.l.b16 %v436
        %v1077 = vunpack.c.h.b16 %v436
        %v1078 = vunpack.c.l.b16 %v437
        %v1079 = vunpack.c.h.b16 %v437
        %v1080 = vunpack.c.l.b16 %v438
        %v1081 = vunpack.c.h.b16 %v438
        %v1082 = vunpack.c.l.b16 %v439
        %v1083 = vunpack.c.h.b16 %v439
        %v1084 = vunpack.c.l.b16 %v440
        %v1085 = vunpack.c.h.b16 %v440
        %v1086 = vunpack.c.l.b16 %v441
        %v1087 = vunpack.c.h.b16 %v441
        %v1088 = vunpack.c.l.b16 %v442
        %v1089 = vunpack.c.h.b16 %v442
        %v1090 = vunpack.c.l.b16 %v443
        %v1091 = vunpack.c.h.b16 %v443
        %v1092 = vunpack.c.l.b16 %v444
        %v1093 = vunpack.c.h.b16 %v444
        %v1094 = vunpack.c.l.b16 %v445
        %v1095 = vunpack.c.h.b16 %v445
        %v1096 = vunpack.c.l.b16 %v446
        %v1097 = vunpack.c.h.b16 %v446
        %v1098 = vunpack.c.l.b16 %v447
        %v1099 = vunpack.c.h.b16 %v447
        %v1100 = vunpack.c.l.b16 %v448
        %v1101 = vunpack.c.h.b16 %v448
        %v1102 = vunpack.c.l.b16 %v449
        %v1103 = vunpack.c.h.b16 %v449
        %v1104 = vunpack.c.l.b16 %v450
        %v1105 = vunpack.c.h.b16 %v450
        %v1106 = vunpack.c.l.b16 %v451
        %v1107 = vunpack.c.h.b16 %v451
        %v1108 = vunpack.c.l.b16 %v452
        %v1109 = vunpack.c.h.b16 %v452
        %v1110 = vunpack.c.l.b16 %v453
        %v1111 = vunpack.c.h.b16 %v453
        %v1112 = vunpack.c.l.b16 %v454
        %v1113 = vunpack.c.h.b16 %v454
        %v1114 = vunpack.c.l.b16 %v455
        %v1115 = vunpack.c.h.b16 %v455
        %v1116 = vunpack.c.l.b16 %v456
        %v1117 = vunpack.c.h.b16 %v456
        %v1118 = vunpack.c.l.b16 %v457
        %v1119 = vunpack.c.h.b16 %v457
        %v1120 = vunpack.c.l.b16 %v458
        %v1121 = vunpack.c.h.b16 %v458
        %v1122 = vunpack.c.l.b16 %v459
        %v1123 = vunpack.c.h.b16 %v459
        %v1124 = vunpack.c.l.b16 %v460
        %v1125 = vunpack.c.h.b16 %v460
        %v1126 = vunpack.c.l.b16 %v461
        %v1127 = vunpack.c.h.b16 %v461
        %v1128 = vunpack.c.l.b16 %v462
        %v1129 = vunpack.c.h.b16 %v462
        %v1130 = vunpack.c.l.b16 %v463
        %v1131 = vunpack.c.h.b16 %v463
        %v1132 = vunpack.c.l.b16 %v464
        %v1133 = vunpack.c.h.b16 %v464
        %v1134 = vunpack.c.l.b16 %v465
        %v1135 = vunpack.c.h.b16 %v465
        %v1136 = vunpack.c.l.b16 %v466
        %v1137 = vunpack.c.h.b16 %v466
        %v1138 = vunpack.c.l.b16 %v467
        %v1139 = vunpack.c.h.b16 %v467
        %v1140 = vunpack.c.l.b16 %v468
        %v1141 = vunpack.c.h.b16 %v468
        %v1142 = vunpack.c.l.b16 %v469
        %v1143 = vunpack.c.h.b16 %v469
        %v1144 = vunpack.c.l.b16 %v470
        %v1145 = vunpack.c.h.b16 %v470
        %v1146 = vunpack.c.l.b16 %v471
        %v1147 = vunpack.c.h.b16 %v471
        %v1148 = vunpack.c.l.b16 %v472
        %v1149 = vunpack.c.h.b16 %v472
        %v1150 = vunpack.c.l.b16 %v473
        %v1151 = vunpack.c.h.b16 %v473
        %v1152 = vunpack.c.l.b16 %v474
        %v1153 = vunpack.c.h.b16 %v474
        %v1154 = vunpack.c.l.b16 %v475
        %v1155 = vunpack.c.h.b16 %v475
        %v1156 = vunpack.c.l.b16 %v476
        %v1157 = vunpack.c.h.b16 %v476
        %v1158 = vunpack.c.l.b16 %v477
        %v1159 = vunpack.c.h.b16 %v477
        %v1160 = vunpack.c.l.b16 %v478
        %v1161 = vunpack.c.h.b16 %v478
        %v1162 = vunpack.c.l.b16 %v479
        %v1163 = vunpack.c.h.b16 %v479
        %v1164 = vunpack.c.l.b16 %v480
        %v1165 = vunpack.c.h.b16 %v480
        %v1166 = vunpack.c.l.b16 %v481
        %v1167 = vunpack.c.h.b16 %v481
        %v1168 = vunpack.c.l.b16 %v482
        %v1169 = vunpack.c.h.b16 %v482
        %v1170 = vunpack.c.l.b16 %v483
        %v1171 = vunpack.c.h.b16 %v483
        %v1172 = vunpack.c.l.b16 %v484
        %v1173 = vunpack.c.h.b16 %v484
        %v1174 = vunpack.c.l.b16 %v485
        %v1175 = vunpack.c.h.b16 %v485
        %v1176 = vunpack.c.l.b16 %v486
        %v1177 = vunpack.c.h.b16 %v486
        %v1178 = vunpack.c.l.b16 %v487
        %v1179 = vunpack.c.h.b16 %v487
        %v1180 = vunpack.c.l.b16 %v488
        %v1181 = vunpack.c.h.b16 %v488
        %v1182 = vunpack.c.l.b16 %v489
        %v1183 = vunpack.c.h.b16 %v489
        %v1184 = vunpack.c.l.b16 %v490
        %v1185 = vunpack.c.h.b16 %v490
        %v1186 = vunpack.c.l.b16 %v491
        %v1187 = vunpack.c.h.b16 %v491
        %v1188 = vunpack.c.l.b16 %v492
        %v1189 = vunpack.c.h.b16 %v492
        %v1190 = vunpack.c.l.b16 %v493
        %v1191 = vunpack.c.h.b16 %v493
        %v1192 = vunpack.c.l.b16 %v494
        %v1193 = vunpack.c.h.b16 %v494
        %v1194 = vunpack.c.l.b16 %v495
        %v1195 = vunpack.c.h.b16 %v495
        %v1196 = vunpack.c.l.b16 %v496
        %v1197 = vunpack.c.h.b16 %v496
        %v1198 = vunpack.c.l.b16 %v497
        %v1199 = vunpack.c.h.b16 %v497
        %v1200 = vunpack.c.l.b16 %v498
        %v1201 = vunpack.c.h.b16 %v498
        %v1202 = vunpack.c.l.b16 %v499
        %v1203 = vunpack.c.h.b16 %v499
        %v1204 = vunpack.c.l.b16 %v500
        %v1205 = vunpack.c.h.b16 %v500
        %v1206 = vunpack.c.l.b16 %v501
        %v1207 = vunpack.c.h.b16 %v501
        %v1208 = vunpack.c.l.b16 %v502
        %v1209 = vunpack.c.h.b16 %v502
        %v1210 = vunpack.c.l.b16 %v503
        %v1211 = vunpack.c.h.b16 %v503
        %v1212 = vunpack.c.l.b16 %v504
        %v1213 = vunpack.c.h.b16 %v504
        %v1214 = vunpack.c.l.b16 %v505
        %v1215 = vunpack.c.h.b16 %v505
        %v1216 = vunpack.c.l.b16 %v506
        %v1217 = vunpack.c.h.b16 %v506
        %v1218 = vunpack.c.l.b16 %v507
        %v1219 = vunpack.c.h.b16 %v507
        %v1220 = vunpack.c.l.b16 %v508
        %v1221 = vunpack.c.h.b16 %v508
        %v1222 = vunpack.c.l.b16 %v509
        %v1223 = vunpack.c.h.b16 %v509
        %v1224 = vpack.c.b16 %v864, %v840
        %v1225 = vpack.c.b16 %v865, %v841
        %v1226 = vpack.c.b16 %v866, %v842
        %v1227 = vpack.c.b16 %v867, %v843
        %v1228 = vpack.c.b16 %v868, %v844
        %v1229 = vpack.c.b16 %v869, %v845
        %v1230 = vpack.c.b16 %v870, %v846
        %v1231 = vpack.c.b16 %v871, %v847
        %v1232 = vpack.c.b16 %v872, %v848
        %v1233 = vpack.c.b16 %v873, %v849
        %v1234 = vpack.c.b16 %v874, %v850
        %v1235 = vpack.c.b16 %v875, %v851
        %v1236 = vpack.c.b16 %v876, %v852
        %v1237 = vpack.c.b16 %v877, %v853
        %v1238 = vpack.c.b16 %v878, %v854
        %v1239 = vpack.c.b16 %v879, %v855
        %v1240 = vpack.c.b16 %v880, %v856
        %v1241 = vpack.c.b16 %v881, %v857
        %v1242 = vpack.c.b16 %v882, %v858
        %v1243 = vpack.c.b16 %v883, %v859
        %v1244 = vpack.c.b16 %v884, %v860
        %v1245 = vpack.c.b16 %v885, %v861
        %v1246 = vpack.c.b16 %v886, %v862
        %v1247 = vpack.c.b16 %v887, %v863
        %v1248 = vpack.c.b16 %v912, %v888
        %v1249 = vpack.c.b16 %v913, %v889
        %v1250 = vpack.c.b16 %v914, %v890
        %v1251 = vpack.c.b16 %v915, %v891
        %v1252 = vpack.c.b16 %v916, %v892
        %v1253 = vpack.c.b16 %v917, %v893
        %v1254 = vpack.c.b16 %v918, %v894
        %v1255 = vpack.c.b16 %v919, %v895
        %v1256 = vpack.c.b16 %v920, %v896
        %v1257 = vpack.c.b16 %v921, %v897
        %v1258 = vpack.c.b16 %v922, %v898
        %v1259 = vpack.c.b16 %v923, %v899
        %v1260 = vpack.c.b16 %v924, %v900
        %v1261 = vpack.c.b16 %v925, %v901
        %v1262 = vpack.c.b16 %v926, %v902
        %v1263 = vpack.c.b16 %v927, %v903
        %v1264 = vpack.c.b16 %v928, %v904
        %v1265 = vpack.c.b16 %v929, %v905
        %v1266 = vpack.c.b16 %v930, %v906
        %v1267 = vpack.c.b16 %v931, %v907
        %v1268 = vpack.c.b16 %v932, %v908
        %v1269 = vpack.c.b16 %v933, %v909
        %v1270 = vpack.c.b16 %v934, %v910
        %v1271 = vpack.c.b16 %v935, %v911
        %v1272 = vpack.c.b16 %v960, %v936
        %v1273 = vpack.c.b16 %v961, %v937
        %v1274 = vpack.c.b16 %v962, %v938
        %v1275 = vpack.c.b16 %v963, %v939
        %v1276 = vpack.c.b16 %v964, %v940
        %v1277 = vpack.c.b16 %v965, %v941
        %v1278 = vpack.c.b16 %v966, %v942
        %v1279 = vpack.c.b16 %v967, %v943
        %v1280 = vpack.c.b16 %v968, %v944
        %v1281 = vpack.c.b16 %v969, %v945
        %v1282 = vpack.c.b16 %v970, %v946
        %v1283 = vpack.c.b16 %v971, %v947
        %v1284 = vpack.c.b16 %v972, %v948
        %v1285 = vpack.c.b16 %v973, %v949
        %v1286 = vpack.c.b16 %v974, %v950
        %v1287 = vpack.c.b16 %v975, %v951
        %v1288 = vpack.c.b16 %v976, %v952
        %v1289 = vpack.c.b16 %v977, %v953
        %v1290 = vpack.c.b16 %v978, %v954
        %v1291 = vpack.c.b16 %v979, %v955
        %v1292 = vpack.c.b16 %v980, %v956
        %v1293 = vpack.c.b16 %v981, %v957
        %v1294 = vpack.c.b16 %v982, %v958
        %v1295 = vpack.c.b16 %v983, %v959
        %v1296 = vpack.c.b16 %v1008, %v984
        %v1297 = vpack.c.b16 %v1009, %v985
        %v1298 = vpack.c.b16 %v1010, %v986
        %v1299 = vpack.c.b16 %v1011, %v987
        %v1300 = vpack.c.b16 %v1012, %v988
        %v1301 = vpack.c.b16 %v1013, %v989
        %v1302 = vpack.c.b16 %v1014, %v990
        %v1303 = vpack.c.b16 %v1015, %v991
        %v1304 = vpack.c.b16 %v1016, %v992
        %v1305 = vpack.c.b16 %v1017, %v993
        %v1306 = vpack.c.b16 %v1018, %v994
        %v1307 = vpack.c.b16 %v1019, %v995
        %v1308 = vpack.c.b16 %v1020, %v996
        %v1309 = vpack.c.b16 %v1021, %v997
        %v1310 = vpack.c.b16 %v1022, %v998
        %v1311 = vpack.c.b16 %v1023, %v999
        %v1312 = vpack.c.b16 %v1024, %v1000
        %v1313 = vpack.c.b16 %v1025, %v1001
        %v1314 = vpack.c.b16 %v1026, %v1002
        %v1315 = vpack.c.b16 %v1027, %v1003
        %v1316 = vpack.c.b16 %v1028, %v1004
        %v1317 = vpack.c.b16 %v1029, %v1005
        %v1318 = vpack.c.b16 %v1030, %v1006
        %v1319 = vpack.c.b16 %v1031, %v1007
        %v1320 = vpack.c.b16 %v1056, %v1032
        %v1321 = vpack.c.b16 %v1057, %v1033
        %v1322 = vpack.c.b16 %v1058, %v1034
        %v1323 = vpack.c.b16 %v1059, %v1035
        %v1324 = vpack.c.b16 %v1060, %v1036
        %v1325 = vpack.c.b16 %v1061, %v1037
        %v1326 = vpack.c.b16 %v1062, %v1038
        %v1327 = vpack.c.b16 %v1063, %v1039
        %v1328 = vpack.c.b16 %v1064, %v1040
        %v1329 = vpack.c.b16 %v1065, %v1041
        %v1330 = vpack.c.b16 %v1066, %v1042
        %v1331 = vpack.c.b16 %v1067, %v1043
        %v1332 = vpack.c.b16 %v1068, %v1044
        %v1333 = vpack.c.b16 %v1069, %v1045
        %v1334 = vpack.c.b16 %v1070, %v1046
        %v1335 = vpack.c.b16 %v1071, %v1047
        %v1336 = vpack.c.b16 %v1072, %v1048
        %v1337 = vpack.c.b16 %v1073, %v1049
        %v1338 = vpack.c.b16 %v1074, %v1050
        %v1339 = vpack.c.b16 %v1075, %v1051
        %v1340 = vpack.c.b16 %v1076, %v1052
        %v1341 = vpack.c.b16 %v1077, %v1053
        %v1342 = vpack.c.b16 %v1078, %v1054
        %v1343 = vpack.c.b16 %v1079, %v1055
        %v1344 = vpack.c.b16 %v1104, %v1080
        %v1345 = vpack.c.b16 %v1105, %v1081
        %v1346 = vpack.c.b16 %v1106, %v1082
        %v1347 = vpack.c.b16 %v1107, %v1083
        %v1348 = vpack.c.b16 %v1108, %v1084
        %v1349 = vpack.c.b16 %v1109, %v1085
        %v1350 = vpack.c.b16 %v1110, %v1086
        %v1351 = vpack.c.b16 %v1111, %v1087
        %v1352 = vpack.c.b16 %v1112, %v1088
        %v1353 = vpack.c.b16 %v1113, %v1089
        %v1354 = vpack.c.b16 %v1114, %v1090
        %v1355 = vpack.c.b16 %v1115, %v1091
        %v1356 = vpack.c.b16 %v1116, %v1092
        %v1357 = vpack.c.b16 %v1117, %v1093
        %v1358 = vpack.c.b16 %v1118, %v1094
        %v1359 = vpack.c.b16 %v1119, %v1095
        %v1360 = vpack.c.b16 %v1120, %v1096
        %v1361 = vpack.c.b16 %v1121, %v1097
        %v1362 = vpack.c.b16 %v1122, %v1098
        %v1363 = vpack.c.b16 %v1123, %v1099
        %v1364 = vpack.c.b16 %v1124, %v1100
        %v1365 = vpack.c.b16 %v1125, %v1101
        %v1366 = vpack.c.b16 %v1126, %v1102
        %v1367 = vpack.c.b16 %v1127, %v1103
        %v1368 = vpack.c.b16 %v1152, %v1128
        %v1369 = vpack.c.b16 %v1153, %v1129
        %v1370 = vpack.c.b16 %v1154, %v1130
        %v1371 = vpack.c.b16 %v1155, %v1131
        %v1372 = vpack.c.b16 %v1156, %v1132
        %v1373 = vpack.c.b16 %v1157, %v1133
        %v1374 = vpack.c.b16 %v1158, %v1134
        %v1375 = vpack.c.b16 %v1159, %v1135
        %v1376 = vpack.c.b16 %v1160, %v1136
        %v1377 = vpack.c.b16 %v1161, %v1137
        %v1378 = vpack.c.b16 %v1162, %v1138
        %v1379 = vpack.c.b16 %v1163, %v1139
        %v1380 = vpack.c.b16 %v1164, %v1140
        %v1381 = vpack.c.b16 %v1165, %v1141
        %v1382 = vpack.c.b16 %v1166, %v1142
        %v1383 = vpack.c.b16 %v1167, %v1143
        %v1384 = vpack.c.b16 %v1168, %v1144
        %v1385 = vpack.c.b16 %v1169, %v1145
        %v1386 = vpack.c.b16 %v1170, %v1146
        %v1387 = vpack.c.b16 %v1171, %v1147
        %v1388 = vpack.c.b16 %v1172, %v1148
        %v1389 = vpack.c.b16 %v1173, %v1149
        %v1390 = vpack.c.b16 %v1174, %v1150
        %v1391 = vpack.c.b16 %v1175, %v1151
        %v1392 = vpack.c.b16 %v1200, %v1176
        %v1393 = vpack.c.b16 %v1201, %v1177
        %v1394 = vpack.c.b16 %v1202, %v1178
        %v1395 = vpack.c.b16 %v1203, %v1179
        %v1396 = vpack.c.b16 %v1204, %v1180
        %v1397 = vpack.c.b16 %v1205, %v1181
        %v1398 = vpack.c.b16 %v1206, %v1182
        %v1399 = vpack.c.b16 %v1207, %v1183
        %v1400 = vpack.c.b16 %v1208, %v1184
        %v1401 = vpack.c.b16 %v1209, %v1185
        %v1402 = vpack.c.b16 %v1210, %v1186
        %v1403 = vpack.c.b16 %v1211, %v1187
        %v1404 = vpack.c.b16 %v1212, %v1188
        %v1405 = vpack.c.b16 %v1213, %v1189
        %v1406 = vpack.c.b16 %v1214, %v1190
        %v1407 = vpack.c.b16 %v1215, %v1191
        %v1408 = vpack.c.b16 %v1216, %v1192
        %v1409 = vpack.c.b16 %v1217, %v1193
        %v1410 = vpack.c.b16 %v1218, %v1194
        %v1411 = vpack.c.b16 %v1219, %v1195
        %v1412 = vpack.c.b16 %v1220, %v1196
        %v1413 = vpack.c.b16 %v1221, %v1197
        %v1414 = vpack.c.b16 %v1222, %v1198
        %v1415 = vpack.c.b16 %v1223, %v1199
        %1608 = vmatprep.subr.bf16.mxu0 %v1225
        %1609 = vmatpush1.bf16.msra.mxu0 %v1224
        %1610 = vmatprep.subr.bf16.mxu0 %v1249
        %1611 = vmatpush1.bf16.msra.mxu0 %v1248
        %1612 = vmatprep.subr.bf16.mxu0 %v1273
        %1613 = vmatpush1.bf16.msra.mxu0 %v1272
        %1614 = vmatprep.subr.bf16.mxu0 %v1297
        %1615 = vmatpush1.bf16.msra.mxu0 %v1296
        %1616 = vmatprep.subr.bf16.mxu0 %v1321
        %1617 = vmatpush1.bf16.msra.mxu0 %v1320
        %1618 = vmatprep.subr.bf16.mxu0 %v1345
        %1619 = vmatpush1.bf16.msra.mxu0 %v1344
        %1620 = vmatprep.subr.bf16.mxu0 %v1369
        %1621 = vmatpush1.bf16.msra.mxu0 %v1368
        %1622 = vmatprep.subr.bf16.mxu0 %v1393
        %1623 = vmatpush1.bf16.msra.mxu0 %v1392
        %1624 = vmatprep.subr.bf16.mxu0 0
        %1625 = vmatpush1.bf16.msra.mxu0 0
        %1626 = vmatprep.subr.bf16.mxu0 0
        %1627 = vmatpush1.bf16.msra.mxu0 0
        %1628 = vmatprep.subr.bf16.mxu0 0
        %1629 = vmatpush1.bf16.msra.mxu0 0
        %1630 = vmatprep.subr.bf16.mxu0 0
        %1631 = vmatpush1.bf16.msra.mxu0 0
        %1632 = vmatprep.subr.bf16.mxu0 0
        %1633 = vmatpush1.bf16.msra.mxu0 0
        %1634 = vmatprep.subr.bf16.mxu0 0
        %1635 = vmatpush1.bf16.msra.mxu0 0
        %1636 = vmatprep.subr.bf16.mxu0 0
        %1637 = vmatpush1.bf16.msra.mxu0 0
        %1638 = vmatprep.subr.bf16.mxu0 0
        %1639 = vmatpush1.bf16.msra.mxu0 0
        %1640 = vmatprep.mubr.bf16.mxu0 0
        %1641 = vmatmul.mubr.bf16.gmra.mrb[0].mxu0 %v644
        %v1642 = vpop.f32.mrb[0].mxu0
        %v1643 = vadd.f32 %v519, %v1642
        %v1644 = vpop.f32.mrb[0].mxu0
        %v1645 = vadd.f32 %v523, %v1644
        %v1646 = vpop.f32.mrb[0].mxu0
        %v1647 = vadd.f32 %v519, %v1646
        %v1648 = vpop.f32.mrb[0].mxu0
        %v1649 = vadd.f32 %v523, %v1648
        %1650 = vmatprep.mubr.bf16.mxu0 0
        %1651 = vmatmul.mubr.bf16.gmra.mrb[0].mxu0 %v645
        %v1652 = vpop.f32.mrb[0].mxu0
        %v1653 = vadd.f32 %v519, %v1652
        %v1654 = vpop.f32.mrb[0].mxu0
        %v1655 = vadd.f32 %v523, %v1654
        %v1656 = vpop.f32.mrb[0].mxu0
        %v1657 = vadd.f32 %v519, %v1656
        %v1658 = vpop.f32.mrb[0].mxu0
        %v1659 = vadd.f32 %v523, %v1658
        %1660 = vdwg.mxu0
        %1661 = vmatprep.subr.bf16.mxu0 %v1227
        %1662 = vmatpush1.bf16.msra.mxu0 %v1226
        %1663 = vmatprep.subr.bf16.mxu0 %v1251
        %1664 = vmatpush1.bf16.msra.mxu0 %v1250
        %1665 = vmatprep.subr.bf16.mxu0 %v1275
        %1666 = vmatpush1.bf16.msra.mxu0 %v1274
        %1667 = vmatprep.subr.bf16.mxu0 %v1299
        %1668 = vmatpush1.bf16.msra.mxu0 %v1298
        %1669 = vmatprep.subr.bf16.mxu0 %v1323
        %1670 = vmatpush1.bf16.msra.mxu0 %v1322
        %1671 = vmatprep.subr.bf16.mxu0 %v1347
        %1672 = vmatpush1.bf16.msra.mxu0 %v1346
        %1673 = vmatprep.subr.bf16.mxu0 %v1371
        %1674 = vmatpush1.bf16.msra.mxu0 %v1370
        %1675 = vmatprep.subr.bf16.mxu0 %v1395
        %1676 = vmatpush1.bf16.msra.mxu0 %v1394
        %1677 = vmatprep.subr.bf16.mxu0 0
        %1678 = vmatpush1.bf16.msra.mxu0 0
        %1679 = vmatprep.subr.bf16.mxu0 0
        %1680 = vmatpush1.bf16.msra.mxu0 0
        %1681 = vmatprep.subr.bf16.mxu0 0
        %1682 = vmatpush1.bf16.msra.mxu0 0
        %1683 = vmatprep.subr.bf16.mxu0 0
        %1684 = vmatpush1.bf16.msra.mxu0 0
        %1685 = vmatprep.subr.bf16.mxu0 0
        %1686 = vmatpush1.bf16.msra.mxu0 0
        %1687 = vmatprep.subr.bf16.mxu0 0
        %1688 = vmatpush1.bf16.msra.mxu0 0
        %1689 = vmatprep.subr.bf16.mxu0 0
        %1690 = vmatpush1.bf16.msra.mxu0 0
        %1691 = vmatprep.subr.bf16.mxu0 0
        %1692 = vmatpush1.bf16.msra.mxu0 0
        %1693 = vmatprep.mubr.bf16.mxu0 0
        %1694 = vmatmul.mubr.bf16.gmra.mrb[0].mxu0 %v644
        %v1695 = vpop.f32.mrb[0].mxu0
        %v1696 = vadd.f32 %v527, %v1695
        %v1697 = vpop.f32.mrb[0].mxu0
        %v1698 = vadd.f32 %v531, %v1697
        %v1699 = vpop.f32.mrb[0].mxu0
        %v1700 = vadd.f32 %v527, %v1699
        %v1701 = vpop.f32.mrb[0].mxu0
        %v1702 = vadd.f32 %v531, %v1701
        %1703 = vmatprep.mubr.bf16.mxu0 0
        %1704 = vmatmul.mubr.bf16.gmra.mrb[0].mxu0 %v645
        %v1705 = vpop.f32.mrb[0].mxu0
        %v1706 = vadd.f32 %v527, %v1705
        %v1707 = vpop.f32.mrb[0].mxu0
        %v1708 = vadd.f32 %v531, %v1707
        %v1709 = vpop.f32.mrb[0].mxu0
        %v1710 = vadd.f32 %v527, %v1709
        %v1711 = vpop.f32.mrb[0].mxu0
        %v1712 = vadd.f32 %v531, %v1711
        %1713 = vdwg.mxu0
        %1714 = vmatprep.subr.bf16.mxu0 %v1229
        %1715 = vmatpush1.bf16.msra.mxu0 %v1228
        %1716 = vmatprep.subr.bf16.mxu0 %v1253
        %1717 = vmatpush1.bf16.msra.mxu0 %v1252
        %1718 = vmatprep.subr.bf16.mxu0 %v1277
        %1719 = vmatpush1.bf16.msra.mxu0 %v1276
        %1720 = vmatprep.subr.bf16.mxu0 %v1301
        %1721 = vmatpush1.bf16.msra.mxu0 %v1300
        %1722 = vmatprep.subr.bf16.mxu0 %v1325
        %1723 = vmatpush1.bf16.msra.mxu0 %v1324
        %1724 = vmatprep.subr.bf16.mxu0 %v1349
        %1725 = vmatpush1.bf16.msra.mxu0 %v1348
        %1726 = vmatprep.subr.bf16.mxu0 %v1373
        %1727 = vmatpush1.bf16.msra.mxu0 %v1372
        %1728 = vmatprep.subr.bf16.mxu0 %v1397
        %1729 = vmatpush1.bf16.msra.mxu0 %v1396
        %1730 = vmatprep.subr.bf16.mxu0 0
        %1731 = vmatpush1.bf16.msra.mxu0 0
        %1732 = vmatprep.subr.bf16.mxu0 0
        %1733 = vmatpush1.bf16.msra.mxu0 0
        %1734 = vmatprep.subr.bf16.mxu0 0
        %1735 = vmatpush1.bf16.msra.mxu0 0
        %1736 = vmatprep.subr.bf16.mxu0 0
        %1737 = vmatpush1.bf16.msra.mxu0 0
        %1738 = vmatprep.subr.bf16.mxu0 0
        %1739 = vmatpush1.bf16.msra.mxu0 0
        %1740 = vmatprep.subr.bf16.mxu0 0
        %1741 = vmatpush1.bf16.msra.mxu0 0
        %1742 = vmatprep.subr.bf16.mxu0 0
        %1743 = vmatpush1.bf16.msra.mxu0 0
        %1744 = vmatprep.subr.bf16.mxu0 0
        %1745 = vmatpush1.bf16.msra.mxu0 0
        %1746 = vmatprep.mubr.bf16.mxu0 0
        %1747 = vmatmul.mubr.bf16.gmra.mrb[0].mxu0 %v644
        %v1748 = vpop.f32.mrb[0].mxu0
        %v1749 = vadd.f32 %v535, %v1748
        %v1750 = vpop.f32.mrb[0].mxu0
        %v1751 = vadd.f32 %v539, %v1750
        %v1752 = vpop.f32.mrb[0].mxu0
        %v1753 = vadd.f32 %v535, %v1752
        %v1754 = vpop.f32.mrb[0].mxu0
        %v1755 = vadd.f32 %v539, %v1754
        %1756 = vmatprep.mubr.bf16.mxu0 0
        %1757 = vmatmul.mubr.bf16.gmra.mrb[0].mxu0 %v645
        %v1758 = vpop.f32.mrb[0].mxu0
        %v1759 = vadd.f32 %v535, %v1758
        %v1760 = vpop.f32.mrb[0].mxu0
        %v1761 = vadd.f32 %v539, %v1760
        %v1762 = vpop.f32.mrb[0].mxu0
        %v1763 = vadd.f32 %v535, %v1762
        %v1764 = vpop.f32.mrb[0].mxu0
        %v1765 = vadd.f32 %v539, %v1764
        %1766 = vdwg.mxu0
        %1767 = vmatprep.subr.bf16.mxu0 %v1231
        %1768 = vmatpush1.bf16.msra.mxu0 %v1230
        %1769 = vmatprep.subr.bf16.mxu0 %v1255
        %1770 = vmatpush1.bf16.msra.mxu0 %v1254
        %1771 = vmatprep.subr.bf16.mxu0 %v1279
        %1772 = vmatpush1.bf16.msra.mxu0 %v1278
        %1773 = vmatprep.subr.bf16.mxu0 %v1303
        %1774 = vmatpush1.bf16.msra.mxu0 %v1302
        %1775 = vmatprep.subr.bf16.mxu0 %v1327
        %1776 = vmatpush1.bf16.msra.mxu0 %v1326
        %1777 = vmatprep.subr.bf16.mxu0 %v1351
        %1778 = vmatpush1.bf16.msra.mxu0 %v1350
        %1779 = vmatprep.subr.bf16.mxu0 %v1375
        %1780 = vmatpush1.bf16.msra.mxu0 %v1374
        %1781 = vmatprep.subr.bf16.mxu0 %v1399
        %1782 = vmatpush1.bf16.msra.mxu0 %v1398
        %1783 = vmatprep.subr.bf16.mxu0 0
        %1784 = vmatpush1.bf16.msra.mxu0 0
        %1785 = vmatprep.subr.bf16.mxu0 0
        %1786 = vmatpush1.bf16.msra.mxu0 0
        %1787 = vmatprep.subr.bf16.mxu0 0
        %1788 = vmatpush1.bf16.msra.mxu0 0
        %1789 = vmatprep.subr.bf16.mxu0 0
        %1790 = vmatpush1.bf16.msra.mxu0 0
        %1791 = vmatprep.subr.bf16.mxu0 0
        %1792 = vmatpush1.bf16.msra.mxu0 0
        %1793 = vmatprep.subr.bf16.mxu0 0
        %1794 = vmatpush1.bf16.msra.mxu0 0
        %1795 = vmatprep.subr.bf16.mxu0 0
        %1796 = vmatpush1.bf16.msra.mxu0 0
        %1797 = vmatprep.subr.bf16.mxu0 0
        %1798 = vmatpush1.bf16.msra.mxu0 0
        %1799 = vmatprep.mubr.bf16.mxu0 0
        %1800 = vmatmul.mubr.bf16.gmra.mrb[0].mxu0 %v644
        %v1801 = vpop.f32.mrb[0].mxu0
        %v1802 = vadd.f32 %v543, %v1801
        %v1803 = vpop.f32.mrb[0].mxu0
        %v1804 = vadd.f32 %v547, %v1803
        %v1805 = vpop.f32.mrb[0].mxu0
        %v1806 = vadd.f32 %v543, %v1805
        %v1807 = vpop.f32.mrb[0].mxu0
        %v1808 = vadd.f32 %v547, %v1807
        %1809 = vmatprep.mubr.bf16.mxu0 0
        %1810 = vmatmul.mubr.bf16.gmra.mrb[0].mxu0 %v645
        %v1811 = vpop.f32.mrb[0].mxu0
        %v1812 = vadd.f32 %v543, %v1811
        %v1813 = vpop.f32.mrb[0].mxu0
        %v1814 = vadd.f32 %v547, %v1813
        %v1815 = vpop.f32.mrb[0].mxu0
        %v1816 = vadd.f32 %v543, %v1815
        %v1817 = vpop.f32.mrb[0].mxu0
        %v1818 = vadd.f32 %v547, %v1817
        %1819 = vdwg.mxu0
        %1820 = vmatprep.subr.bf16.mxu0 %v1233
        %1821 = vmatpush1.bf16.msra.mxu0 %v1232
        %1822 = vmatprep.subr.bf16.mxu0 %v1257
        %1823 = vmatpush1.bf16.msra.mxu0 %v1256
        %1824 = vmatprep.subr.bf16.mxu0 %v1281
        %1825 = vmatpush1.bf16.msra.mxu0 %v1280
        %1826 = vmatprep.subr.bf16.mxu0 %v1305
        %1827 = vmatpush1.bf16.msra.mxu0 %v1304
        %1828 = vmatprep.subr.bf16.mxu0 %v1329
        %1829 = vmatpush1.bf16.msra.mxu0 %v1328
        %1830 = vmatprep.subr.bf16.mxu0 %v1353
        %1831 = vmatpush1.bf16.msra.mxu0 %v1352
        %1832 = vmatprep.subr.bf16.mxu0 %v1377
        %1833 = vmatpush1.bf16.msra.mxu0 %v1376
        %1834 = vmatprep.subr.bf16.mxu0 %v1401
        %1835 = vmatpush1.bf16.msra.mxu0 %v1400
        %1836 = vmatprep.subr.bf16.mxu0 0
        %1837 = vmatpush1.bf16.msra.mxu0 0
        %1838 = vmatprep.subr.bf16.mxu0 0
        %1839 = vmatpush1.bf16.msra.mxu0 0
        %1840 = vmatprep.subr.bf16.mxu0 0
        %1841 = vmatpush1.bf16.msra.mxu0 0
        %1842 = vmatprep.subr.bf16.mxu0 0
        %1843 = vmatpush1.bf16.msra.mxu0 0
        %1844 = vmatprep.subr.bf16.mxu0 0
        %1845 = vmatpush1.bf16.msra.mxu0 0
        %1846 = vmatprep.subr.bf16.mxu0 0
        %1847 = vmatpush1.bf16.msra.mxu0 0
        %1848 = vmatprep.subr.bf16.mxu0 0
        %1849 = vmatpush1.bf16.msra.mxu0 0
        %1850 = vmatprep.subr.bf16.mxu0 0
        %1851 = vmatpush1.bf16.msra.mxu0 0
        %1852 = vmatprep.mubr.bf16.mxu0 0
        %1853 = vmatmul.mubr.bf16.gmra.mrb[0].mxu0 %v644
        %v1854 = vpop.f32.mrb[0].mxu0
        %v1855 = vadd.f32 %v551, %v1854
        %v1856 = vpop.f32.mrb[0].mxu0
        %v1857 = vadd.f32 %v555, %v1856
        %v1858 = vpop.f32.mrb[0].mxu0
        %v1859 = vadd.f32 %v551, %v1858
        %v1860 = vpop.f32.mrb[0].mxu0
        %v1861 = vadd.f32 %v555, %v1860
        %1862 = vmatprep.mubr.bf16.mxu0 0
        %1863 = vmatmul.mubr.bf16.gmra.mrb[0].mxu0 %v645
        %v1864 = vpop.f32.mrb[0].mxu0
        %v1865 = vadd.f32 %v551, %v1864
        %v1866 = vpop.f32.mrb[0].mxu0
        %v1867 = vadd.f32 %v555, %v1866
        %v1868 = vpop.f32.mrb[0].mxu0
        %v1869 = vadd.f32 %v551, %v1868
        %v1870 = vpop.f32.mrb[0].mxu0
        %v1871 = vadd.f32 %v555, %v1870
        %1872 = vdwg.mxu0
        %1873 = vmatprep.subr.bf16.mxu0 %v1235
        %1874 = vmatpush1.bf16.msra.mxu0 %v1234
        %1875 = vmatprep.subr.bf16.mxu0 %v1259
        %1876 = vmatpush1.bf16.msra.mxu0 %v1258
        %1877 = vmatprep.subr.bf16.mxu0 %v1283
        %1878 = vmatpush1.bf16.msra.mxu0 %v1282
        %1879 = vmatprep.subr.bf16.mxu0 %v1307
        %1880 = vmatpush1.bf16.msra.mxu0 %v1306
        %1881 = vmatprep.subr.bf16.mxu0 %v1331
        %1882 = vmatpush1.bf16.msra.mxu0 %v1330
        %1883 = vmatprep.subr.bf16.mxu0 %v1355
        %1884 = vmatpush1.bf16.msra.mxu0 %v1354
        %1885 = vmatprep.subr.bf16.mxu0 %v1379
        %1886 = vmatpush1.bf16.msra.mxu0 %v1378
        %1887 = vmatprep.subr.bf16.mxu0 %v1403
        %1888 = vmatpush1.bf16.msra.mxu0 %v1402
        %1889 = vmatprep.subr.bf16.mxu0 0
        %1890 = vmatpush1.bf16.msra.mxu0 0
        %1891 = vmatprep.subr.bf16.mxu0 0
        %1892 = vmatpush1.bf16.msra.mxu0 0
        %1893 = vmatprep.subr.bf16.mxu0 0
        %1894 = vmatpush1.bf16.msra.mxu0 0
        %1895 = vmatprep.subr.bf16.mxu0 0
        %1896 = vmatpush1.bf16.msra.mxu0 0
        %1897 = vmatprep.subr.bf16.mxu0 0
        %1898 = vmatpush1.bf16.msra.mxu0 0
        %1899 = vmatprep.subr.bf16.mxu0 0
        %1900 = vmatpush1.bf16.msra.mxu0 0
        %1901 = vmatprep.subr.bf16.mxu0 0
        %1902 = vmatpush1.bf16.msra.mxu0 0
        %1903 = vmatprep.subr.bf16.mxu0 0
        %1904 = vmatpush1.bf16.msra.mxu0 0
        %1905 = vmatprep.mubr.bf16.mxu0 0
        %1906 = vmatmul.mubr.bf16.gmra.mrb[0].mxu0 %v644
        %v1907 = vpop.f32.mrb[0].mxu0
        %v1908 = vadd.f32 %v559, %v1907
        %v1909 = vpop.f32.mrb[0].mxu0
        %v1910 = vadd.f32 %v563, %v1909
        %v1911 = vpop.f32.mrb[0].mxu0
        %v1912 = vadd.f32 %v559, %v1911
        %v1913 = vpop.f32.mrb[0].mxu0
        %v1914 = vadd.f32 %v563, %v1913
        %1915 = vmatprep.mubr.bf16.mxu0 0
        %1916 = vmatmul.mubr.bf16.gmra.mrb[0].mxu0 %v645
        %v1917 = vpop.f32.mrb[0].mxu0
        %v1918 = vadd.f32 %v559, %v1917
        %v1919 = vpop.f32.mrb[0].mxu0
        %v1920 = vadd.f32 %v563, %v1919
        %v1921 = vpop.f32.mrb[0].mxu0
        %v1922 = vadd.f32 %v559, %v1921
        %v1923 = vpop.f32.mrb[0].mxu0
        %v1924 = vadd.f32 %v563, %v1923
        %1925 = vdwg.mxu0
        %1926 = vmatprep.subr.bf16.mxu0 %v1237
        %1927 = vmatpush1.bf16.msra.mxu0 %v1236
        %1928 = vmatprep.subr.bf16.mxu0 %v1261
        %1929 = vmatpush1.bf16.msra.mxu0 %v1260
        %1930 = vmatprep.subr.bf16.mxu0 %v1285
        %1931 = vmatpush1.bf16.msra.mxu0 %v1284
        %1932 = vmatprep.subr.bf16.mxu0 %v1309
        %1933 = vmatpush1.bf16.msra.mxu0 %v1308
        %1934 = vmatprep.subr.bf16.mxu0 %v1333
        %1935 = vmatpush1.bf16.msra.mxu0 %v1332
        %1936 = vmatprep.subr.bf16.mxu0 %v1357
        %1937 = vmatpush1.bf16.msra.mxu0 %v1356
        %1938 = vmatprep.subr.bf16.mxu0 %v1381
        %1939 = vmatpush1.bf16.msra.mxu0 %v1380
        %1940 = vmatprep.subr.bf16.mxu0 %v1405
        %1941 = vmatpush1.bf16.msra.mxu0 %v1404
        %1942 = vmatprep.subr.bf16.mxu0 0
        %1943 = vmatpush1.bf16.msra.mxu0 0
        %1944 = vmatprep.subr.bf16.mxu0 0
        %1945 = vmatpush1.bf16.msra.mxu0 0
        %1946 = vmatprep.subr.bf16.mxu0 0
        %1947 = vmatpush1.bf16.msra.mxu0 0
        %1948 = vmatprep.subr.bf16.mxu0 0
        %1949 = vmatpush1.bf16.msra.mxu0 0
        %1950 = vmatprep.subr.bf16.mxu0 0
        %1951 = vmatpush1.bf16.msra.mxu0 0
        %1952 = vmatprep.subr.bf16.mxu0 0
        %1953 = vmatpush1.bf16.msra.mxu0 0
        %1954 = vmatprep.subr.bf16.mxu0 0
        %1955 = vmatpush1.bf16.msra.mxu0 0
        %1956 = vmatprep.subr.bf16.mxu0 0
        %1957 = vmatpush1.bf16.msra.mxu0 0
        %1958 = vmatprep.mubr.bf16.mxu0 0
        %1959 = vmatmul.mubr.bf16.gmra.mrb[0].mxu0 %v644
        %v1960 = vpop.f32.mrb[0].mxu0
        %v1961 = vadd.f32 %v567, %v1960
        %v1962 = vpop.f32.mrb[0].mxu0
        %v1963 = vadd.f32 %v571, %v1962
        %v1964 = vpop.f32.mrb[0].mxu0
        %v1965 = vadd.f32 %v567, %v1964
        %v1966 = vpop.f32.mrb[0].mxu0
        %v1967 = vadd.f32 %v571, %v1966
        %1968 = vmatprep.mubr.bf16.mxu0 0
        %1969 = vmatmul.mubr.bf16.gmra.mrb[0].mxu0 %v645
        %v1970 = vpop.f32.mrb[0].mxu0
        %v1971 = vadd.f32 %v567, %v1970
        %v1972 = vpop.f32.mrb[0].mxu0
        %v1973 = vadd.f32 %v571, %v1972
        %v1974 = vpop.f32.mrb[0].mxu0
        %v1975 = vadd.f32 %v567, %v1974
        %v1976 = vpop.f32.mrb[0].mxu0
        %v1977 = vadd.f32 %v571, %v1976
        %1978 = vdwg.mxu0
        %1979 = vmatprep.subr.bf16.mxu0 %v1239
        %1980 = vmatpush1.bf16.msra.mxu0 %v1238
        %1981 = vmatprep.subr.bf16.mxu0 %v1263
        %1982 = vmatpush1.bf16.msra.mxu0 %v1262
        %1983 = vmatprep.subr.bf16.mxu0 %v1287
        %1984 = vmatpush1.bf16.msra.mxu0 %v1286
        %1985 = vmatprep.subr.bf16.mxu0 %v1311
        %1986 = vmatpush1.bf16.msra.mxu0 %v1310
        %1987 = vmatprep.subr.bf16.mxu0 %v1335
        %1988 = vmatpush1.bf16.msra.mxu0 %v1334
        %1989 = vmatprep.subr.bf16.mxu0 %v1359
        %1990 = vmatpush1.bf16.msra.mxu0 %v1358
        %1991 = vmatprep.subr.bf16.mxu0 %v1383
        %1992 = vmatpush1.bf16.msra.mxu0 %v1382
        %1993 = vmatprep.subr.bf16.mxu0 %v1407
        %1994 = vmatpush1.bf16.msra.mxu0 %v1406
        %1995 = vmatprep.subr.bf16.mxu0 0
        %1996 = vmatpush1.bf16.msra.mxu0 0
        %1997 = vmatprep.subr.bf16.mxu0 0
        %1998 = vmatpush1.bf16.msra.mxu0 0
        %1999 = vmatprep.subr.bf16.mxu0 0
        %2000 = vmatpush1.bf16.msra.mxu0 0
        %2001 = vmatprep.subr.bf16.mxu0 0
        %2002 = vmatpush1.bf16.msra.mxu0 0
        %2003 = vmatprep.subr.bf16.mxu0 0
        %2004 = vmatpush1.bf16.msra.mxu0 0
        %2005 = vmatprep.subr.bf16.mxu0 0
        %2006 = vmatpush1.bf16.msra.mxu0 0
        %2007 = vmatprep.subr.bf16.mxu0 0
        %2008 = vmatpush1.bf16.msra.mxu0 0
        %2009 = vmatprep.subr.bf16.mxu0 0
        %2010 = vmatpush1.bf16.msra.mxu0 0
        %2011 = vmatprep.mubr.bf16.mxu0 0
        %2012 = vmatmul.mubr.bf16.gmra.mrb[0].mxu0 %v644
        %v2013 = vpop.f32.mrb[0].mxu0
        %v2014 = vadd.f32 %v575, %v2013
        %v2015 = vpop.f32.mrb[0].mxu0
        %v2016 = vadd.f32 %v579, %v2015
        %v2017 = vpop.f32.mrb[0].mxu0
        %v2018 = vadd.f32 %v575, %v2017
        %v2019 = vpop.f32.mrb[0].mxu0
        %v2020 = vadd.f32 %v579, %v2019
        %2021 = vmatprep.mubr.bf16.mxu0 0
        %2022 = vmatmul.mubr.bf16.gmra.mrb[0].mxu0 %v645
        %v2023 = vpop.f32.mrb[0].mxu0
        %v2024 = vadd.f32 %v575, %v2023
        %v2025 = vpop.f32.mrb[0].mxu0
        %v2026 = vadd.f32 %v579, %v2025
        %v2027 = vpop.f32.mrb[0].mxu0
        %v2028 = vadd.f32 %v575, %v2027
        %v2029 = vpop.f32.mrb[0].mxu0
        %v2030 = vadd.f32 %v579, %v2029
        %2031 = vdwg.mxu0
        %2032 = vmatprep.subr.bf16.mxu0 %v1241
        %2033 = vmatpush1.bf16.msra.mxu0 %v1240
        %2034 = vmatprep.subr.bf16.mxu0 %v1265
        %2035 = vmatpush1.bf16.msra.mxu0 %v1264
        %2036 = vmatprep.subr.bf16.mxu0 %v1289
        %2037 = vmatpush1.bf16.msra.mxu0 %v1288
        %2038 = vmatprep.subr.bf16.mxu0 %v1313
        %2039 = vmatpush1.bf16.msra.mxu0 %v1312
        %2040 = vmatprep.subr.bf16.mxu0 %v1337
        %2041 = vmatpush1.bf16.msra.mxu0 %v1336
        %2042 = vmatprep.subr.bf16.mxu0 %v1361
        %2043 = vmatpush1.bf16.msra.mxu0 %v1360
        %2044 = vmatprep.subr.bf16.mxu0 %v1385
        %2045 = vmatpush1.bf16.msra.mxu0 %v1384
        %2046 = vmatprep.subr.bf16.mxu0 %v1409
        %2047 = vmatpush1.bf16.msra.mxu0 %v1408
        %2048 = vmatprep.subr.bf16.mxu0 0
        %2049 = vmatpush1.bf16.msra.mxu0 0
        %2050 = vmatprep.subr.bf16.mxu0 0
        %2051 = vmatpush1.bf16.msra.mxu0 0
        %2052 = vmatprep.subr.bf16.mxu0 0
        %2053 = vmatpush1.bf16.msra.mxu0 0
        %2054 = vmatprep.subr.bf16.mxu0 0
        %2055 = vmatpush1.bf16.msra.mxu0 0
        %2056 = vmatprep.subr.bf16.mxu0 0
        %2057 = vmatpush1.bf16.msra.mxu0 0
        %2058 = vmatprep.subr.bf16.mxu0 0
        %2059 = vmatpush1.bf16.msra.mxu0 0
        %2060 = vmatprep.subr.bf16.mxu0 0
        %2061 = vmatpush1.bf16.msra.mxu0 0
        %2062 = vmatprep.subr.bf16.mxu0 0
        %2063 = vmatpush1.bf16.msra.mxu0 0
        %2064 = vmatprep.mubr.bf16.mxu0 0
        %2065 = vmatmul.mubr.bf16.gmra.mrb[0].mxu0 %v644
        %v2066 = vpop.f32.mrb[0].mxu0
        %v2067 = vadd.f32 %v583, %v2066
        %v2068 = vpop.f32.mrb[0].mxu0
        %v2069 = vadd.f32 %v587, %v2068
        %v2070 = vpop.f32.mrb[0].mxu0
        %v2071 = vadd.f32 %v583, %v2070
        %v2072 = vpop.f32.mrb[0].mxu0
        %v2073 = vadd.f32 %v587, %v2072
        %2074 = vmatprep.mubr.bf16.mxu0 0
        %2075 = vmatmul.mubr.bf16.gmra.mrb[0].mxu0 %v645
        %v2076 = vpop.f32.mrb[0].mxu0
        %v2077 = vadd.f32 %v583, %v2076
        %v2078 = vpop.f32.mrb[0].mxu0
        %v2079 = vadd.f32 %v587, %v2078
        %v2080 = vpop.f32.mrb[0].mxu0
        %v2081 = vadd.f32 %v583, %v2080
        %v2082 = vpop.f32.mrb[0].mxu0
        %v2083 = vadd.f32 %v587, %v2082
        %2084 = vdwg.mxu0
        %2085 = vmatprep.subr.bf16.mxu0 %v1243
        %2086 = vmatpush1.bf16.msra.mxu0 %v1242
        %2087 = vmatprep.subr.bf16.mxu0 %v1267
        %2088 = vmatpush1.bf16.msra.mxu0 %v1266
        %2089 = vmatprep.subr.bf16.mxu0 %v1291
        %2090 = vmatpush1.bf16.msra.mxu0 %v1290
        %2091 = vmatprep.subr.bf16.mxu0 %v1315
        %2092 = vmatpush1.bf16.msra.mxu0 %v1314
        %2093 = vmatprep.subr.bf16.mxu0 %v1339
        %2094 = vmatpush1.bf16.msra.mxu0 %v1338
        %2095 = vmatprep.subr.bf16.mxu0 %v1363
        %2096 = vmatpush1.bf16.msra.mxu0 %v1362
        %2097 = vmatprep.subr.bf16.mxu0 %v1387
        %2098 = vmatpush1.bf16.msra.mxu0 %v1386
        %2099 = vmatprep.subr.bf16.mxu0 %v1411
        %2100 = vmatpush1.bf16.msra.mxu0 %v1410
        %2101 = vmatprep.subr.bf16.mxu0 0
        %2102 = vmatpush1.bf16.msra.mxu0 0
        %2103 = vmatprep.subr.bf16.mxu0 0
        %2104 = vmatpush1.bf16.msra.mxu0 0
        %2105 = vmatprep.subr.bf16.mxu0 0
        %2106 = vmatpush1.bf16.msra.mxu0 0
        %2107 = vmatprep.subr.bf16.mxu0 0
        %2108 = vmatpush1.bf16.msra.mxu0 0
        %2109 = vmatprep.subr.bf16.mxu0 0
        %2110 = vmatpush1.bf16.msra.mxu0 0
        %2111 = vmatprep.subr.bf16.mxu0 0
        %2112 = vmatpush1.bf16.msra.mxu0 0
        %2113 = vmatprep.subr.bf16.mxu0 0
        %2114 = vmatpush1.bf16.msra.mxu0 0
        %2115 = vmatprep.subr.bf16.mxu0 0
        %2116 = vmatpush1.bf16.msra.mxu0 0
        %2117 = vmatprep.mubr.bf16.mxu0 0
        %2118 = vmatmul.mubr.bf16.gmra.mrb[0].mxu0 %v644
        %v2119 = vpop.f32.mrb[0].mxu0
        %v2120 = vadd.f32 %v591, %v2119
        %v2121 = vpop.f32.mrb[0].mxu0
        %v2122 = vadd.f32 %v595, %v2121
        %v2123 = vpop.f32.mrb[0].mxu0
        %v2124 = vadd.f32 %v591, %v2123
        %v2125 = vpop.f32.mrb[0].mxu0
        %v2126 = vadd.f32 %v595, %v2125
        %2127 = vmatprep.mubr.bf16.mxu0 0
        %2128 = vmatmul.mubr.bf16.gmra.mrb[0].mxu0 %v645
        %v2129 = vpop.f32.mrb[0].mxu0
        %v2130 = vadd.f32 %v591, %v2129
        %v2131 = vpop.f32.mrb[0].mxu0
        %v2132 = vadd.f32 %v595, %v2131
        %v2133 = vpop.f32.mrb[0].mxu0
        %v2134 = vadd.f32 %v591, %v2133
        %v2135 = vpop.f32.mrb[0].mxu0
        %v2136 = vadd.f32 %v595, %v2135
        %2137 = vdwg.mxu0
        %2138 = vmatprep.subr.bf16.mxu0 %v1245
        %2139 = vmatpush1.bf16.msra.mxu0 %v1244
        %2140 = vmatprep.subr.bf16.mxu0 %v1269
        %2141 = vmatpush1.bf16.msra.mxu0 %v1268
        %2142 = vmatprep.subr.bf16.mxu0 %v1293
        %2143 = vmatpush1.bf16.msra.mxu0 %v1292
        %2144 = vmatprep.subr.bf16.mxu0 %v1317
        %2145 = vmatpush1.bf16.msra.mxu0 %v1316
        %2146 = vmatprep.subr.bf16.mxu0 %v1341
        %2147 = vmatpush1.bf16.msra.mxu0 %v1340
        %2148 = vmatprep.subr.bf16.mxu0 %v1365
        %2149 = vmatpush1.bf16.msra.mxu0 %v1364
        %2150 = vmatprep.subr.bf16.mxu0 %v1389
        %2151 = vmatpush1.bf16.msra.mxu0 %v1388
        %2152 = vmatprep.subr.bf16.mxu0 %v1413
        %2153 = vmatpush1.bf16.msra.mxu0 %v1412
        %2154 = vmatprep.subr.bf16.mxu0 0
        %2155 = vmatpush1.bf16.msra.mxu0 0
        %2156 = vmatprep.subr.bf16.mxu0 0
        %2157 = vmatpush1.bf16.msra.mxu0 0
        %2158 = vmatprep.subr.bf16.mxu0 0
        %2159 = vmatpush1.bf16.msra.mxu0 0
        %2160 = vmatprep.subr.bf16.mxu0 0
        %2161 = vmatpush1.bf16.msra.mxu0 0
        %2162 = vmatprep.subr.bf16.mxu0 0
        %2163 = vmatpush1.bf16.msra.mxu0 0
        %2164 = vmatprep.subr.bf16.mxu0 0
        %2165 = vmatpush1.bf16.msra.mxu0 0
        %2166 = vmatprep.subr.bf16.mxu0 0
        %2167 = vmatpush1.bf16.msra.mxu0 0
        %2168 = vmatprep.subr.bf16.mxu0 0
        %2169 = vmatpush1.bf16.msra.mxu0 0
        %2170 = vmatprep.mubr.bf16.mxu0 0
        %2171 = vmatmul.mubr.bf16.gmra.mrb[0].mxu0 %v644
        %v2172 = vpop.f32.mrb[0].mxu0
        %v2173 = vadd.f32 %v599, %v2172
        %v2174 = vpop.f32.mrb[0].mxu0
        %v2175 = vadd.f32 %v603, %v2174
        %v2176 = vpop.f32.mrb[0].mxu0
        %v2177 = vadd.f32 %v599, %v2176
        %v2178 = vpop.f32.mrb[0].mxu0
        %v2179 = vadd.f32 %v603, %v2178
        %2180 = vmatprep.mubr.bf16.mxu0 0
        %2181 = vmatmul.mubr.bf16.gmra.mrb[0].mxu0 %v645
        %v2182 = vpop.f32.mrb[0].mxu0
        %v2183 = vadd.f32 %v599, %v2182
        %v2184 = vpop.f32.mrb[0].mxu0
        %v2185 = vadd.f32 %v603, %v2184
        %v2186 = vpop.f32.mrb[0].mxu0
        %v2187 = vadd.f32 %v599, %v2186
        %v2188 = vpop.f32.mrb[0].mxu0
        %v2189 = vadd.f32 %v603, %v2188
        %2190 = vdwg.mxu0
        %2191 = vmatprep.subr.bf16.mxu0 %v1247
        %2192 = vmatpush1.bf16.msra.mxu0 %v1246
        %2193 = vmatprep.subr.bf16.mxu0 %v1271
        %2194 = vmatpush1.bf16.msra.mxu0 %v1270
        %2195 = vmatprep.subr.bf16.mxu0 %v1295
        %2196 = vmatpush1.bf16.msra.mxu0 %v1294
        %2197 = vmatprep.subr.bf16.mxu0 %v1319
        %2198 = vmatpush1.bf16.msra.mxu0 %v1318
        %2199 = vmatprep.subr.bf16.mxu0 %v1343
        %2200 = vmatpush1.bf16.msra.mxu0 %v1342
        %2201 = vmatprep.subr.bf16.mxu0 %v1367
        %2202 = vmatpush1.bf16.msra.mxu0 %v1366
        %2203 = vmatprep.subr.bf16.mxu0 %v1391
        %2204 = vmatpush1.bf16.msra.mxu0 %v1390
        %2205 = vmatprep.subr.bf16.mxu0 %v1415
        %2206 = vmatpush1.bf16.msra.mxu0 %v1414
        %2207 = vmatprep.subr.bf16.mxu0 0
        %2208 = vmatpush1.bf16.msra.mxu0 0
        %2209 = vmatprep.subr.bf16.mxu0 0
        %2210 = vmatpush1.bf16.msra.mxu0 0
        %2211 = vmatprep.subr.bf16.mxu0 0
        %2212 = vmatpush1.bf16.msra.mxu0 0
        %2213 = vmatprep.subr.bf16.mxu0 0
        %2214 = vmatpush1.bf16.msra.mxu0 0
        %2215 = vmatprep.subr.bf16.mxu0 0
        %2216 = vmatpush1.bf16.msra.mxu0 0
        %2217 = vmatprep.subr.bf16.mxu0 0
        %2218 = vmatpush1.bf16.msra.mxu0 0
        %2219 = vmatprep.subr.bf16.mxu0 0
        %2220 = vmatpush1.bf16.msra.mxu0 0
        %2221 = vmatprep.subr.bf16.mxu0 0
        %2222 = vmatpush1.bf16.msra.mxu0 0
        %2223 = vmatprep.mubr.bf16.mxu0 0
        %2224 = vmatmul.mubr.bf16.gmra.mrb[0].mxu0 %v644
        %v2225 = vpop.f32.mrb[0].mxu0
        %v2226 = vadd.f32 %v607, %v2225
        %v2227 = vpop.f32.mrb[0].mxu0
        %v2228 = vadd.f32 %v611, %v2227
        %v2229 = vpop.f32.mrb[0].mxu0
        %v2230 = vadd.f32 %v607, %v2229
        %v2231 = vpop.f32.mrb[0].mxu0
        %v2232 = vadd.f32 %v611, %v2231
        %2233 = vmatprep.mubr.bf16.mxu0 0
        %2234 = vmatmul.mubr.bf16.gmra.mrb[0].mxu0 %v645
        %v2235 = vpop.f32.mrb[0].mxu0
        %v2236 = vadd.f32 %v607, %v2235
        %v2237 = vpop.f32.mrb[0].mxu0
        %v2238 = vadd.f32 %v611, %v2237
        %v2239 = vpop.f32.mrb[0].mxu0
        %v2240 = vadd.f32 %v607, %v2239
        %v2241 = vpop.f32.mrb[0].mxu0
        %v2242 = vadd.f32 %v611, %v2241
        %2243 = vdwg.mxu0
        %vm2244 = vcmp.gt.f32.partialorder %v1643, 0.0
        %vm2245 = vcmp.gt.f32.partialorder %v1645, 0.0
        %vm2246 = vcmp.gt.f32.partialorder %v1696, 0.0
        %vm2247 = vcmp.gt.f32.partialorder %v1698, 0.0
        %vm2248 = vcmp.gt.f32.partialorder %v1749, 0.0
        %vm2249 = vcmp.gt.f32.partialorder %v1751, 0.0
        %vm2250 = vcmp.gt.f32.partialorder %v1802, 0.0
        %vm2251 = vcmp.gt.f32.partialorder %v1804, 0.0
        %vm2252 = vcmp.gt.f32.partialorder %v1855, 0.0
        %vm2253 = vcmp.gt.f32.partialorder %v1857, 0.0
        %vm2254 = vcmp.gt.f32.partialorder %v1908, 0.0
        %vm2255 = vcmp.gt.f32.partialorder %v1910, 0.0
        %vm2256 = vcmp.gt.f32.partialorder %v1961, 0.0
        %vm2257 = vcmp.gt.f32.partialorder %v1963, 0.0
        %vm2258 = vcmp.gt.f32.partialorder %v2014, 0.0
        %vm2259 = vcmp.gt.f32.partialorder %v2016, 0.0
        %vm2260 = vcmp.gt.f32.partialorder %v2067, 0.0
        %vm2261 = vcmp.gt.f32.partialorder %v2069, 0.0
        %vm2262 = vcmp.gt.f32.partialorder %v2120, 0.0
        %vm2263 = vcmp.gt.f32.partialorder %v2122, 0.0
        %vm2264 = vcmp.gt.f32.partialorder %v2173, 0.0
        %vm2265 = vcmp.gt.f32.partialorder %v2175, 0.0
        %vm2266 = vcmp.gt.f32.partialorder %v2226, 0.0
        %vm2267 = vcmp.gt.f32.partialorder %v2228, 0.0
        %vm2268 = vcmp.gt.f32.partialorder %v1647, 0.0
        %vm2269 = vcmp.gt.f32.partialorder %v1649, 0.0
        %vm2270 = vcmp.gt.f32.partialorder %v1700, 0.0
        %vm2271 = vcmp.gt.f32.partialorder %v1702, 0.0
        %vm2272 = vcmp.gt.f32.partialorder %v1753, 0.0
        %vm2273 = vcmp.gt.f32.partialorder %v1755, 0.0
        %vm2274 = vcmp.gt.f32.partialorder %v1806, 0.0
        %vm2275 = vcmp.gt.f32.partialorder %v1808, 0.0
        %vm2276 = vcmp.gt.f32.partialorder %v1859, 0.0
        %vm2277 = vcmp.gt.f32.partialorder %v1861, 0.0
        %vm2278 = vcmp.gt.f32.partialorder %v1912, 0.0
        %vm2279 = vcmp.gt.f32.partialorder %v1914, 0.0
        %vm2280 = vcmp.gt.f32.partialorder %v1965, 0.0
        %vm2281 = vcmp.gt.f32.partialorder %v1967, 0.0
        %vm2282 = vcmp.gt.f32.partialorder %v2018, 0.0
        %vm2283 = vcmp.gt.f32.partialorder %v2020, 0.0
        %vm2284 = vcmp.gt.f32.partialorder %v2071, 0.0
        %vm2285 = vcmp.gt.f32.partialorder %v2073, 0.0
        %vm2286 = vcmp.gt.f32.partialorder %v2124, 0.0
        %vm2287 = vcmp.gt.f32.partialorder %v2126, 0.0
        %vm2288 = vcmp.gt.f32.partialorder %v2177, 0.0
        %vm2289 = vcmp.gt.f32.partialorder %v2179, 0.0
        %vm2290 = vcmp.gt.f32.partialorder %v2230, 0.0
        %vm2291 = vcmp.gt.f32.partialorder %v2232, 0.0
        %vm2292 = vcmp.gt.f32.partialorder %v1653, 0.0
        %vm2293 = vcmp.gt.f32.partialorder %v1655, 0.0
        %vm2294 = vcmp.gt.f32.partialorder %v1706, 0.0
        %vm2295 = vcmp.gt.f32.partialorder %v1708, 0.0
        %vm2296 = vcmp.gt.f32.partialorder %v1759, 0.0
        %vm2297 = vcmp.gt.f32.partialorder %v1761, 0.0
        %vm2298 = vcmp.gt.f32.partialorder %v1812, 0.0
        %vm2299 = vcmp.gt.f32.partialorder %v1814, 0.0
        %vm2300 = vcmp.gt.f32.partialorder %v1865, 0.0
        %vm2301 = vcmp.gt.f32.partialorder %v1867, 0.0
        %vm2302 = vcmp.gt.f32.partialorder %v1918, 0.0
        %vm2303 = vcmp.gt.f32.partialorder %v1920, 0.0
        %vm2304 = vcmp.gt.f32.partialorder %v1971, 0.0
        %vm2305 = vcmp.gt.f32.partialorder %v1973, 0.0
        %vm2306 = vcmp.gt.f32.partialorder %v2024, 0.0
        %vm2307 = vcmp.gt.f32.partialorder %v2026, 0.0
        %vm2308 = vcmp.gt.f32.partialorder %v2077, 0.0
        %vm2309 = vcmp.gt.f32.partialorder %v2079, 0.0
        %vm2310 = vcmp.gt.f32.partialorder %v2130, 0.0
        %vm2311 = vcmp.gt.f32.partialorder %v2132, 0.0
        %vm2312 = vcmp.gt.f32.partialorder %v2183, 0.0
        %vm2313 = vcmp.gt.f32.partialorder %v2185, 0.0
        %vm2314 = vcmp.gt.f32.partialorder %v2236, 0.0
        %vm2315 = vcmp.gt.f32.partialorder %v2238, 0.0
        %vm2316 = vcmp.gt.f32.partialorder %v1657, 0.0
        %vm2317 = vcmp.gt.f32.partialorder %v1659, 0.0
        %vm2318 = vcmp.gt.f32.partialorder %v1710, 0.0
        %vm2319 = vcmp.gt.f32.partialorder %v1712, 0.0
        %vm2320 = vcmp.gt.f32.partialorder %v1763, 0.0
        %vm2321 = vcmp.gt.f32.partialorder %v1765, 0.0
        %vm2322 = vcmp.gt.f32.partialorder %v1816, 0.0
        %vm2323 = vcmp.gt.f32.partialorder %v1818, 0.0
        %vm2324 = vcmp.gt.f32.partialorder %v1869, 0.0
        %vm2325 = vcmp.gt.f32.partialorder %v1871, 0.0
        %vm2326 = vcmp.gt.f32.partialorder %v1922, 0.0
        %vm2327 = vcmp.gt.f32.partialorder %v1924, 0.0
        %vm2328 = vcmp.gt.f32.partialorder %v1975, 0.0
        %vm2329 = vcmp.gt.f32.partialorder %v1977, 0.0
        %vm2330 = vcmp.gt.f32.partialorder %v2028, 0.0
        %vm2331 = vcmp.gt.f32.partialorder %v2030, 0.0
        %vm2332 = vcmp.gt.f32.partialorder %v2081, 0.0
        %vm2333 = vcmp.gt.f32.partialorder %v2083, 0.0
        %vm2334 = vcmp.gt.f32.partialorder %v2134, 0.0
        %vm2335 = vcmp.gt.f32.partialorder %v2136, 0.0
        %vm2336 = vcmp.gt.f32.partialorder %v2187, 0.0
        %vm2337 = vcmp.gt.f32.partialorder %v2189, 0.0
        %vm2338 = vcmp.gt.f32.partialorder %v2240, 0.0
        %vm2339 = vcmp.gt.f32.partialorder %v2242, 0.0
        %v2340 = vmin.f32 %v1643, 0.0
        %v2341 = vmin.f32 %v1645, 0.0
        %v2342 = vmin.f32 %v1696, 0.0
        %v2343 = vmin.f32 %v1698, 0.0
        %v2344 = vmin.f32 %v1749, 0.0
        %v2345 = vmin.f32 %v1751, 0.0
        %v2346 = vmin.f32 %v1802, 0.0
        %v2347 = vmin.f32 %v1804, 0.0
        %v2348 = vmin.f32 %v1855, 0.0
        %v2349 = vmin.f32 %v1857, 0.0
        %v2350 = vmin.f32 %v1908, 0.0
        %v2351 = vmin.f32 %v1910, 0.0
        %v2352 = vmin.f32 %v1961, 0.0
        %v2353 = vmin.f32 %v1963, 0.0
        %v2354 = vmin.f32 %v2014, 0.0
        %v2355 = vmin.f32 %v2016, 0.0
        %v2356 = vmin.f32 %v2067, 0.0
        %v2357 = vmin.f32 %v2069, 0.0
        %v2358 = vmin.f32 %v2120, 0.0
        %v2359 = vmin.f32 %v2122, 0.0
        %v2360 = vmin.f32 %v2173, 0.0
        %v2361 = vmin.f32 %v2175, 0.0
        %v2362 = vmin.f32 %v2226, 0.0
        %v2363 = vmin.f32 %v2228, 0.0
        %v2364 = vmin.f32 %v1647, 0.0
        %v2365 = vmin.f32 %v1649, 0.0
        %v2366 = vmin.f32 %v1700, 0.0
        %v2367 = vmin.f32 %v1702, 0.0
        %v2368 = vmin.f32 %v1753, 0.0
        %v2369 = vmin.f32 %v1755, 0.0
        %v2370 = vmin.f32 %v1806, 0.0
        %v2371 = vmin.f32 %v1808, 0.0
        %v2372 = vmin.f32 %v1859, 0.0
        %v2373 = vmin.f32 %v1861, 0.0
        %v2374 = vmin.f32 %v1912, 0.0
        %v2375 = vmin.f32 %v1914, 0.0
        %v2376 = vmin.f32 %v1965, 0.0
        %v2377 = vmin.f32 %v1967, 0.0
        %v2378 = vmin.f32 %v2018, 0.0
        %v2379 = vmin.f32 %v2020, 0.0
        %v2380 = vmin.f32 %v2071, 0.0
        %v2381 = vmin.f32 %v2073, 0.0
        %v2382 = vmin.f32 %v2124, 0.0
        %v2383 = vmin.f32 %v2126, 0.0
        %v2384 = vmin.f32 %v2177, 0.0
        %v2385 = vmin.f32 %v2179, 0.0
        %v2386 = vmin.f32 %v2230, 0.0
        %v2387 = vmin.f32 %v2232, 0.0
        %v2388 = vmin.f32 %v1653, 0.0
        %v2389 = vmin.f32 %v1655, 0.0
        %v2390 = vmin.f32 %v1706, 0.0
        %v2391 = vmin.f32 %v1708, 0.0
        %v2392 = vmin.f32 %v1759, 0.0
        %v2393 = vmin.f32 %v1761, 0.0
        %v2394 = vmin.f32 %v1812, 0.0
        %v2395 = vmin.f32 %v1814, 0.0
        %v2396 = vmin.f32 %v1865, 0.0
        %v2397 = vmin.f32 %v1867, 0.0
        %v2398 = vmin.f32 %v1918, 0.0
        %v2399 = vmin.f32 %v1920, 0.0
        %v2400 = vmin.f32 %v1971, 0.0
        %v2401 = vmin.f32 %v1973, 0.0
        %v2402 = vmin.f32 %v2024, 0.0
        %v2403 = vmin.f32 %v2026, 0.0
        %v2404 = vmin.f32 %v2077, 0.0
        %v2405 = vmin.f32 %v2079, 0.0
        %v2406 = vmin.f32 %v2130, 0.0
        %v2407 = vmin.f32 %v2132, 0.0
        %v2408 = vmin.f32 %v2183, 0.0
        %v2409 = vmin.f32 %v2185, 0.0
        %v2410 = vmin.f32 %v2236, 0.0
        %v2411 = vmin.f32 %v2238, 0.0
        %v2412 = vmin.f32 %v1657, 0.0
        %v2413 = vmin.f32 %v1659, 0.0
        %v2414 = vmin.f32 %v1710, 0.0
        %v2415 = vmin.f32 %v1712, 0.0
        %v2416 = vmin.f32 %v1763, 0.0
        %v2417 = vmin.f32 %v1765, 0.0
        %v2418 = vmin.f32 %v1816, 0.0
        %v2419 = vmin.f32 %v1818, 0.0
        %v2420 = vmin.f32 %v1869, 0.0
        %v2421 = vmin.f32 %v1871, 0.0
        %v2422 = vmin.f32 %v1922, 0.0
        %v2423 = vmin.f32 %v1924, 0.0
        %v2424 = vmin.f32 %v1975, 0.0
        %v2425 = vmin.f32 %v1977, 0.0
        %v2426 = vmin.f32 %v2028, 0.0
        %v2427 = vmin.f32 %v2030, 0.0
        %v2428 = vmin.f32 %v2081, 0.0
        %v2429 = vmin.f32 %v2083, 0.0
        %v2430 = vmin.f32 %v2134, 0.0
        %v2431 = vmin.f32 %v2136, 0.0
        %v2432 = vmin.f32 %v2187, 0.0
        %v2433 = vmin.f32 %v2189, 0.0
        %v2434 = vmin.f32 %v2240, 0.0
        %v2435 = vmin.f32 %v2242, 0.0
        %v2436 = vmul.f32 %v2340, 1.442695
        %v2437 = vpow.pop %v2436
        %v2438 = vmul.f32 %v2341, 1.442695
        %v2439 = vpow.pop %v2438
        %v2440 = vmul.f32 %v2342, 1.442695
        %v2441 = vpow.pop %v2440
        %v2442 = vmul.f32 %v2343, 1.442695
        %v2443 = vpow.pop %v2442
        %v2444 = vmul.f32 %v2344, 1.442695
        %v2445 = vpow.pop %v2444
        %v2446 = vmul.f32 %v2345, 1.442695
        %v2447 = vpow.pop %v2446
        %v2448 = vmul.f32 %v2346, 1.442695
        %v2449 = vpow.pop %v2448
        %v2450 = vmul.f32 %v2347, 1.442695
        %v2451 = vpow.pop %v2450
        %v2452 = vmul.f32 %v2348, 1.442695
        %v2453 = vpow.pop %v2452
        %v2454 = vmul.f32 %v2349, 1.442695
        %v2455 = vpow.pop %v2454
        %v2456 = vmul.f32 %v2350, 1.442695
        %v2457 = vpow.pop %v2456
        %v2458 = vmul.f32 %v2351, 1.442695
        %v2459 = vpow.pop %v2458
        %v2460 = vmul.f32 %v2352, 1.442695
        %v2461 = vpow.pop %v2460
        %v2462 = vmul.f32 %v2353, 1.442695
        %v2463 = vpow.pop %v2462
        %v2464 = vmul.f32 %v2354, 1.442695
        %v2465 = vpow.pop %v2464
        %v2466 = vmul.f32 %v2355, 1.442695
        %v2467 = vpow.pop %v2466
        %v2468 = vmul.f32 %v2356, 1.442695
        %v2469 = vpow.pop %v2468
        %v2470 = vmul.f32 %v2357, 1.442695
        %v2471 = vpow.pop %v2470
        %v2472 = vmul.f32 %v2358, 1.442695
        %v2473 = vpow.pop %v2472
        %v2474 = vmul.f32 %v2359, 1.442695
        %v2475 = vpow.pop %v2474
        %v2476 = vmul.f32 %v2360, 1.442695
        %v2477 = vpow.pop %v2476
        %v2478 = vmul.f32 %v2361, 1.442695
        %v2479 = vpow.pop %v2478
        %v2480 = vmul.f32 %v2362, 1.442695
        %v2481 = vpow.pop %v2480
        %v2482 = vmul.f32 %v2363, 1.442695
        %v2483 = vpow.pop %v2482
        %v2484 = vmul.f32 %v2364, 1.442695
        %v2485 = vpow.pop %v2484
        %v2486 = vmul.f32 %v2365, 1.442695
        %v2487 = vpow.pop %v2486
        %v2488 = vmul.f32 %v2366, 1.442695
        %v2489 = vpow.pop %v2488
        %v2490 = vmul.f32 %v2367, 1.442695
        %v2491 = vpow.pop %v2490
        %v2492 = vmul.f32 %v2368, 1.442695
        %v2493 = vpow.pop %v2492
        %v2494 = vmul.f32 %v2369, 1.442695
        %v2495 = vpow.pop %v2494
        %v2496 = vmul.f32 %v2370, 1.442695
        %v2497 = vpow.pop %v2496
        %v2498 = vmul.f32 %v2371, 1.442695
        %v2499 = vpow.pop %v2498
        %v2500 = vmul.f32 %v2372, 1.442695
        %v2501 = vpow.pop %v2500
        %v2502 = vmul.f32 %v2373, 1.442695
        %v2503 = vpow.pop %v2502
        %v2504 = vmul.f32 %v2374, 1.442695
        %v2505 = vpow.pop %v2504
        %v2506 = vmul.f32 %v2375, 1.442695
        %v2507 = vpow.pop %v2506
        %v2508 = vmul.f32 %v2376, 1.442695
        %v2509 = vpow.pop %v2508
        %v2510 = vmul.f32 %v2377, 1.442695
        %v2511 = vpow.pop %v2510
        %v2512 = vmul.f32 %v2378, 1.442695
        %v2513 = vpow.pop %v2512
        %v2514 = vmul.f32 %v2379, 1.442695
        %v2515 = vpow.pop %v2514
        %v2516 = vmul.f32 %v2380, 1.442695
        %v2517 = vpow.pop %v2516
        %v2518 = vmul.f32 %v2381, 1.442695
        %v2519 = vpow.pop %v2518
        %v2520 = vmul.f32 %v2382, 1.442695
        %v2521 = vpow.pop %v2520
        %v2522 = vmul.f32 %v2383, 1.442695
        %v2523 = vpow.pop %v2522
        %v2524 = vmul.f32 %v2384, 1.442695
        %v2525 = vpow.pop %v2524
        %v2526 = vmul.f32 %v2385, 1.442695
        %v2527 = vpow.pop %v2526
        %v2528 = vmul.f32 %v2386, 1.442695
        %v2529 = vpow.pop %v2528
        %v2530 = vmul.f32 %v2387, 1.442695
        %v2531 = vpow.pop %v2530
        %v2532 = vmul.f32 %v2388, 1.442695
        %v2533 = vpow.pop %v2532
        %v2534 = vmul.f32 %v2389, 1.442695
        %v2535 = vpow.pop %v2534
        %v2536 = vmul.f32 %v2390, 1.442695
        %v2537 = vpow.pop %v2536
        %v2538 = vmul.f32 %v2391, 1.442695
        %v2539 = vpow.pop %v2538
        %v2540 = vmul.f32 %v2392, 1.442695
        %v2541 = vpow.pop %v2540
        %v2542 = vmul.f32 %v2393, 1.442695
        %v2543 = vpow.pop %v2542
        %v2544 = vmul.f32 %v2394, 1.442695
        %v2545 = vpow.pop %v2544
        %v2546 = vmul.f32 %v2395, 1.442695
        %v2547 = vpow.pop %v2546
        %v2548 = vmul.f32 %v2396, 1.442695
        %v2549 = vpow.pop %v2548
        %v2550 = vmul.f32 %v2397, 1.442695
        %v2551 = vpow.pop %v2550
        %v2552 = vmul.f32 %v2398, 1.442695
        %v2553 = vpow.pop %v2552
        %v2554 = vmul.f32 %v2399, 1.442695
        %v2555 = vpow.pop %v2554
        %v2556 = vmul.f32 %v2400, 1.442695
        %v2557 = vpow.pop %v2556
        %v2558 = vmul.f32 %v2401, 1.442695
        %v2559 = vpow.pop %v2558
        %v2560 = vmul.f32 %v2402, 1.442695
        %v2561 = vpow.pop %v2560
        %v2562 = vmul.f32 %v2403, 1.442695
        %v2563 = vpow.pop %v2562
        %v2564 = vmul.f32 %v2404, 1.442695
        %v2565 = vpow.pop %v2564
        %v2566 = vmul.f32 %v2405, 1.442695
        %v2567 = vpow.pop %v2566
        %v2568 = vmul.f32 %v2406, 1.442695
        %v2569 = vpow.pop %v2568
        %v2570 = vmul.f32 %v2407, 1.442695
        %v2571 = vpow.pop %v2570
        %v2572 = vmul.f32 %v2408, 1.442695
        %v2573 = vpow.pop %v2572
        %v2574 = vmul.f32 %v2409, 1.442695
        %v2575 = vpow.pop %v2574
        %v2576 = vmul.f32 %v2410, 1.442695
        %v2577 = vpow.pop %v2576
        %v2578 = vmul.f32 %v2411, 1.442695
        %v2579 = vpow.pop %v2578
        %v2580 = vmul.f32 %v2412, 1.442695
        %v2581 = vpow.pop %v2580
        %v2582 = vmul.f32 %v2413, 1.442695
        %v2583 = vpow.pop %v2582
        %v2584 = vmul.f32 %v2414, 1.442695
        %v2585 = vpow.pop %v2584
        %v2586 = vmul.f32 %v2415, 1.442695
        %v2587 = vpow.pop %v2586
        %v2588 = vmul.f32 %v2416, 1.442695
        %v2589 = vpow.pop %v2588
        %v2590 = vmul.f32 %v2417, 1.442695
        %v2591 = vpow.pop %v2590
        %v2592 = vmul.f32 %v2418, 1.442695
        %v2593 = vpow.pop %v2592
        %v2594 = vmul.f32 %v2419, 1.442695
        %v2595 = vpow.pop %v2594
        %v2596 = vmul.f32 %v2420, 1.442695
        %v2597 = vpow.pop %v2596
        %v2598 = vmul.f32 %v2421, 1.442695
        %v2599 = vpow.pop %v2598
        %v2600 = vmul.f32 %v2422, 1.442695
        %v2601 = vpow.pop %v2600
        %v2602 = vmul.f32 %v2423, 1.442695
        %v2603 = vpow.pop %v2602
        %v2604 = vmul.f32 %v2424, 1.442695
        %v2605 = vpow.pop %v2604
        %v2606 = vmul.f32 %v2425, 1.442695
        %v2607 = vpow.pop %v2606
        %v2608 = vmul.f32 %v2426, 1.442695
        %v2609 = vpow.pop %v2608
        %v2610 = vmul.f32 %v2427, 1.442695
        %v2611 = vpow.pop %v2610
        %v2612 = vmul.f32 %v2428, 1.442695
        %v2613 = vpow.pop %v2612
        %v2614 = vmul.f32 %v2429, 1.442695
        %v2615 = vpow.pop %v2614
        %v2616 = vmul.f32 %v2430, 1.442695
        %v2617 = vpow.pop %v2616
        %v2618 = vmul.f32 %v2431, 1.442695
        %v2619 = vpow.pop %v2618
        %v2620 = vmul.f32 %v2432, 1.442695
        %v2621 = vpow.pop %v2620
        %v2622 = vmul.f32 %v2433, 1.442695
        %v2623 = vpow.pop %v2622
        %v2624 = vmul.f32 %v2434, 1.442695
        %v2625 = vpow.pop %v2624
        %v2626 = vmul.f32 %v2435, 1.442695
        %v2627 = vpow.pop %v2626
        %v2628 = vsub.f32 %v2437, 1.0
        %v2629 = vsub.f32 %v2439, 1.0
        %v2630 = vsub.f32 %v2441, 1.0
        %v2631 = vsub.f32 %v2443, 1.0
        %v2632 = vsub.f32 %v2445, 1.0
        %v2633 = vsub.f32 %v2447, 1.0
        %v2634 = vsub.f32 %v2449, 1.0
        %v2635 = vsub.f32 %v2451, 1.0
        %v2636 = vsub.f32 %v2453, 1.0
        %v2637 = vsub.f32 %v2455, 1.0
        %v2638 = vsub.f32 %v2457, 1.0
        %v2639 = vsub.f32 %v2459, 1.0
        %v2640 = vsub.f32 %v2461, 1.0
        %v2641 = vsub.f32 %v2463, 1.0
        %v2642 = vsub.f32 %v2465, 1.0
        %v2643 = vsub.f32 %v2467, 1.0
        %v2644 = vsub.f32 %v2469, 1.0
        %v2645 = vsub.f32 %v2471, 1.0
        %v2646 = vsub.f32 %v2473, 1.0
        %v2647 = vsub.f32 %v2475, 1.0
        %v2648 = vsub.f32 %v2477, 1.0
        %v2649 = vsub.f32 %v2479, 1.0
        %v2650 = vsub.f32 %v2481, 1.0
        %v2651 = vsub.f32 %v2483, 1.0
        %v2652 = vsub.f32 %v2485, 1.0
        %v2653 = vsub.f32 %v2487, 1.0
        %v2654 = vsub.f32 %v2489, 1.0
        %v2655 = vsub.f32 %v2491, 1.0
        %v2656 = vsub.f32 %v2493, 1.0
        %v2657 = vsub.f32 %v2495, 1.0
        %v2658 = vsub.f32 %v2497, 1.0
        %v2659 = vsub.f32 %v2499, 1.0
        %v2660 = vsub.f32 %v2501, 1.0
        %v2661 = vsub.f32 %v2503, 1.0
        %v2662 = vsub.f32 %v2505, 1.0
        %v2663 = vsub.f32 %v2507, 1.0
        %v2664 = vsub.f32 %v2509, 1.0
        %v2665 = vsub.f32 %v2511, 1.0
        %v2666 = vsub.f32 %v2513, 1.0
        %v2667 = vsub.f32 %v2515, 1.0
        %v2668 = vsub.f32 %v2517, 1.0
        %v2669 = vsub.f32 %v2519, 1.0
        %v2670 = vsub.f32 %v2521, 1.0
        %v2671 = vsub.f32 %v2523, 1.0
        %v2672 = vsub.f32 %v2525, 1.0
        %v2673 = vsub.f32 %v2527, 1.0
        %v2674 = vsub.f32 %v2529, 1.0
        %v2675 = vsub.f32 %v2531, 1.0
        %v2676 = vsub.f32 %v2533, 1.0
        %v2677 = vsub.f32 %v2535, 1.0
        %v2678 = vsub.f32 %v2537, 1.0
        %v2679 = vsub.f32 %v2539, 1.0
        %v2680 = vsub.f32 %v2541, 1.0
        %v2681 = vsub.f32 %v2543, 1.0
        %v2682 = vsub.f32 %v2545, 1.0
        %v2683 = vsub.f32 %v2547, 1.0
        %v2684 = vsub.f32 %v2549, 1.0
        %v2685 = vsub.f32 %v2551, 1.0
        %v2686 = vsub.f32 %v2553, 1.0
        %v2687 = vsub.f32 %v2555, 1.0
        %v2688 = vsub.f32 %v2557, 1.0
        %v2689 = vsub.f32 %v2559, 1.0
        %v2690 = vsub.f32 %v2561, 1.0
        %v2691 = vsub.f32 %v2563, 1.0
        %v2692 = vsub.f32 %v2565, 1.0
        %v2693 = vsub.f32 %v2567, 1.0
        %v2694 = vsub.f32 %v2569, 1.0
        %v2695 = vsub.f32 %v2571, 1.0
        %v2696 = vsub.f32 %v2573, 1.0
        %v2697 = vsub.f32 %v2575, 1.0
        %v2698 = vsub.f32 %v2577, 1.0
        %v2699 = vsub.f32 %v2579, 1.0
        %v2700 = vsub.f32 %v2581, 1.0
        %v2701 = vsub.f32 %v2583, 1.0
        %v2702 = vsub.f32 %v2585, 1.0
        %v2703 = vsub.f32 %v2587, 1.0
        %v2704 = vsub.f32 %v2589, 1.0
        %v2705 = vsub.f32 %v2591, 1.0
        %v2706 = vsub.f32 %v2593, 1.0
        %v2707 = vsub.f32 %v2595, 1.0
        %v2708 = vsub.f32 %v2597, 1.0
        %v2709 = vsub.f32 %v2599, 1.0
        %v2710 = vsub.f32 %v2601, 1.0
        %v2711 = vsub.f32 %v2603, 1.0
        %v2712 = vsub.f32 %v2605, 1.0
        %v2713 = vsub.f32 %v2607, 1.0
        %v2714 = vsub.f32 %v2609, 1.0
        %v2715 = vsub.f32 %v2611, 1.0
        %v2716 = vsub.f32 %v2613, 1.0
        %v2717 = vsub.f32 %v2615, 1.0
        %v2718 = vsub.f32 %v2617, 1.0
        %v2719 = vsub.f32 %v2619, 1.0
        %v2720 = vsub.f32 %v2621, 1.0
        %v2721 = vsub.f32 %v2623, 1.0
        %v2722 = vsub.f32 %v2625, 1.0
        %v2723 = vsub.f32 %v2627, 1.0
        %v2724 = vsel %vm2244, %v1643, %v2628
        %v2725 = vsel %vm2245, %v1645, %v2629
        %v2726 = vsel %vm2246, %v1696, %v2630
        %v2727 = vsel %vm2247, %v1698, %v2631
        %v2728 = vsel %vm2248, %v1749, %v2632
        %v2729 = vsel %vm2249, %v1751, %v2633
        %v2730 = vsel %vm2250, %v1802, %v2634
        %v2731 = vsel %vm2251, %v1804, %v2635
        %v2732 = vsel %vm2252, %v1855, %v2636
        %v2733 = vsel %vm2253, %v1857, %v2637
        %v2734 = vsel %vm2254, %v1908, %v2638
        %v2735 = vsel %vm2255, %v1910, %v2639
        %v2736 = vsel %vm2256, %v1961, %v2640
        %v2737 = vsel %vm2257, %v1963, %v2641
        %v2738 = vsel %vm2258, %v2014, %v2642
        %v2739 = vsel %vm2259, %v2016, %v2643
        %v2740 = vsel %vm2260, %v2067, %v2644
        %v2741 = vsel %vm2261, %v2069, %v2645
        %v2742 = vsel %vm2262, %v2120, %v2646
        %v2743 = vsel %vm2263, %v2122, %v2647
        %v2744 = vsel %vm2264, %v2173, %v2648
        %v2745 = vsel %vm2265, %v2175, %v2649
        %v2746 = vsel %vm2266, %v2226, %v2650
        %v2747 = vsel %vm2267, %v2228, %v2651
        %v2748 = vsel %vm2268, %v1647, %v2652
        %v2749 = vsel %vm2269, %v1649, %v2653
        %v2750 = vsel %vm2270, %v1700, %v2654
        %v2751 = vsel %vm2271, %v1702, %v2655
        %v2752 = vsel %vm2272, %v1753, %v2656
        %v2753 = vsel %vm2273, %v1755, %v2657
        %v2754 = vsel %vm2274, %v1806, %v2658
        %v2755 = vsel %vm2275, %v1808, %v2659
        %v2756 = vsel %vm2276, %v1859, %v2660
        %v2757 = vsel %vm2277, %v1861, %v2661
        %v2758 = vsel %vm2278, %v1912, %v2662
        %v2759 = vsel %vm2279, %v1914, %v2663
        %v2760 = vsel %vm2280, %v1965, %v2664
        %v2761 = vsel %vm2281, %v1967, %v2665
        %v2762 = vsel %vm2282, %v2018, %v2666
        %v2763 = vsel %vm2283, %v2020, %v2667
        %v2764 = vsel %vm2284, %v2071, %v2668
        %v2765 = vsel %vm2285, %v2073, %v2669
        %v2766 = vsel %vm2286, %v2124, %v2670
        %v2767 = vsel %vm2287, %v2126, %v2671
        %v2768 = vsel %vm2288, %v2177, %v2672
        %v2769 = vsel %vm2289, %v2179, %v2673
        %v2770 = vsel %vm2290, %v2230, %v2674
        %v2771 = vsel %vm2291, %v2232, %v2675
        %v2772 = vsel %vm2292, %v1653, %v2676
        %v2773 = vsel %vm2293, %v1655, %v2677
        %v2774 = vsel %vm2294, %v1706, %v2678
        %v2775 = vsel %vm2295, %v1708, %v2679
        %v2776 = vsel %vm2296, %v1759, %v2680
        %v2777 = vsel %vm2297, %v1761, %v2681
        %v2778 = vsel %vm2298, %v1812, %v2682
        %v2779 = vsel %vm2299, %v1814, %v2683
        %v2780 = vsel %vm2300, %v1865, %v2684
        %v2781 = vsel %vm2301, %v1867, %v2685
        %v2782 = vsel %vm2302, %v1918, %v2686
        %v2783 = vsel %vm2303, %v1920, %v2687
        %v2784 = vsel %vm2304, %v1971, %v2688
        %v2785 = vsel %vm2305, %v1973, %v2689
        %v2786 = vsel %vm2306, %v2024, %v2690
        %v2787 = vsel %vm2307, %v2026, %v2691
        %v2788 = vsel %vm2308, %v2077, %v2692
        %v2789 = vsel %vm2309, %v2079, %v2693
        %v2790 = vsel %vm2310, %v2130, %v2694
        %v2791 = vsel %vm2311, %v2132, %v2695
        %v2792 = vsel %vm2312, %v2183, %v2696
        %v2793 = vsel %vm2313, %v2185, %v2697
        %v2794 = vsel %vm2314, %v2236, %v2698
        %v2795 = vsel %vm2315, %v2238, %v2699
        %v2796 = vsel %vm2316, %v1657, %v2700
        %v2797 = vsel %vm2317, %v1659, %v2701
        %v2798 = vsel %vm2318, %v1710, %v2702
        %v2799 = vsel %vm2319, %v1712, %v2703
        %v2800 = vsel %vm2320, %v1763, %v2704
        %v2801 = vsel %vm2321, %v1765, %v2705
        %v2802 = vsel %vm2322, %v1816, %v2706
        %v2803 = vsel %vm2323, %v1818, %v2707
        %v2804 = vsel %vm2324, %v1869, %v2708
        %v2805 = vsel %vm2325, %v1871, %v2709
        %v2806 = vsel %vm2326, %v1922, %v2710
        %v2807 = vsel %vm2327, %v1924, %v2711
        %v2808 = vsel %vm2328, %v1975, %v2712
        %v2809 = vsel %vm2329, %v1977, %v2713
        %v2810 = vsel %vm2330, %v2028, %v2714
        %v2811 = vsel %vm2331, %v2030, %v2715
        %v2812 = vsel %vm2332, %v2081, %v2716
        %v2813 = vsel %vm2333, %v2083, %v2717
        %v2814 = vsel %vm2334, %v2134, %v2718
        %v2815 = vsel %vm2335, %v2136, %v2719
        %v2816 = vsel %vm2336, %v2187, %v2720
        %v2817 = vsel %vm2337, %v2189, %v2721
        %v2818 = vsel %vm2338, %v2240, %v2722
        %v2819 = vsel %vm2339, %v2242, %v2723
        %v2820 = vpack.c.bf16 %v2725, %v2724
        %v2821 = vpack.c.bf16 %v2749, %v2748
        %v2822 = vpack.c.bf16 %v2773, %v2772
        %v2823 = vpack.c.bf16 %v2797, %v2796
        %v2824 = vpack.c.bf16 %v2727, %v2726
        %v2825 = vpack.c.bf16 %v2751, %v2750
        %v2826 = vpack.c.bf16 %v2775, %v2774
        %v2827 = vpack.c.bf16 %v2799, %v2798
        %v2828 = vpack.c.bf16 %v2729, %v2728
        %v2829 = vpack.c.bf16 %v2753, %v2752
        %v2830 = vpack.c.bf16 %v2777, %v2776
        %v2831 = vpack.c.bf16 %v2801, %v2800
        %v2832 = vpack.c.bf16 %v2731, %v2730
        %v2833 = vpack.c.bf16 %v2755, %v2754
        %v2834 = vpack.c.bf16 %v2779, %v2778
        %v2835 = vpack.c.bf16 %v2803, %v2802
        %v2836 = vpack.c.bf16 %v2733, %v2732
        %v2837 = vpack.c.bf16 %v2757, %v2756
        %v2838 = vpack.c.bf16 %v2781, %v2780
        %v2839 = vpack.c.bf16 %v2805, %v2804
        %v2840 = vpack.c.bf16 %v2735, %v2734
        %v2841 = vpack.c.bf16 %v2759, %v2758
        %v2842 = vpack.c.bf16 %v2783, %v2782
        %v2843 = vpack.c.bf16 %v2807, %v2806
        %v2844 = vpack.c.bf16 %v2737, %v2736
        %v2845 = vpack.c.bf16 %v2761, %v2760
        %v2846 = vpack.c.bf16 %v2785, %v2784
        %v2847 = vpack.c.bf16 %v2809, %v2808
        %v2848 = vpack.c.bf16 %v2739, %v2738
        %v2849 = vpack.c.bf16 %v2763, %v2762
        %v2850 = vpack.c.bf16 %v2787, %v2786
        %v2851 = vpack.c.bf16 %v2811, %v2810
        %v2852 = vpack.c.bf16 %v2741, %v2740
        %v2853 = vpack.c.bf16 %v2765, %v2764
        %v2854 = vpack.c.bf16 %v2789, %v2788
        %v2855 = vpack.c.bf16 %v2813, %v2812
        %v2856 = vpack.c.bf16 %v2743, %v2742
        %v2857 = vpack.c.bf16 %v2767, %v2766
        %v2858 = vpack.c.bf16 %v2791, %v2790
        %v2859 = vpack.c.bf16 %v2815, %v2814
        %v2860 = vpack.c.bf16 %v2745, %v2744
        %v2861 = vpack.c.bf16 %v2769, %v2768
        %v2862 = vpack.c.bf16 %v2793, %v2792
        %v2863 = vpack.c.bf16 %v2817, %v2816
        %v2864 = vpack.c.bf16 %v2747, %v2746
        %v2865 = vpack.c.bf16 %v2771, %v2770
        %v2866 = vpack.c.bf16 %v2795, %v2794
        %v2867 = vpack.c.bf16 %v2819, %v2818
        %v2868 = vld [vmem:[%s3] sm:$0xff]
        %v2869 = vld [vmem:[%s3 + $0x8] sm:$0xff]
        %v2870 = vld [vmem:[%s3 + $0x10] sm:$0xff]
        %v2871 = vld [vmem:[%s3 + $0x18] sm:$0xff]
        %v2872 = vld [vmem:[%s3 + $0x20] sm:$0xff]
        %v2873 = vld [vmem:[%s3 + $0x28] sm:$0xff]
        %v2874 = vld [vmem:[%s4] sm:$0xff]
        %v2875 = vld [vmem:[%s4 + $0x8] sm:$0xff]
        %v2876 = vld [vmem:[%s4 + $0x10] sm:$0xff]
        %v2877 = vld [vmem:[%s4 + $0x18] sm:$0xff]
        %v2878 = vld [vmem:[%s4 + $0x20] sm:$0xff]
        %v2879 = vld [vmem:[%s4 + $0x28] sm:$0xff]
        %2881 = vset.pattern.permute.xlu0 0
        %2882 = vperm.xlu0 %2881, %v2874
        %v2883 = vpop.permute.xlu0 %2882
        %2886 = vset.pattern.permute.xlu0 0
        %2887 = vperm.xlu0 %2886, %v2875
        %v2888 = vpop.permute.xlu0 %2887
        %2891 = vset.pattern.permute.xlu0 0
        %2892 = vperm.xlu0 %2891, %v2876
        %v2893 = vpop.permute.xlu0 %2892
        %2896 = vset.pattern.permute.xlu0 0
        %2897 = vperm.xlu0 %2896, %v2877
        %v2898 = vpop.permute.xlu0 %2897
        %2901 = vset.pattern.permute.xlu0 0
        %2902 = vperm.xlu0 %2901, %v2878
        %v2903 = vpop.permute.xlu0 %2902
        %2906 = vset.pattern.permute.xlu0 0
        %2907 = vperm.xlu0 %2906, %v2879
        %v2908 = vpop.permute.xlu0 %2907
        %v2916 = vunpack.c.l.b16 %v2868
        %v2917 = vunpack.c.h.b16 %v2868
        %v2918 = vunpack.c.l.b16 %v2869
        %v2919 = vunpack.c.h.b16 %v2869
        %v2920 = vunpack.c.l.b16 %v2870
        %v2921 = vunpack.c.h.b16 %v2870
        %v2922 = vunpack.c.l.b16 %v2871
        %v2923 = vunpack.c.h.b16 %v2871
        %v2924 = vunpack.c.l.b16 %v2872
        %v2925 = vunpack.c.h.b16 %v2872
        %v2926 = vunpack.c.l.b16 %v2873
        %v2927 = vunpack.c.h.b16 %v2873
        %v2928 = vpack.c.b16 %v2918, %v2916
        %v2929 = vpack.c.b16 %v2919, %v2917
        %v2930 = vpack.c.b16 %v2922, %v2920
        %v2931 = vpack.c.b16 %v2923, %v2921
        %v2932 = vpack.c.b16 %v2926, %v2924
        %v2933 = vpack.c.b16 %v2927, %v2925
        %vm2937 = vcmask 523264
        %v2939 = vsel %vm2937, %v2929, 0
        %v2942 = vsel %vm2937, %v2931, 0
        %v2945 = vsel %vm2937, %v2933, 0
        %2947 = vmatprep.subr.bf16.mxu0 %v2821
        %2948 = vmatpush1.bf16.msra.mxu0 %v2820
        %2949 = vmatprep.subr.bf16.mxu0 %v2825
        %2950 = vmatpush1.bf16.msra.mxu0 %v2824
        %2951 = vmatprep.subr.bf16.mxu0 %v2829
        %2952 = vmatpush1.bf16.msra.mxu0 %v2828
        %2953 = vmatprep.subr.bf16.mxu0 %v2833
        %2954 = vmatpush1.bf16.msra.mxu0 %v2832
        %2955 = vmatprep.subr.bf16.mxu0 %v2837
        %2956 = vmatpush1.bf16.msra.mxu0 %v2836
        %2957 = vmatprep.subr.bf16.mxu0 %v2841
        %2958 = vmatpush1.bf16.msra.mxu0 %v2840
        %2959 = vmatprep.subr.bf16.mxu0 %v2845
        %2960 = vmatpush1.bf16.msra.mxu0 %v2844
        %2961 = vmatprep.subr.bf16.mxu0 %v2849
        %2962 = vmatpush1.bf16.msra.mxu0 %v2848
        %2963 = vmatprep.subr.bf16.mxu0 %v2853
        %2964 = vmatpush1.bf16.msra.mxu0 %v2852
        %2965 = vmatprep.subr.bf16.mxu0 %v2857
        %2966 = vmatpush1.bf16.msra.mxu0 %v2856
        %2967 = vmatprep.subr.bf16.mxu0 %v2861
        %2968 = vmatpush1.bf16.msra.mxu0 %v2860
        %2969 = vmatprep.subr.bf16.mxu0 %v2865
        %2970 = vmatpush1.bf16.msra.mxu0 %v2864
        %2971 = vmatprep.subr.bf16.mxu0 0
        %2972 = vmatpush1.bf16.msra.mxu0 0
        %2973 = vmatprep.subr.bf16.mxu0 0
        %2974 = vmatpush1.bf16.msra.mxu0 0
        %2975 = vmatprep.subr.bf16.mxu0 0
        %2976 = vmatpush1.bf16.msra.mxu0 0
        %2977 = vmatprep.subr.bf16.mxu0 0
        %2978 = vmatpush1.bf16.msra.mxu0 0
        %2979 = vmatprep.mubr.bf16.mxu0 %v2939
        %2980 = vmatmul.mubr.bf16.gmra.mrb[0].mxu0 %v2928
        %v2981 = vpop.f32.mrb[0].mxu0
        %v2982 = vadd.f32 %v2883, %v2981
        %v2983 = vpop.f32.mrb[0].mxu0
        %v2984 = vadd.f32 %v2883, %v2983
        %v2985 = vpop.f32.mrb[0].mxu0
        %v2986 = vadd.f32 %v2888, %v2985
        %v2987 = vpop.f32.mrb[0].mxu0
        %v2988 = vadd.f32 %v2888, %v2987
        %2989 = vmatprep.mubr.bf16.mxu0 %v2942
        %2990 = vmatmul.mubr.bf16.gmra.mrb[0].mxu0 %v2930
        %v2991 = vpop.f32.mrb[0].mxu0
        %v2992 = vadd.f32 %v2893, %v2991
        %v2993 = vpop.f32.mrb[0].mxu0
        %v2994 = vadd.f32 %v2893, %v2993
        %v2995 = vpop.f32.mrb[0].mxu0
        %v2996 = vadd.f32 %v2898, %v2995
        %v2997 = vpop.f32.mrb[0].mxu0
        %v2998 = vadd.f32 %v2898, %v2997
        %2999 = vmatprep.mubr.bf16.mxu0 %v2945
        %3000 = vmatmul.mubr.bf16.gmra.mrb[0].mxu0 %v2932
        %v3001 = vpop.f32.mrb[0].mxu0
        %v3002 = vadd.f32 %v2903, %v3001
        %v3003 = vpop.f32.mrb[0].mxu0
        %v3004 = vadd.f32 %v2903, %v3003
        %v3005 = vpop.f32.mrb[0].mxu0
        %v3006 = vadd.f32 %v2908, %v3005
        %v3007 = vpop.f32.mrb[0].mxu0
        %v3008 = vadd.f32 %v2908, %v3007
        %3009 = vdwg.mxu0
        %3010 = vmatprep.subr.bf16.mxu0 %v2823
        %3011 = vmatpush1.bf16.msra.mxu0 %v2822
        %3012 = vmatprep.subr.bf16.mxu0 %v2827
        %3013 = vmatpush1.bf16.msra.mxu0 %v2826
        %3014 = vmatprep.subr.bf16.mxu0 %v2831
        %3015 = vmatpush1.bf16.msra.mxu0 %v2830
        %3016 = vmatprep.subr.bf16.mxu0 %v2835
        %3017 = vmatpush1.bf16.msra.mxu0 %v2834
        %3018 = vmatprep.subr.bf16.mxu0 %v2839
        %3019 = vmatpush1.bf16.msra.mxu0 %v2838
        %3020 = vmatprep.subr.bf16.mxu0 %v2843
        %3021 = vmatpush1.bf16.msra.mxu0 %v2842
        %3022 = vmatprep.subr.bf16.mxu0 %v2847
        %3023 = vmatpush1.bf16.msra.mxu0 %v2846
        %3024 = vmatprep.subr.bf16.mxu0 %v2851
        %3025 = vmatpush1.bf16.msra.mxu0 %v2850
        %3026 = vmatprep.subr.bf16.mxu0 %v2855
        %3027 = vmatpush1.bf16.msra.mxu0 %v2854
        %3028 = vmatprep.subr.bf16.mxu0 %v2859
        %3029 = vmatpush1.bf16.msra.mxu0 %v2858
        %3030 = vmatprep.subr.bf16.mxu0 %v2863
        %3031 = vmatpush1.bf16.msra.mxu0 %v2862
        %3032 = vmatprep.subr.bf16.mxu0 %v2867
        %3033 = vmatpush1.bf16.msra.mxu0 %v2866
        %3034 = vmatprep.subr.bf16.mxu0 0
        %3035 = vmatpush1.bf16.msra.mxu0 0
        %3036 = vmatprep.subr.bf16.mxu0 0
        %3037 = vmatpush1.bf16.msra.mxu0 0
        %3038 = vmatprep.subr.bf16.mxu0 0
        %3039 = vmatpush1.bf16.msra.mxu0 0
        %3040 = vmatprep.subr.bf16.mxu0 0
        %3041 = vmatpush1.bf16.msra.mxu0 0
        %3042 = vmatprep.mubr.bf16.mxu0 %v2939
        %3043 = vmatmul.mubr.bf16.gmra.mrb[0].mxu0 %v2928
        %v3044 = vpop.f32.mrb[0].mxu0
        %v3045 = vadd.f32 %v2883, %v3044
        %v3046 = vpop.f32.mrb[0].mxu0
        %v3047 = vadd.f32 %v2883, %v3046
        %v3048 = vpop.f32.mrb[0].mxu0
        %v3049 = vadd.f32 %v2888, %v3048
        %v3050 = vpop.f32.mrb[0].mxu0
        %v3051 = vadd.f32 %v2888, %v3050
        %3052 = vmatprep.mubr.bf16.mxu0 %v2942
        %3053 = vmatmul.mubr.bf16.gmra.mrb[0].mxu0 %v2930
        %v3054 = vpop.f32.mrb[0].mxu0
        %v3055 = vadd.f32 %v2893, %v3054
        %v3056 = vpop.f32.mrb[0].mxu0
        %v3057 = vadd.f32 %v2893, %v3056
        %v3058 = vpop.f32.mrb[0].mxu0
        %v3059 = vadd.f32 %v2898, %v3058
        %v3060 = vpop.f32.mrb[0].mxu0
        %v3061 = vadd.f32 %v2898, %v3060
        %3062 = vmatprep.mubr.bf16.mxu0 %v2945
        %3063 = vmatmul.mubr.bf16.gmra.mrb[0].mxu0 %v2932
        %v3064 = vpop.f32.mrb[0].mxu0
        %v3065 = vadd.f32 %v2903, %v3064
        %v3066 = vpop.f32.mrb[0].mxu0
        %v3067 = vadd.f32 %v2903, %v3066
        %v3068 = vpop.f32.mrb[0].mxu0
        %v3069 = vadd.f32 %v2908, %v3068
        %v3070 = vpop.f32.mrb[0].mxu0
        %v3071 = vadd.f32 %v2908, %v3070
        %3072 = vdwg.mxu0
        %vm3073 = vcmp.gt.f32.partialorder %v2982, 0.0
        %vm3074 = vcmp.gt.f32.partialorder %v2984, 0.0
        %vm3075 = vcmp.gt.f32.partialorder %v3045, 0.0
        %vm3076 = vcmp.gt.f32.partialorder %v3047, 0.0
        %vm3077 = vcmp.gt.f32.partialorder %v2986, 0.0
        %vm3078 = vcmp.gt.f32.partialorder %v2988, 0.0
        %vm3079 = vcmp.gt.f32.partialorder %v3049, 0.0
        %vm3080 = vcmp.gt.f32.partialorder %v3051, 0.0
        %vm3081 = vcmp.gt.f32.partialorder %v2992, 0.0
        %vm3082 = vcmp.gt.f32.partialorder %v2994, 0.0
        %vm3083 = vcmp.gt.f32.partialorder %v3055, 0.0
        %vm3084 = vcmp.gt.f32.partialorder %v3057, 0.0
        %vm3085 = vcmp.gt.f32.partialorder %v2996, 0.0
        %vm3086 = vcmp.gt.f32.partialorder %v2998, 0.0
        %vm3087 = vcmp.gt.f32.partialorder %v3059, 0.0
        %vm3088 = vcmp.gt.f32.partialorder %v3061, 0.0
        %vm3089 = vcmp.gt.f32.partialorder %v3002, 0.0
        %vm3090 = vcmp.gt.f32.partialorder %v3004, 0.0
        %vm3091 = vcmp.gt.f32.partialorder %v3065, 0.0
        %vm3092 = vcmp.gt.f32.partialorder %v3067, 0.0
        %vm3093 = vcmp.gt.f32.partialorder %v3006, 0.0
        %vm3094 = vcmp.gt.f32.partialorder %v3008, 0.0
        %vm3095 = vcmp.gt.f32.partialorder %v3069, 0.0
        %vm3096 = vcmp.gt.f32.partialorder %v3071, 0.0
        %v3097 = vmin.f32 %v2982, 0.0
        %v3098 = vmin.f32 %v2984, 0.0
        %v3099 = vmin.f32 %v3045, 0.0
        %v3100 = vmin.f32 %v3047, 0.0
        %v3101 = vmin.f32 %v2986, 0.0
        %v3102 = vmin.f32 %v2988, 0.0
        %v3103 = vmin.f32 %v3049, 0.0
        %v3104 = vmin.f32 %v3051, 0.0
        %v3105 = vmin.f32 %v2992, 0.0
        %v3106 = vmin.f32 %v2994, 0.0
        %v3107 = vmin.f32 %v3055, 0.0
        %v3108 = vmin.f32 %v3057, 0.0
        %v3109 = vmin.f32 %v2996, 0.0
        %v3110 = vmin.f32 %v2998, 0.0
        %v3111 = vmin.f32 %v3059, 0.0
        %v3112 = vmin.f32 %v3061, 0.0
        %v3113 = vmin.f32 %v3002, 0.0
        %v3114 = vmin.f32 %v3004, 0.0
        %v3115 = vmin.f32 %v3065, 0.0
        %v3116 = vmin.f32 %v3067, 0.0
        %v3117 = vmin.f32 %v3006, 0.0
        %v3118 = vmin.f32 %v3008, 0.0
        %v3119 = vmin.f32 %v3069, 0.0
        %v3120 = vmin.f32 %v3071, 0.0
        %v3121 = vmul.f32 %v3097, 1.442695
        %v3122 = vpow.pop %v3121
        %v3123 = vmul.f32 %v3098, 1.442695
        %v3124 = vpow.pop %v3123
        %v3125 = vmul.f32 %v3099, 1.442695
        %v3126 = vpow.pop %v3125
        %v3127 = vmul.f32 %v3100, 1.442695
        %v3128 = vpow.pop %v3127
        %v3129 = vmul.f32 %v3101, 1.442695
        %v3130 = vpow.pop %v3129
        %v3131 = vmul.f32 %v3102, 1.442695
        %v3132 = vpow.pop %v3131
        %v3133 = vmul.f32 %v3103, 1.442695
        %v3134 = vpow.pop %v3133
        %v3135 = vmul.f32 %v3104, 1.442695
        %v3136 = vpow.pop %v3135
        %v3137 = vmul.f32 %v3105, 1.442695
        %v3138 = vpow.pop %v3137
        %v3139 = vmul.f32 %v3106, 1.442695
        %v3140 = vpow.pop %v3139
        %v3141 = vmul.f32 %v3107, 1.442695
        %v3142 = vpow.pop %v3141
        %v3143 = vmul.f32 %v3108, 1.442695
        %v3144 = vpow.pop %v3143
        %v3145 = vmul.f32 %v3109, 1.442695
        %v3146 = vpow.pop %v3145
        %v3147 = vmul.f32 %v3110, 1.442695
        %v3148 = vpow.pop %v3147
        %v3149 = vmul.f32 %v3111, 1.442695
        %v3150 = vpow.pop %v3149
        %v3151 = vmul.f32 %v3112, 1.442695
        %v3152 = vpow.pop %v3151
        %v3153 = vmul.f32 %v3113, 1.442695
        %v3154 = vpow.pop %v3153
        %v3155 = vmul.f32 %v3114, 1.442695
        %v3156 = vpow.pop %v3155
        %v3157 = vmul.f32 %v3115, 1.442695
        %v3158 = vpow.pop %v3157
        %v3159 = vmul.f32 %v3116, 1.442695
        %v3160 = vpow.pop %v3159
        %v3161 = vmul.f32 %v3117, 1.442695
        %v3162 = vpow.pop %v3161
        %v3163 = vmul.f32 %v3118, 1.442695
        %v3164 = vpow.pop %v3163
        %v3165 = vmul.f32 %v3119, 1.442695
        %v3166 = vpow.pop %v3165
        %v3167 = vmul.f32 %v3120, 1.442695
        %v3168 = vpow.pop %v3167
        %v3169 = vsub.f32 %v3122, 1.0
        %v3170 = vsub.f32 %v3124, 1.0
        %v3171 = vsub.f32 %v3126, 1.0
        %v3172 = vsub.f32 %v3128, 1.0
        %v3173 = vsub.f32 %v3130, 1.0
        %v3174 = vsub.f32 %v3132, 1.0
        %v3175 = vsub.f32 %v3134, 1.0
        %v3176 = vsub.f32 %v3136, 1.0
        %v3177 = vsub.f32 %v3138, 1.0
        %v3178 = vsub.f32 %v3140, 1.0
        %v3179 = vsub.f32 %v3142, 1.0
        %v3180 = vsub.f32 %v3144, 1.0
        %v3181 = vsub.f32 %v3146, 1.0
        %v3182 = vsub.f32 %v3148, 1.0
        %v3183 = vsub.f32 %v3150, 1.0
        %v3184 = vsub.f32 %v3152, 1.0
        %v3185 = vsub.f32 %v3154, 1.0
        %v3186 = vsub.f32 %v3156, 1.0
        %v3187 = vsub.f32 %v3158, 1.0
        %v3188 = vsub.f32 %v3160, 1.0
        %v3189 = vsub.f32 %v3162, 1.0
        %v3190 = vsub.f32 %v3164, 1.0
        %v3191 = vsub.f32 %v3166, 1.0
        %v3192 = vsub.f32 %v3168, 1.0
        %v3193 = vsel %vm3073, %v2982, %v3169
        %v3194 = vsel %vm3074, %v2984, %v3170
        %v3195 = vsel %vm3075, %v3045, %v3171
        %v3196 = vsel %vm3076, %v3047, %v3172
        %v3197 = vsel %vm3077, %v2986, %v3173
        %v3198 = vsel %vm3078, %v2988, %v3174
        %v3199 = vsel %vm3079, %v3049, %v3175
        %v3200 = vsel %vm3080, %v3051, %v3176
        %v3201 = vsel %vm3081, %v2992, %v3177
        %v3202 = vsel %vm3082, %v2994, %v3178
        %v3203 = vsel %vm3083, %v3055, %v3179
        %v3204 = vsel %vm3084, %v3057, %v3180
        %v3205 = vsel %vm3085, %v2996, %v3181
        %v3206 = vsel %vm3086, %v2998, %v3182
        %v3207 = vsel %vm3087, %v3059, %v3183
        %v3208 = vsel %vm3088, %v3061, %v3184
        %v3209 = vsel %vm3089, %v3002, %v3185
        %v3210 = vsel %vm3090, %v3004, %v3186
        %v3211 = vsel %vm3091, %v3065, %v3187
        %v3212 = vsel %vm3092, %v3067, %v3188
        %v3213 = vsel %vm3093, %v3006, %v3189
        %v3214 = vsel %vm3094, %v3008, %v3190
        %v3215 = vsel %vm3095, %v3069, %v3191
        %v3216 = vsel %vm3096, %v3071, %v3192
        %v3217 = vpack.c.bf16 %v3197, %v3193
        %v3218 = vpack.c.bf16 %v3198, %v3194
        %v3219 = vpack.c.bf16 %v3199, %v3195
        %v3220 = vpack.c.bf16 %v3200, %v3196
        %v3221 = vpack.c.bf16 %v3205, %v3201
        %v3222 = vpack.c.bf16 %v3206, %v3202
        %v3223 = vpack.c.bf16 %v3207, %v3203
        %v3224 = vpack.c.bf16 %v3208, %v3204
        %v3225 = vpack.c.bf16 %v3213, %v3209
        %v3226 = vpack.c.bf16 %v3214, %v3210
        %v3227 = vpack.c.bf16 %v3215, %v3211
        %v3228 = vpack.c.bf16 %v3216, %v3212
        %v3229 = vld [vmem:[#allocation8] sm:$0xf]
        %v3230 = vld [vmem:[#allocation8 + $0x4] sm:$0xf]
        %v3231 = vld [vmem:[#allocation8 + $0x8] sm:$0xf]
        %v3232 = vld [vmem:[#allocation8 + $0xc] sm:$0xf]
        %v3233 = vld [vmem:[#allocation8 + $0x10] sm:$0xf]
        %v3234 = vld [vmem:[#allocation8 + $0x14] sm:$0xf]
        %v3235 = vld [vmem:[#allocation8 + $0x18] sm:$0xf]
        %v3236 = vld [vmem:[#allocation8 + $0x1c] sm:$0xf]
        %v3237 = vld [vmem:[#allocation8 + $0x20] sm:$0xf]
        %v3238 = vld [vmem:[#allocation8 + $0x24] sm:$0xf]
        %v3239 = vld [vmem:[#allocation8 + $0x28] sm:$0xf]
        %v3240 = vld [vmem:[#allocation8 + $0x2c] sm:$0xf]
        %v3241 = vld [vmem:[#allocation8 + $0x30] sm:$0xf]
        %v3242 = vld [vmem:[#allocation8 + $0x34] sm:$0xf]
        %v3243 = vld [vmem:[#allocation8 + $0x38] sm:$0xf]
        %v3244 = vld [vmem:[#allocation8 + $0x3c] sm:$0xf]
        %v3245 = vld [vmem:[#allocation8 + $0x40] sm:$0xf]
        %v3246 = vld [vmem:[#allocation8 + $0x44] sm:$0xf]
        %v3247 = vld [vmem:[#allocation8 + $0x48] sm:$0xf]
        %v3248 = vld [vmem:[#allocation8 + $0x4c] sm:$0xf]
        %v3249 = vld [vmem:[#allocation8 + $0x50] sm:$0xf]
        %v3250 = vld [vmem:[#allocation8 + $0x54] sm:$0xf]
        %v3251 = vld [vmem:[#allocation8 + $0x58] sm:$0xf]
        %v3252 = vld [vmem:[#allocation8 + $0x5c] sm:$0xf]
        %v3253 = vld [vmem:[#allocation8 + $0x60] sm:$0xf]
        %v3254 = vld [vmem:[#allocation8 + $0x64] sm:$0xf]
        %v3255 = vld [vmem:[#allocation8 + $0x68] sm:$0xf]
        %v3256 = vld [vmem:[#allocation8 + $0x6c] sm:$0xf]
        %v3257 = vld [vmem:[#allocation8 + $0x70] sm:$0xf]
        %v3258 = vld [vmem:[#allocation8 + $0x74] sm:$0xf]
        %v3259 = vld [vmem:[#allocation8 + $0x78] sm:$0xf]
        %v3260 = vld [vmem:[#allocation8 + $0x7c] sm:$0xf]
        %v3261 = vld [vmem:[#allocation8 + $0x80] sm:$0xf]
        %v3262 = vld [vmem:[#allocation8 + $0x84] sm:$0xf]
        %v3263 = vld [vmem:[#allocation8 + $0x88] sm:$0xf]
        %v3264 = vld [vmem:[#allocation8 + $0x8c] sm:$0xf]
        %v3265 = vld [vmem:[#allocation8 + $0x90] sm:$0xf]
        %v3266 = vld [vmem:[#allocation8 + $0x94] sm:$0xf]
        %v3267 = vld [vmem:[#allocation8 + $0x98] sm:$0xf]
        %v3268 = vld [vmem:[#allocation8 + $0x9c] sm:$0xf]
        %v3269 = vld [vmem:[#allocation8 + $0xa0] sm:$0xf]
        %v3270 = vld [vmem:[#allocation8 + $0xa4] sm:$0xf]
        %v3271 = vld [vmem:[#allocation8 + $0xa8] sm:$0xf]
        %v3272 = vld [vmem:[#allocation8 + $0xac] sm:$0xf]
        %v3273 = vld [vmem:[#allocation8 + $0xb0] sm:$0xf]
        %v3274 = vld [vmem:[#allocation8 + $0xb4] sm:$0xf]
        %v3275 = vld [vmem:[#allocation8 + $0xb8] sm:$0xf]
        %v3276 = vld [vmem:[#allocation8 + $0xbc] sm:$0xf]
        %v3277 = vld [vmem:[#allocation8 + $0xc0] sm:$0xf]
        %v3278 = vld [vmem:[#allocation8 + $0xc4] sm:$0xf]
        %v3279 = vld [vmem:[#allocation8 + $0xc8] sm:$0xf]
        %v3280 = vld [vmem:[#allocation8 + $0xcc] sm:$0xf]
        %v3281 = vld [vmem:[#allocation8 + $0xd0] sm:$0xf]
        %v3282 = vld [vmem:[#allocation8 + $0xd4] sm:$0xf]
        %v3283 = vld [vmem:[#allocation8 + $0xd8] sm:$0xf]
        %v3284 = vld [vmem:[#allocation8 + $0xdc] sm:$0xf]
        %v3285 = vld [vmem:[#allocation8 + $0xe0] sm:$0xf]
        %v3286 = vld [vmem:[#allocation8 + $0xe4] sm:$0xf]
        %v3287 = vld [vmem:[#allocation8 + $0xe8] sm:$0xf]
        %v3288 = vld [vmem:[#allocation8 + $0xec] sm:$0xf]
        %v3289 = vld [vmem:[#allocation8 + $0xf0] sm:$0xf]
        %v3290 = vld [vmem:[#allocation8 + $0xf4] sm:$0xf]
        %v3291 = vld [vmem:[#allocation8 + $0xf8] sm:$0xf]
        %v3292 = vld [vmem:[#allocation8 + $0xfc] sm:$0xf]
        %v3357 = vunpack.c.l.b16 %v3229
        %v3358 = vunpack.c.l.b16 %v3230
        %v3359 = vunpack.c.l.b16 %v3231
        %v3360 = vunpack.c.l.b16 %v3232
        %v3361 = vunpack.c.l.b16 %v3233
        %v3362 = vunpack.c.l.b16 %v3234
        %v3363 = vunpack.c.l.b16 %v3235
        %v3364 = vunpack.c.l.b16 %v3236
        %v3365 = vunpack.c.l.b16 %v3237
        %v3366 = vunpack.c.l.b16 %v3238
        %v3367 = vunpack.c.l.b16 %v3239
        %v3368 = vunpack.c.l.b16 %v3240
        %v3369 = vunpack.c.l.b16 %v3241
        %v3370 = vunpack.c.l.b16 %v3242
        %v3371 = vunpack.c.l.b16 %v3243
        %v3372 = vunpack.c.l.b16 %v3244
        %v3373 = vunpack.c.l.b16 %v3245
        %v3374 = vunpack.c.l.b16 %v3246
        %v3375 = vunpack.c.l.b16 %v3247
        %v3376 = vunpack.c.l.b16 %v3248
        %v3377 = vunpack.c.l.b16 %v3249
        %v3378 = vunpack.c.l.b16 %v3250
        %v3379 = vunpack.c.l.b16 %v3251
        %v3380 = vunpack.c.l.b16 %v3252
        %v3381 = vunpack.c.l.b16 %v3253
        %v3382 = vunpack.c.l.b16 %v3254
        %v3383 = vunpack.c.l.b16 %v3255
        %v3384 = vunpack.c.l.b16 %v3256
        %v3385 = vunpack.c.l.b16 %v3257
        %v3386 = vunpack.c.l.b16 %v3258
        %v3387 = vunpack.c.l.b16 %v3259
        %v3388 = vunpack.c.l.b16 %v3260
        %v3389 = vunpack.c.l.b16 %v3261
        %v3390 = vunpack.c.l.b16 %v3262
        %v3391 = vunpack.c.l.b16 %v3263
        %v3392 = vunpack.c.l.b16 %v3264
        %v3393 = vunpack.c.l.b16 %v3265
        %v3394 = vunpack.c.l.b16 %v3266
        %v3395 = vunpack.c.l.b16 %v3267
        %v3396 = vunpack.c.l.b16 %v3268
        %v3397 = vunpack.c.l.b16 %v3269
        %v3398 = vunpack.c.l.b16 %v3270
        %v3399 = vunpack.c.l.b16 %v3271
        %v3400 = vunpack.c.l.b16 %v3272
        %v3401 = vunpack.c.l.b16 %v3273
        %v3402 = vunpack.c.l.b16 %v3274
        %v3403 = vunpack.c.l.b16 %v3275
        %v3404 = vunpack.c.l.b16 %v3276
        %v3405 = vunpack.c.l.b16 %v3277
        %v3406 = vunpack.c.l.b16 %v3278
        %v3407 = vunpack.c.l.b16 %v3279
        %v3408 = vunpack.c.l.b16 %v3280
        %v3409 = vunpack.c.l.b16 %v3281
        %v3410 = vunpack.c.l.b16 %v3282
        %v3411 = vunpack.c.l.b16 %v3283
        %v3412 = vunpack.c.l.b16 %v3284
        %v3413 = vunpack.c.l.b16 %v3285
        %v3414 = vunpack.c.l.b16 %v3286
        %v3415 = vunpack.c.l.b16 %v3287
        %v3416 = vunpack.c.l.b16 %v3288
        %v3417 = vunpack.c.l.b16 %v3289
        %v3418 = vunpack.c.l.b16 %v3290
        %v3419 = vunpack.c.l.b16 %v3291
        %v3420 = vunpack.c.l.b16 %v3292
        %v3421 = vpack.c.b16 %v3358, %v3357
        %v3422 = vpack.c.b16 %v3360, %v3359
        %v3423 = vpack.c.b16 %v3362, %v3361
        %v3424 = vpack.c.b16 %v3364, %v3363
        %v3425 = vpack.c.b16 %v3366, %v3365
        %v3426 = vpack.c.b16 %v3368, %v3367
        %v3427 = vpack.c.b16 %v3370, %v3369
        %v3428 = vpack.c.b16 %v3372, %v3371
        %v3429 = vpack.c.b16 %v3374, %v3373
        %v3430 = vpack.c.b16 %v3376, %v3375
        %v3431 = vpack.c.b16 %v3378, %v3377
        %v3432 = vpack.c.b16 %v3380, %v3379
        %v3433 = vpack.c.b16 %v3382, %v3381
        %v3434 = vpack.c.b16 %v3384, %v3383
        %v3435 = vpack.c.b16 %v3386, %v3385
        %v3436 = vpack.c.b16 %v3388, %v3387
        %v3437 = vpack.c.b16 %v3390, %v3389
        %v3438 = vpack.c.b16 %v3392, %v3391
        %v3439 = vpack.c.b16 %v3394, %v3393
        %v3440 = vpack.c.b16 %v3396, %v3395
        %v3441 = vpack.c.b16 %v3398, %v3397
        %v3442 = vpack.c.b16 %v3400, %v3399
        %v3443 = vpack.c.b16 %v3402, %v3401
        %v3444 = vpack.c.b16 %v3404, %v3403
        %v3445 = vpack.c.b16 %v3406, %v3405
        %v3446 = vpack.c.b16 %v3408, %v3407
        %v3447 = vpack.c.b16 %v3410, %v3409
        %v3448 = vpack.c.b16 %v3412, %v3411
        %v3449 = vpack.c.b16 %v3414, %v3413
        %v3450 = vpack.c.b16 %v3416, %v3415
        %v3451 = vpack.c.b16 %v3418, %v3417
        %v3452 = vpack.c.b16 %v3420, %v3419
        %3485 = vmatprep.subr.bf16.mxu0 0
        %3486 = vmatpush1.bf16.msra.mxu0 %v3421
        %3487 = vmatprep.subr.bf16.mxu0 0
        %3488 = vmatpush1.bf16.msra.mxu0 %v3422
        %3489 = vmatprep.subr.bf16.mxu0 0
        %3490 = vmatpush1.bf16.msra.mxu0 %v3423
        %3491 = vmatprep.subr.bf16.mxu0 0
        %3492 = vmatpush1.bf16.msra.mxu0 %v3424
        %3493 = vmatprep.subr.bf16.mxu0 0
        %3494 = vmatpush1.bf16.msra.mxu0 %v3425
        %3495 = vmatprep.subr.bf16.mxu0 0
        %3496 = vmatpush1.bf16.msra.mxu0 %v3426
        %3497 = vmatprep.subr.bf16.mxu0 0
        %3498 = vmatpush1.bf16.msra.mxu0 %v3427
        %3499 = vmatprep.subr.bf16.mxu0 0
        %3500 = vmatpush1.bf16.msra.mxu0 %v3428
        %3501 = vmatprep.subr.bf16.mxu0 0
        %3502 = vmatpush1.bf16.msra.mxu0 %v3429
        %3503 = vmatprep.subr.bf16.mxu0 0
        %3504 = vmatpush1.bf16.msra.mxu0 %v3430
        %3505 = vmatprep.subr.bf16.mxu0 0
        %3506 = vmatpush1.bf16.msra.mxu0 %v3431
        %3507 = vmatprep.subr.bf16.mxu0 0
        %3508 = vmatpush1.bf16.msra.mxu0 %v3432
        %3509 = vmatprep.subr.bf16.mxu0 0
        %3510 = vmatpush1.bf16.msra.mxu0 %v3433
        %3511 = vmatprep.subr.bf16.mxu0 0
        %3512 = vmatpush1.bf16.msra.mxu0 %v3434
        %3513 = vmatprep.subr.bf16.mxu0 0
        %3514 = vmatpush1.bf16.msra.mxu0 %v3435
        %3515 = vmatprep.subr.bf16.mxu0 0
        %3516 = vmatpush1.bf16.msra.mxu0 %v3436
        %3517 = vmatprep.mubr.bf16.mxu0 %v3218
        %3518 = vmatmul.mubr.bf16.gmra.mrb[0].mxu0 %v3217
        %v3519 = vpop.f32.mrb[0].mxu0
        %v3520 = vadd.f32 0.0, %v3519
        %v3521 = vpop.f32.mrb[0].mxu0
        %v3522 = vpop.f32.mrb[0].mxu0
        %v3523 = vadd.f32 0.0, %v3522
        %v3524 = vpop.f32.mrb[0].mxu0
        %3525 = vmatprep.mubr.bf16.mxu0 %v3222
        %3526 = vmatmul.mubr.bf16.gmra.mrb[0].mxu0 %v3221
        %v3527 = vpop.f32.mrb[0].mxu0
        %v3528 = vadd.f32 0.0, %v3527
        %v3529 = vpop.f32.mrb[0].mxu0
        %v3530 = vpop.f32.mrb[0].mxu0
        %v3531 = vadd.f32 0.0, %v3530
        %v3532 = vpop.f32.mrb[0].mxu0
        %3533 = vmatprep.mubr.bf16.mxu0 %v3226
        %3534 = vmatmul.mubr.bf16.gmra.mrb[0].mxu0 %v3225
        %v3535 = vpop.f32.mrb[0].mxu0
        %v3536 = vadd.f32 0.0, %v3535
        %v3537 = vpop.f32.mrb[0].mxu0
        %v3538 = vpop.f32.mrb[0].mxu0
        %v3539 = vadd.f32 0.0, %v3538
        %v3540 = vpop.f32.mrb[0].mxu0
        %3541 = vdwg.mxu0
        %3542 = vmatprep.subr.bf16.mxu0 0
        %3543 = vmatpush1.bf16.msra.mxu0 %v3437
        %3544 = vmatprep.subr.bf16.mxu0 0
        %3545 = vmatpush1.bf16.msra.mxu0 %v3438
        %3546 = vmatprep.subr.bf16.mxu0 0
        %3547 = vmatpush1.bf16.msra.mxu0 %v3439
        %3548 = vmatprep.subr.bf16.mxu0 0
        %3549 = vmatpush1.bf16.msra.mxu0 %v3440
        %3550 = vmatprep.subr.bf16.mxu0 0
        %3551 = vmatpush1.bf16.msra.mxu0 %v3441
        %3552 = vmatprep.subr.bf16.mxu0 0
        %3553 = vmatpush1.bf16.msra.mxu0 %v3442
        %3554 = vmatprep.subr.bf16.mxu0 0
        %3555 = vmatpush1.bf16.msra.mxu0 %v3443
        %3556 = vmatprep.subr.bf16.mxu0 0
        %3557 = vmatpush1.bf16.msra.mxu0 %v3444
        %3558 = vmatprep.subr.bf16.mxu0 0
        %3559 = vmatpush1.bf16.msra.mxu0 %v3445
        %3560 = vmatprep.subr.bf16.mxu0 0
        %3561 = vmatpush1.bf16.msra.mxu0 %v3446
        %3562 = vmatprep.subr.bf16.mxu0 0
        %3563 = vmatpush1.bf16.msra.mxu0 %v3447
        %3564 = vmatprep.subr.bf16.mxu0 0
        %3565 = vmatpush1.bf16.msra.mxu0 %v3448
        %3566 = vmatprep.subr.bf16.mxu0 0
        %3567 = vmatpush1.bf16.msra.mxu0 %v3449
        %3568 = vmatprep.subr.bf16.mxu0 0
        %3569 = vmatpush1.bf16.msra.mxu0 %v3450
        %3570 = vmatprep.subr.bf16.mxu0 0
        %3571 = vmatpush1.bf16.msra.mxu0 %v3451
        %3572 = vmatprep.subr.bf16.mxu0 0
        %3573 = vmatpush1.bf16.msra.mxu0 %v3452
        %3574 = vmatprep.mubr.bf16.mxu0 %v3220
        %3575 = vmatmul.mubr.bf16.gmra.mrb[0].mxu0 %v3219
        %v3576 = vpop.f32.mrb[0].mxu0
        %v3577 = vadd.f32 %v3520, %v3576
        %v3578 = vpop.f32.mrb[0].mxu0
        %v3579 = vpop.f32.mrb[0].mxu0
        %v3580 = vadd.f32 %v3523, %v3579
        %v3581 = vpop.f32.mrb[0].mxu0
        %3582 = vmatprep.mubr.bf16.mxu0 %v3224
        %3583 = vmatmul.mubr.bf16.gmra.mrb[0].mxu0 %v3223
        %v3584 = vpop.f32.mrb[0].mxu0
        %v3585 = vadd.f32 %v3528, %v3584
        %v3586 = vpop.f32.mrb[0].mxu0
        %v3587 = vpop.f32.mrb[0].mxu0
        %v3588 = vadd.f32 %v3531, %v3587
        %v3589 = vpop.f32.mrb[0].mxu0
        %3590 = vmatprep.mubr.bf16.mxu0 %v3228
        %3591 = vmatmul.mubr.bf16.gmra.mrb[0].mxu0 %v3227
        %v3592 = vpop.f32.mrb[0].mxu0
        %v3593 = vadd.f32 %v3536, %v3592
        %v3594 = vpop.f32.mrb[0].mxu0
        %v3595 = vpop.f32.mrb[0].mxu0
        %v3596 = vadd.f32 %v3539, %v3595
        %v3597 = vpop.f32.mrb[0].mxu0
        %3598 = vdwg.mxu0
        %3599 = vst [vmem:[%s311] sm:$0xff] %v3577
        %3600 = vst [vmem:[%s311 + $0x8] sm:$0xff] %v3580
        %3601 = vst [vmem:[%s311 + $0x10] sm:$0xff] %v3585
        %3602 = vst [vmem:[%s311 + $0x18] sm:$0xff] %v3588
        %3603 = vst [vmem:[%s311 + $0x20] sm:$0xff] %v3593
        %3604 = vst [vmem:[%s311 + $0x28] sm:$0xff] %v3596
        %s3605 = sand.u32 %s164, 1
        %s3606 = scalar_lea.sflag [#allocation4], %s3605
        %s3607 = sand.u32 %s164, 1
        %s3608 = smul.addr %s3607, 48
        %s3609 = scalar_lea.vmem [#allocation10], %s3608
        // Predicated region
        $region61: #{tpu_custom_call.1} parent=43 // pred_check
          %p3610 = pneg %p174
        $region62: #{tpu_custom_call.1} parent=43 // pred_check_branch
          %3612 = sbr.rel (%p3610) target = $region64
        $region63: #{tpu_custom_call.1} parent=43 // pred_region
          %s3614 = ssub.s32 768, 768
          %3615 = vsyncadd %s3606, %s3614
          %s3616 = smul.addr %s25, 6
          %s3617 = smul.addr %s3616, 128
          %s3618 = scalar_lea.hbm %s6, %s3617
          %s3619 = sshll.u32 %s3609, 4
          %s3620 = int_to_ptr.vmem [resolvable:$true] %s3619
          %3625 = dma.vmem_to_hbm [thread:$0]  %s3620, 768, %s3618, %s3606, 128, 128, 8
        $region64: #{tpu_custom_call.1} parent=43 // pred_fallthru
          _
      $region44: #{tpu_custom_call.1} parent=5 // pred_fallthru
        _
      %p3626 = scmp.le.s32.totalorder 2, %s20
      // Predicated region
      $region65: #{tpu_custom_call.1} parent=5 // pred_check
        %p3627 = pneg %p3626
      $region66: #{tpu_custom_call.1} parent=5 // pred_check_branch
        %3629 = sbr.rel (%p3627) target = $region68
      $region67: #{tpu_custom_call.1} parent=5 // pred_region
        %s3630 = ssub.s32 %s20, 2
        // Predicated region
        $region69: #{tpu_custom_call.1} parent=67 // pred_check
          %p3631 = pneg %p180
        $region70: #{tpu_custom_call.1} parent=67 // pred_check_branch
          %3633 = sbr.rel (%p3631) target = $region72
        $region71: #{tpu_custom_call.1} parent=67 // pred_region
          %s3634 = sand.u32 %s165, 1
          %s3635 = scalar_lea.sflag [#allocation4], %s3634
          %s3636 = sand.u32 %s165, 1
          %s3637 = smul.addr %s3636, 48
          %s3638 = scalar_lea.vmem [#allocation10], %s3637
          %3639 = dma.done %s3635, 768
        $region72: #{tpu_custom_call.1} parent=67 // pred_fallthru
          _
      $region68: #{tpu_custom_call.1} parent=5 // pred_fallthru
        _
    $region6: #{tpu_custom_call.1} parent=1 // loop_footer
      %s24 = sadd.s32 1, %s20
    $region7: #{tpu_custom_call.1} parent=1 // loop_footer_branch
      %19 = sbr.rel target = $region3
    $region8: #{tpu_custom_call.1} parent=1 // loop_exit
      _
    %3640 = vsyncpa [#allocation3], 1
    %s3641 = scalar_lea.sflag [#allocation3], 1
    %3642 = vsyncpa %s3641, 1
    %3643 = vsyncpa [#allocation6], 1
    %3644 = vsyncpa [#allocation9], 1
    %3645 = vsyncpa [#allocation4], 1
    %s3646 = scalar_lea.sflag [#allocation4], 1
    %3647 = vsyncpa %s3646, 1

</llo_original>
